<compile_context>
chip_gen: v7x
topology: tpu7x:2x2x1
jax: 0.10.0
libtpu: 0.0.40
codegen_flags: <defaults>
</compile_context>

<pallas_src>
import functools

import numpy as np

import jax
import jax.numpy as jnp
from jax.experimental import pallas as pl
from jax.experimental.pallas import tpu as pltpu


# ----------------------------------------------------------------------------
# Fused kernel: encoder (3x Conv1d s2) + decoder (3x ConvTranspose1d s2) + 3 FC.
# One grid step = one batch sample. Activation layout is (length, channels):
# length on sublanes, channels on lanes.
#   encoder: input packed as (L/8, 8); layer-1 output kept in 4 length-phases,
#            layer-2 in 2 phases, layer-3 dense at L/8.
#   decoder: transposed convs split into even/odd output phases (2 -> 4 -> 8),
#            final reconstruction packed as (L/8, 8).
# ----------------------------------------------------------------------------
def _deep_model_kernel(
    x8_ref,
    e1w_ref, e1b_ref, e2w_ref, e2b_ref, e3w_ref, e3b_ref,
    d1w_ref, d1b_ref, d2w_ref, d2b_ref, d3w_ref, d3b_ref,
    fc1w_ref, fc1b_ref, fc2w_ref, fc2b_ref, fc3w_ref, fc3b_ref,
    enc_out_ref, dec_out_ref, logits_ref,
):
    f32 = jnp.float32
    bf16 = jnp.bfloat16

    def shift_down(v):  # row m of result = row m-1 of v (zeros in row 0)
        return jnp.concatenate(
            [jnp.zeros((1, v.shape[1]), v.dtype), v[:-1, :]], axis=0)

    def shift_up(v):    # row m of result = row m+1 of v (zeros in last row)
        return jnp.concatenate(
            [v[1:, :], jnp.zeros((1, v.shape[1]), v.dtype)], axis=0)

    def relu(v):
        return jnp.maximum(v, 0.0)

    def mm(a, w):       # bf16 operands on the MXU, f32 accumulation
        return jnp.dot(a.astype(bf16), w, preferred_element_type=f32)

    x8 = x8_ref[0].astype(f32)        # (L8, 8): x8[m, j] = x[8*m + j]

    # ---- encoder layer 1: Conv1d(1->32, k3, s2, p1) + ReLU  (Cin=1 -> VPU) ----
    # phases: e1[p][m] = out1[4m + p]; taps at x[8m+2p-1], x[8m+2p], x[8m+2p+1]
    w0 = e1w_ref[0].astype(f32)       # (1, 32)
    w1 = e1w_ref[1].astype(f32)
    w2 = e1w_ref[2].astype(f32)
    b1 = e1b_ref[...].astype(f32)
    left0 = shift_down(x8[:, 7:8])    # x[8m - 1]
    e1 = []
    for p in range(4):
        xl = left0 if p == 0 else x8[:, 2 * p - 1:2 * p]
        xm = x8[:, 2 * p:2 * p + 1]
        xr = x8[:, 2 * p + 1:2 * p + 2]
        e1.append(relu(xl * w0 + xm * w1 + xr * w2 + b1))          # (L8, 32)

    # ---- encoder layer 2: Conv1d(32->64) + ReLU, 2 output phases ----
    v0, v1, v2 = e2w_ref[0], e2w_ref[1], e2w_ref[2]                # (32, 64) bf16
    b2 = e2b_ref[...].astype(f32)
    e2_0 = relu(mm(shift_down(e1[3]), v0) + mm(e1[0], v1) + mm(e1[1], v2) + b2)
    e2_1 = relu(mm(e1[1], v0) + mm(e1[2], v1) + mm(e1[3], v2) + b2)

    # ---- encoder layer 3: Conv1d(64->128) + ReLU, dense at L/8 ----
    u0, u1, u2 = e3w_ref[0], e3w_ref[1], e3w_ref[2]                # (64, 128) bf16
    b3 = e3b_ref[...].astype(f32)
    enc = relu(mm(shift_down(e2_1), u0) + mm(e2_0, u1) + mm(e2_1, u2) + b3)
    enc_out_ref[0] = enc.astype(enc_out_ref.dtype)                 # (L8, 128)

    # ---- decoder layer 1: ConvT(128->64, k3, s2, p1, op1) + ReLU, 2 phases ----
    g0, g1, g2 = d1w_ref[0], d1w_ref[1], d1w_ref[2]                # (128, 64) bf16
    c1 = d1b_ref[...].astype(f32)
    d1_even = relu(mm(enc, g1) + c1)                               # out[2m]
    d1_odd = relu(mm(enc, g2) + mm(shift_up(enc), g0) + c1)        # out[2m+1]

    # ---- decoder layer 2: ConvT(64->32) + ReLU, 4 phases ----
    h0, h1, h2 = d2w_ref[0], d2w_ref[1], d2w_ref[2]                # (64, 32) bf16
    c2 = d2b_ref[...].astype(f32)
    d2 = [
        relu(mm(d1_even, h1) + c2),                                # out[4m]
        relu(mm(d1_even, h2) + mm(d1_odd, h0) + c2),               # out[4m+1]
        relu(mm(d1_odd, h1) + c2),                                 # out[4m+2]
        relu(mm(d1_odd, h2) + mm(shift_up(d1_even), h0) + c2),     # out[4m+3]
    ]

    # ---- decoder layer 3: ConvT(32->1) + ReLU, 8 phases packed on lanes ----
    t0, t1, t2 = d3w_ref[0], d3w_ref[1], d3w_ref[2]                # (32, 1) bf16
    c3 = d3b_ref[...].astype(f32)                                  # (1, 1)
    cols = []
    for p in range(4):
        nxt = d2[p + 1] if p < 3 else shift_up(d2[0])
        cols.append(relu(mm(d2[p], t1) + c3))                      # out[8m+2p]
        cols.append(relu(mm(d2[p], t2) + mm(nxt, t0) + c3))        # out[8m+2p+1]
    dec_out_ref[0] = jnp.concatenate(cols, axis=1).astype(dec_out_ref.dtype)

    # ---- classifier head (fc1 weight pre-permuted to the kernel's (l, c) order) ----
    L8 = enc.shape[0]
    flat = jnp.concatenate([enc[l:l + 1, :] for l in range(L8)], axis=1)  # (1, L8*128)
    a1 = relu(mm(flat, fc1w_ref[...]) + fc1b_ref[...].astype(f32))
    a2 = relu(mm(a1, fc2w_ref[...]) + fc2b_ref[...].astype(f32))
    logits = mm(a2, fc3w_ref[...]) + fc3b_ref[...].astype(f32)     # (1, ncp)
    logits_ref[0] = logits.astype(logits_ref.dtype)


# ----------------------------------------------------------------------------
# Wrapper
# ----------------------------------------------------------------------------
def _full_spec(shape):
    nd = len(shape)
    return pl.BlockSpec(shape, lambda b, _nd=nd: (0,) * _nd)


_WEIGHT_ORDER = (
    "e1_w", "e1_b", "e2_w", "e2_b", "e3_w", "e3_b",
    "d1_w", "d1_b", "d2_w", "d2_b", "d3_w", "d3_b",
    "fc1_w", "fc1_b", "fc2_w", "fc2_b", "fc3_w", "fc3_b",
)


@functools.partial(jax.jit, static_argnames=("num_classes",))
def deep_model_forward(kp, x, *, num_classes):
    """x: (B, 1, L) -> (encoded_flat (B, 128*L/8), decoded (B, 1, L), logits (B, nc))."""
    B, cin, L = x.shape
    assert cin == 1 and L % 8 == 0 and L >= 16
    L8 = L // 8
    ncp = kp["fc3_b"].shape[-1]

    x8 = x.astype(jnp.float32).reshape(B, L8, 8)
    weights = [kp[name] for name in _WEIGHT_ORDER]

    in_specs = [pl.BlockSpec((1, L8, 8), lambda b: (b, 0, 0))]
    in_specs += [_full_spec(w.shape) for w in weights]
    out_shape = (
        jax.ShapeDtypeStruct((B, L8, 128), jnp.float32),   # encoded, (l, c) layout
        jax.ShapeDtypeStruct((B, L8, 8), jnp.float32),     # decoded, 8 samples per row
        jax.ShapeDtypeStruct((B, 1, ncp), jnp.float32),    # logits, lane-padded
    )
    out_specs = (
        pl.BlockSpec((1, L8, 128), lambda b: (b, 0, 0)),
        pl.BlockSpec((1, L8, 8), lambda b: (b, 0, 0)),
        pl.BlockSpec((1, 1, ncp), lambda b: (b, 0, 0)),
    )

    enc, dec, logits = pl.pallas_call(
        _deep_model_kernel,
        grid=(B,),
        in_specs=in_specs,
        out_specs=out_specs,
        out_shape=out_shape,
        compiler_params=pltpu.CompilerParams(dimension_semantics=("parallel",)),
    )(x8, *weights)

    encoded_flat = enc.transpose(0, 2, 1).reshape(B, 128 * L8)   # torch .view order
    decoded = dec.reshape(B, 1, L)
    return encoded_flat, decoded, logits[:, 0, :num_classes]


# ----------------------------------------------------------------------------
# Parameters
# ----------------------------------------------------------------------------
def init_params(key, input_len, num_classes):
    """Raw params in PyTorch layout: Conv1d (Cout,Cin,K); ConvTranspose1d (Cin,Cout,K);
    Linear (out,in)."""
    L8 = input_len // 8
    flat_dim = 128 * L8
    ks = jax.random.split(key, 18)

    def w(k, shape, fan_in):
        return jax.random.normal(k, shape, jnp.float32) / jnp.sqrt(fan_in)

    def b(k, n):
        return 0.1 * jax.random.normal(k, (n,), jnp.float32)

    return {
        "e1_w": w(ks[0], (32, 1, 3), 3),        "e1_b": b(ks[1], 32),
        "e2_w": w(ks[2], (64, 32, 3), 96),      "e2_b": b(ks[3], 64),
        "e3_w": w(ks[4], (128, 64, 3), 192),    "e3_b": b(ks[5], 128),
        "d1_w": w(ks[6], (128, 64, 3), 384),    "d1_b": b(ks[7], 64),
        "d2_w": w(ks[8], (64, 32, 3), 192),     "d2_b": b(ks[9], 32),
        "d3_w": w(ks[10], (32, 1, 3), 96),      "d3_b": b(ks[11], 1),
        "fc1_w": w(ks[12], (128, flat_dim), flat_dim), "fc1_b": b(ks[13], 128),
        "fc2_w": w(ks[14], (64, 128), 128),     "fc2_b": b(ks[15], 64),
        "fc3_w": w(ks[16], (num_classes, 64), 64), "fc3_b": b(ks[17], num_classes),
    }


def prepare_params(raw, input_len, num_classes):
    """Hoist weight reshapes/permutes out of the forward: per-tap matmul-ready
    (bf16) matrices, fc1 rows permuted to the kernel's (l, c) order, fc3 padded
    to a full 128-lane output."""
    L8 = input_len // 8
    bf16, f32 = jnp.bfloat16, jnp.float32
    kp = {}
    # Conv1d taps: W_t[ci, co] = raw[co, ci, t]  ->  (3, Cin, Cout)
    kp["e1_w"] = jnp.transpose(raw["e1_w"], (2, 1, 0)).astype(f32)   # Cin=1: VPU path
    kp["e2_w"] = jnp.transpose(raw["e2_w"], (2, 1, 0)).astype(bf16)
    kp["e3_w"] = jnp.transpose(raw["e3_w"], (2, 1, 0)).astype(bf16)
    # ConvTranspose1d taps: W_t[ci, co] = raw[ci, co, t]  ->  (3, Cin, Cout)
    kp["d1_w"] = jnp.transpose(raw["d1_w"], (2, 0, 1)).astype(bf16)
    kp["d2_w"] = jnp.transpose(raw["d2_w"], (2, 0, 1)).astype(bf16)
    kp["d3_w"] = jnp.transpose(raw["d3_w"], (2, 0, 1)).astype(bf16)
    for name in ("e1", "e2", "e3", "d1", "d2", "d3"):
        kp[name + "_b"] = raw[name + "_b"].reshape(1, -1).astype(f32)
    # fc1: torch flat index is c*L8 + l; kernel flattens the encoder output (l, c)-major.
    w1 = raw["fc1_w"].reshape(128, 128, L8)                          # [n, c, l]
    kp["fc1_w"] = jnp.transpose(w1, (2, 1, 0)).reshape(L8 * 128, 128).astype(bf16)
    kp["fc1_b"] = raw["fc1_b"].reshape(1, -1).astype(f32)
    kp["fc2_w"] = raw["fc2_w"].T.astype(bf16)
    kp["fc2_b"] = raw["fc2_b"].reshape(1, -1).astype(f32)
    # fc3: pad the class dim up to a full 128-lane register for unmasked stores.
    ncp = max(128, -(-num_classes // 128) * 128)
    kp["fc3_w"] = jnp.pad(raw["fc3_w"].T, ((0, 0), (0, ncp - num_classes))).astype(bf16)
    kp["fc3_b"] = jnp.pad(raw["fc3_b"], (0, ncp - num_classes)).reshape(1, -1).astype(f32)
    return kp


# ----------------------------------------------------------------------------
# Pure-numpy reference of the PyTorch forward (f32)
# ----------------------------------------------------------------------------
def reference_forward(raw, x):
    x = np.asarray(x, np.float32)
    raw = {k: np.asarray(v, np.float32) for k, v in raw.items()}

    def conv1d_s2(h, w, b):
        B, cin, L = h.shape
        cout, lout = w.shape[0], L // 2
        hp = np.pad(h, ((0, 0), (0, 0), (1, 1)))
        out = np.zeros((B, cout, lout), np.float32)
        for lo in range(lout):
            out[:, :, lo] = np.einsum("bck,ock->bo", hp[:, :, 2 * lo:2 * lo + 3], w)
        out += b[None, :, None]
        return np.maximum(out, 0.0)

    def conv_t1d_s2(h, w, b):
        B, cin, L = h.shape
        cout, lout = w.shape[1], 2 * L
        out = np.zeros((B, cout, lout), np.float32)
        for i in range(L):
            for t in range(3):
                j = 2 * i - 1 + t
                if 0 <= j < lout:
                    out[:, :, j] += np.einsum("bc,co->bo", h[:, :, i], w[:, :, t])
        out += b[None, :, None]
        return np.maximum(out, 0.0)

    h = conv1d_s2(x, raw["e1_w"], raw["e1_b"])
    h = conv1d_s2(h, raw["e2_w"], raw["e2_b"])
    enc = conv1d_s2(h, raw["e3_w"], raw["e3_b"])
    d = conv_t1d_s2(enc, raw["d1_w"], raw["d1_b"])
    d = conv_t1d_s2(d, raw["d2_w"], raw["d2_b"])
    dec = conv_t1d_s2(d, raw["d3_w"], raw["d3_b"])
    B = x.shape[0]
    enc_flat = enc.reshape(B, -1)
    a = np.maximum(enc_flat @ raw["fc1_w"].T + raw["fc1_b"], 0.0)
    a = np.maximum(a @ raw["fc2_w"].T + raw["fc2_b"], 0.0)
    logits = a @ raw["fc3_w"].T + raw["fc3_b"]
    return enc_flat, dec, logits


if __name__ == "__main__":
    # Small shapes consistent with the module: x is (batch, 1, length),
    # length divisible by 8 so the 3 stride-2 encoder/decoder stages round-trip.
    B, L, NUM_CLASSES = 2, 64, 4

    key = jax.random.PRNGKey(0)
    kx, kw = jax.random.split(key)
    x = jax.random.normal(kx, (B, 1, L), jnp.float32)
    raw = init_params(kw, L, NUM_CLASSES)
    kparams = prepare_params(raw, L, NUM_CLASSES)

    encoded_flat, decoded, logits = deep_model_forward(kparams, x, num_classes=NUM_CLASSES)
    jax.block_until_ready((encoded_flat, decoded, logits))

    assert encoded_flat.shape == (B, 128 * (L // 8))
    assert decoded.shape == (B, 1, L)
    assert logits.shape == (B, NUM_CLASSES)

    # Correctness vs. f32 reference (kernel uses bf16 matmul operands, f32 accumulation).
    ref_enc, ref_dec, ref_logits = reference_forward(raw, x)
    np.testing.assert_allclose(np.asarray(encoded_flat), ref_enc, rtol=5e-2, atol=5e-2)
    np.testing.assert_allclose(np.asarray(decoded), ref_dec, rtol=5e-2, atol=5e-2)
    np.testing.assert_allclose(np.asarray(logits), ref_logits, rtol=5e-2, atol=5e-2)

    print("KERNEL_OK")
</pallas_src>

<mosaic_0001>
module attributes {stable_mosaic.version = 11 : i64} {
  func.func @_deep_model_kernel(%arg0: i32, %arg1: memref<1x8x8xf32, #tpu.memory_space<vmem>>, %arg2: memref<3x1x32xf32, #tpu.memory_space<vmem>>, %arg3: memref<1x32xf32, #tpu.memory_space<vmem>>, %arg4: memref<3x32x64xbf16, #tpu.memory_space<vmem>>, %arg5: memref<1x64xf32, #tpu.memory_space<vmem>>, %arg6: memref<3x64x128xbf16, #tpu.memory_space<vmem>>, %arg7: memref<1x128xf32, #tpu.memory_space<vmem>>, %arg8: memref<3x128x64xbf16, #tpu.memory_space<vmem>>, %arg9: memref<1x64xf32, #tpu.memory_space<vmem>>, %arg10: memref<3x64x32xbf16, #tpu.memory_space<vmem>>, %arg11: memref<1x32xf32, #tpu.memory_space<vmem>>, %arg12: memref<3x32x1xbf16, #tpu.memory_space<vmem>>, %arg13: memref<1x1xf32, #tpu.memory_space<vmem>>, %arg14: memref<1024x128xbf16, #tpu.memory_space<vmem>>, %arg15: memref<1x128xf32, #tpu.memory_space<vmem>>, %arg16: memref<128x64xbf16, #tpu.memory_space<vmem>>, %arg17: memref<1x64xf32, #tpu.memory_space<vmem>>, %arg18: memref<64x128xbf16, #tpu.memory_space<vmem>>, %arg19: memref<1x128xf32, #tpu.memory_space<vmem>>, %arg20: memref<1x8x128xf32, #tpu.memory_space<vmem>>, %arg21: memref<1x8x8xf32, #tpu.memory_space<vmem>>, %arg22: memref<1x1x128xf32, #tpu.memory_space<vmem>>) attributes {dimension_semantics = [#tpu.dimension_semantics<parallel>], iteration_bounds = array<i64: 2>, scalar_prefetch = 0 : i64, scratch_operands = 0 : i64, tpu.core_type = #tpu.core_type<tc>, window_params = [{transform_indices = @transform_0, window_bounds = array<i64: 1, 8, 8>}, {pipeline_mode = #tpu.pipeline_mode<synchronous>, transform_indices = @transform_1, window_bounds = array<i64: 3, 1, 32>}, {pipeline_mode = #tpu.pipeline_mode<synchronous>, transform_indices = @transform_2, window_bounds = array<i64: 1, 32>}, {pipeline_mode = #tpu.pipeline_mode<synchronous>, transform_indices = @transform_3, window_bounds = array<i64: 3, 32, 64>}, {pipeline_mode = #tpu.pipeline_mode<synchronous>, transform_indices = @transform_4, window_bounds = array<i64: 1, 64>}, {pipeline_mode = #tpu.pipeline_mode<synchronous>, transform_indices = @transform_5, window_bounds = array<i64: 3, 64, 128>}, {pipeline_mode = #tpu.pipeline_mode<synchronous>, transform_indices = @transform_6, window_bounds = array<i64: 1, 128>}, {pipeline_mode = #tpu.pipeline_mode<synchronous>, transform_indices = @transform_7, window_bounds = array<i64: 3, 128, 64>}, {pipeline_mode = #tpu.pipeline_mode<synchronous>, transform_indices = @transform_8, window_bounds = array<i64: 1, 64>}, {pipeline_mode = #tpu.pipeline_mode<synchronous>, transform_indices = @transform_9, window_bounds = array<i64: 3, 64, 32>}, {pipeline_mode = #tpu.pipeline_mode<synchronous>, transform_indices = @transform_10, window_bounds = array<i64: 1, 32>}, {pipeline_mode = #tpu.pipeline_mode<synchronous>, transform_indices = @transform_11, window_bounds = array<i64: 3, 32, 1>}, {pipeline_mode = #tpu.pipeline_mode<synchronous>, transform_indices = @transform_12, window_bounds = array<i64: 1, 1>}, {pipeline_mode = #tpu.pipeline_mode<synchronous>, transform_indices = @transform_13, window_bounds = array<i64: 1024, 128>}, {pipeline_mode = #tpu.pipeline_mode<synchronous>, transform_indices = @transform_14, window_bounds = array<i64: 1, 128>}, {pipeline_mode = #tpu.pipeline_mode<synchronous>, transform_indices = @transform_15, window_bounds = array<i64: 128, 64>}, {pipeline_mode = #tpu.pipeline_mode<synchronous>, transform_indices = @transform_16, window_bounds = array<i64: 1, 64>}, {pipeline_mode = #tpu.pipeline_mode<synchronous>, transform_indices = @transform_17, window_bounds = array<i64: 64, 128>}, {pipeline_mode = #tpu.pipeline_mode<synchronous>, transform_indices = @transform_18, window_bounds = array<i64: 1, 128>}, {transform_indices = @transform_19, window_bounds = array<i64: 1, 8, 128>}, {transform_indices = @transform_20, window_bounds = array<i64: 1, 8, 8>}, {transform_indices = @transform_21, window_bounds = array<i64: 1, 1, 128>}]} {
    %c0 = arith.constant 0 : index
    %c0_0 = arith.constant 0 : index
    %c0_1 = arith.constant 0 : index
    %0 = vector.load %arg1[%c0, %c0_0, %c0_1] : memref<1x8x8xf32, #tpu.memory_space<vmem>>, vector<1x8x8xf32>
    %1 = vector.shape_cast %0 : vector<1x8x8xf32> to vector<8x8xf32>
    %c0_2 = arith.constant 0 : index
    %c0_3 = arith.constant 0 : index
    %c0_4 = arith.constant 0 : index
    %2 = vector.load %arg2[%c0_2, %c0_3, %c0_4] : memref<3x1x32xf32, #tpu.memory_space<vmem>>, vector<1x1x32xf32>
    %3 = vector.shape_cast %2 : vector<1x1x32xf32> to vector<1x32xf32>
    %c1 = arith.constant 1 : index
    %c0_5 = arith.constant 0 : index
    %c0_6 = arith.constant 0 : index
    %4 = vector.load %arg2[%c1, %c0_5, %c0_6] : memref<3x1x32xf32, #tpu.memory_space<vmem>>, vector<1x1x32xf32>
    %5 = vector.shape_cast %4 : vector<1x1x32xf32> to vector<1x32xf32>
    %c2 = arith.constant 2 : index
    %c0_7 = arith.constant 0 : index
    %c0_8 = arith.constant 0 : index
    %6 = vector.load %arg2[%c2, %c0_7, %c0_8] : memref<3x1x32xf32, #tpu.memory_space<vmem>>, vector<1x1x32xf32>
    %7 = vector.shape_cast %6 : vector<1x1x32xf32> to vector<1x32xf32>
    %c0_9 = arith.constant 0 : index
    %c0_10 = arith.constant 0 : index
    %8 = vector.load %arg3[%c0_9, %c0_10] : memref<1x32xf32, #tpu.memory_space<vmem>>, vector<1x32xf32>
    %9 = vector.extract_strided_slice %1 {offsets = [0, 7], sizes = [8, 1], strides = [1, 1]} : vector<8x8xf32> to vector<8x1xf32>
    %cst = arith.constant 0.000000e+00 : f32
    %10 = vector.broadcast %cst : f32 to vector<1x1xf32>
    %11 = vector.extract_strided_slice %9 {offsets = [0, 0], sizes = [7, 1], strides = [1, 1]} : vector<8x1xf32> to vector<7x1xf32>
    %12 = tpu.concatenate %10, %11 in 0 : vector<1x1xf32>, vector<7x1xf32> -> vector<8x1xf32>
    %13 = vector.extract_strided_slice %1 {offsets = [0, 0], sizes = [8, 1], strides = [1, 1]} : vector<8x8xf32> to vector<8x1xf32>
    %14 = vector.extract_strided_slice %1 {offsets = [0, 1], sizes = [8, 1], strides = [1, 1]} : vector<8x8xf32> to vector<8x1xf32>
    %15 = vector.broadcast %12 : vector<8x1xf32> to vector<8x32xf32>
    %16 = vector.broadcast %3 : vector<1x32xf32> to vector<8x32xf32>
    %17 = arith.mulf %15, %16 : vector<8x32xf32>
    %18 = vector.broadcast %13 : vector<8x1xf32> to vector<8x32xf32>
    %19 = vector.broadcast %5 : vector<1x32xf32> to vector<8x32xf32>
    %20 = arith.mulf %18, %19 : vector<8x32xf32>
    %21 = arith.addf %17, %20 : vector<8x32xf32>
    %22 = vector.broadcast %14 : vector<8x1xf32> to vector<8x32xf32>
    %23 = vector.broadcast %7 : vector<1x32xf32> to vector<8x32xf32>
    %24 = arith.mulf %22, %23 : vector<8x32xf32>
    %25 = arith.addf %21, %24 : vector<8x32xf32>
    %26 = vector.broadcast %8 : vector<1x32xf32> to vector<8x32xf32>
    %27 = arith.addf %25, %26 : vector<8x32xf32>
    %cst_11 = arith.constant 0.000000e+00 : f32
    %28 = vector.broadcast %cst_11 : f32 to vector<8x32xf32>
    %29 = arith.maximumf %27, %28 : vector<8x32xf32>
    %30 = vector.extract_strided_slice %1 {offsets = [0, 1], sizes = [8, 1], strides = [1, 1]} : vector<8x8xf32> to vector<8x1xf32>
    %31 = vector.extract_strided_slice %1 {offsets = [0, 2], sizes = [8, 1], strides = [1, 1]} : vector<8x8xf32> to vector<8x1xf32>
    %32 = vector.extract_strided_slice %1 {offsets = [0, 3], sizes = [8, 1], strides = [1, 1]} : vector<8x8xf32> to vector<8x1xf32>
    %33 = vector.broadcast %30 : vector<8x1xf32> to vector<8x32xf32>
    %34 = vector.broadcast %3 : vector<1x32xf32> to vector<8x32xf32>
    %35 = arith.mulf %33, %34 : vector<8x32xf32>
    %36 = vector.broadcast %31 : vector<8x1xf32> to vector<8x32xf32>
    %37 = vector.broadcast %5 : vector<1x32xf32> to vector<8x32xf32>
    %38 = arith.mulf %36, %37 : vector<8x32xf32>
    %39 = arith.addf %35, %38 : vector<8x32xf32>
    %40 = vector.broadcast %32 : vector<8x1xf32> to vector<8x32xf32>
    %41 = vector.broadcast %7 : vector<1x32xf32> to vector<8x32xf32>
    %42 = arith.mulf %40, %41 : vector<8x32xf32>
    %43 = arith.addf %39, %42 : vector<8x32xf32>
    %44 = vector.broadcast %8 : vector<1x32xf32> to vector<8x32xf32>
    %45 = arith.addf %43, %44 : vector<8x32xf32>
    %cst_12 = arith.constant 0.000000e+00 : f32
    %46 = vector.broadcast %cst_12 : f32 to vector<8x32xf32>
    %47 = arith.maximumf %45, %46 : vector<8x32xf32>
    %48 = vector.extract_strided_slice %1 {offsets = [0, 3], sizes = [8, 1], strides = [1, 1]} : vector<8x8xf32> to vector<8x1xf32>
    %49 = vector.extract_strided_slice %1 {offsets = [0, 4], sizes = [8, 1], strides = [1, 1]} : vector<8x8xf32> to vector<8x1xf32>
    %50 = vector.extract_strided_slice %1 {offsets = [0, 5], sizes = [8, 1], strides = [1, 1]} : vector<8x8xf32> to vector<8x1xf32>
    %51 = vector.broadcast %48 : vector<8x1xf32> to vector<8x32xf32>
    %52 = vector.broadcast %3 : vector<1x32xf32> to vector<8x32xf32>
    %53 = arith.mulf %51, %52 : vector<8x32xf32>
    %54 = vector.broadcast %49 : vector<8x1xf32> to vector<8x32xf32>
    %55 = vector.broadcast %5 : vector<1x32xf32> to vector<8x32xf32>
    %56 = arith.mulf %54, %55 : vector<8x32xf32>
    %57 = arith.addf %53, %56 : vector<8x32xf32>
    %58 = vector.broadcast %50 : vector<8x1xf32> to vector<8x32xf32>
    %59 = vector.broadcast %7 : vector<1x32xf32> to vector<8x32xf32>
    %60 = arith.mulf %58, %59 : vector<8x32xf32>
    %61 = arith.addf %57, %60 : vector<8x32xf32>
    %62 = vector.broadcast %8 : vector<1x32xf32> to vector<8x32xf32>
    %63 = arith.addf %61, %62 : vector<8x32xf32>
    %cst_13 = arith.constant 0.000000e+00 : f32
    %64 = vector.broadcast %cst_13 : f32 to vector<8x32xf32>
    %65 = arith.maximumf %63, %64 : vector<8x32xf32>
    %66 = vector.extract_strided_slice %1 {offsets = [0, 5], sizes = [8, 1], strides = [1, 1]} : vector<8x8xf32> to vector<8x1xf32>
    %67 = vector.extract_strided_slice %1 {offsets = [0, 6], sizes = [8, 1], strides = [1, 1]} : vector<8x8xf32> to vector<8x1xf32>
    %68 = vector.extract_strided_slice %1 {offsets = [0, 7], sizes = [8, 1], strides = [1, 1]} : vector<8x8xf32> to vector<8x1xf32>
    %69 = vector.broadcast %66 : vector<8x1xf32> to vector<8x32xf32>
    %70 = vector.broadcast %3 : vector<1x32xf32> to vector<8x32xf32>
    %71 = arith.mulf %69, %70 : vector<8x32xf32>
    %72 = vector.broadcast %67 : vector<8x1xf32> to vector<8x32xf32>
    %73 = vector.broadcast %5 : vector<1x32xf32> to vector<8x32xf32>
    %74 = arith.mulf %72, %73 : vector<8x32xf32>
    %75 = arith.addf %71, %74 : vector<8x32xf32>
    %76 = vector.broadcast %68 : vector<8x1xf32> to vector<8x32xf32>
    %77 = vector.broadcast %7 : vector<1x32xf32> to vector<8x32xf32>
    %78 = arith.mulf %76, %77 : vector<8x32xf32>
    %79 = arith.addf %75, %78 : vector<8x32xf32>
    %80 = vector.broadcast %8 : vector<1x32xf32> to vector<8x32xf32>
    %81 = arith.addf %79, %80 : vector<8x32xf32>
    %cst_14 = arith.constant 0.000000e+00 : f32
    %82 = vector.broadcast %cst_14 : f32 to vector<8x32xf32>
    %83 = arith.maximumf %81, %82 : vector<8x32xf32>
    %c0_15 = arith.constant 0 : index
    %c0_16 = arith.constant 0 : index
    %c0_17 = arith.constant 0 : index
    %84 = vector.load %arg4[%c0_15, %c0_16, %c0_17] : memref<3x32x64xbf16, #tpu.memory_space<vmem>>, vector<1x32x64xbf16>
    %85 = vector.shape_cast %84 : vector<1x32x64xbf16> to vector<32x64xbf16>
    %c1_18 = arith.constant 1 : index
    %c0_19 = arith.constant 0 : index
    %c0_20 = arith.constant 0 : index
    %86 = vector.load %arg4[%c1_18, %c0_19, %c0_20] : memref<3x32x64xbf16, #tpu.memory_space<vmem>>, vector<1x32x64xbf16>
    %87 = vector.shape_cast %86 : vector<1x32x64xbf16> to vector<32x64xbf16>
    %c2_21 = arith.constant 2 : index
    %c0_22 = arith.constant 0 : index
    %c0_23 = arith.constant 0 : index
    %88 = vector.load %arg4[%c2_21, %c0_22, %c0_23] : memref<3x32x64xbf16, #tpu.memory_space<vmem>>, vector<1x32x64xbf16>
    %89 = vector.shape_cast %88 : vector<1x32x64xbf16> to vector<32x64xbf16>
    %c0_24 = arith.constant 0 : index
    %c0_25 = arith.constant 0 : index
    %90 = vector.load %arg5[%c0_24, %c0_25] : memref<1x64xf32, #tpu.memory_space<vmem>>, vector<1x64xf32>
    %cst_26 = arith.constant 0.000000e+00 : f32
    %91 = vector.broadcast %cst_26 : f32 to vector<1x32xf32>
    %92 = vector.extract_strided_slice %83 {offsets = [0, 0], sizes = [7, 32], strides = [1, 1]} : vector<8x32xf32> to vector<7x32xf32>
    %93 = tpu.concatenate %91, %92 in 0 : vector<1x32xf32>, vector<7x32xf32> -> vector<8x32xf32>
    %94 = arith.truncf %93 : vector<8x32xf32> to vector<8x32xbf16>
    %cst_27 = arith.constant dense<0.000000e+00> : vector<8x64xf32>
    %95 = tpu.matmul %94, %85, %cst_27 {dimension_numbers = #tpu.dot_dimension_numbers<[1], [0], [0], [1], [0, 0, 1, 1], [], []>} : vector<8x32xbf16>, vector<32x64xbf16>, vector<8x64xf32> -> vector<8x64xf32>
    %96 = arith.truncf %29 : vector<8x32xf32> to vector<8x32xbf16>
    %cst_28 = arith.constant dense<0.000000e+00> : vector<8x64xf32>
    %97 = tpu.matmul %96, %87, %cst_28 {dimension_numbers = #tpu.dot_dimension_numbers<[1], [0], [0], [1], [0, 0, 1, 1], [], []>} : vector<8x32xbf16>, vector<32x64xbf16>, vector<8x64xf32> -> vector<8x64xf32>
    %98 = arith.addf %95, %97 : vector<8x64xf32>
    %99 = arith.truncf %47 : vector<8x32xf32> to vector<8x32xbf16>
    %cst_29 = arith.constant dense<0.000000e+00> : vector<8x64xf32>
    %100 = tpu.matmul %99, %89, %cst_29 {dimension_numbers = #tpu.dot_dimension_numbers<[1], [0], [0], [1], [0, 0, 1, 1], [], []>} : vector<8x32xbf16>, vector<32x64xbf16>, vector<8x64xf32> -> vector<8x64xf32>
    %101 = arith.addf %98, %100 : vector<8x64xf32>
    %102 = vector.broadcast %90 : vector<1x64xf32> to vector<8x64xf32>
    %103 = arith.addf %101, %102 : vector<8x64xf32>
    %cst_30 = arith.constant 0.000000e+00 : f32
    %104 = vector.broadcast %cst_30 : f32 to vector<8x64xf32>
    %105 = arith.maximumf %103, %104 : vector<8x64xf32>
    %106 = arith.truncf %47 : vector<8x32xf32> to vector<8x32xbf16>
    %cst_31 = arith.constant dense<0.000000e+00> : vector<8x64xf32>
    %107 = tpu.matmul %106, %85, %cst_31 {dimension_numbers = #tpu.dot_dimension_numbers<[1], [0], [0], [1], [0, 0, 1, 1], [], []>} : vector<8x32xbf16>, vector<32x64xbf16>, vector<8x64xf32> -> vector<8x64xf32>
    %108 = arith.truncf %65 : vector<8x32xf32> to vector<8x32xbf16>
    %cst_32 = arith.constant dense<0.000000e+00> : vector<8x64xf32>
    %109 = tpu.matmul %108, %87, %cst_32 {dimension_numbers = #tpu.dot_dimension_numbers<[1], [0], [0], [1], [0, 0, 1, 1], [], []>} : vector<8x32xbf16>, vector<32x64xbf16>, vector<8x64xf32> -> vector<8x64xf32>
    %110 = arith.addf %107, %109 : vector<8x64xf32>
    %111 = arith.truncf %83 : vector<8x32xf32> to vector<8x32xbf16>
    %cst_33 = arith.constant dense<0.000000e+00> : vector<8x64xf32>
    %112 = tpu.matmul %111, %89, %cst_33 {dimension_numbers = #tpu.dot_dimension_numbers<[1], [0], [0], [1], [0, 0, 1, 1], [], []>} : vector<8x32xbf16>, vector<32x64xbf16>, vector<8x64xf32> -> vector<8x64xf32>
    %113 = arith.addf %110, %112 : vector<8x64xf32>
    %114 = vector.broadcast %90 : vector<1x64xf32> to vector<8x64xf32>
    %115 = arith.addf %113, %114 : vector<8x64xf32>
    %cst_34 = arith.constant 0.000000e+00 : f32
    %116 = vector.broadcast %cst_34 : f32 to vector<8x64xf32>
    %117 = arith.maximumf %115, %116 : vector<8x64xf32>
    %c0_35 = arith.constant 0 : index
    %c0_36 = arith.constant 0 : index
    %c0_37 = arith.constant 0 : index
    %118 = vector.load %arg6[%c0_35, %c0_36, %c0_37] : memref<3x64x128xbf16, #tpu.memory_space<vmem>>, vector<1x64x128xbf16>
    %119 = vector.shape_cast %118 : vector<1x64x128xbf16> to vector<64x128xbf16>
    %c1_38 = arith.constant 1 : index
    %c0_39 = arith.constant 0 : index
    %c0_40 = arith.constant 0 : index
    %120 = vector.load %arg6[%c1_38, %c0_39, %c0_40] : memref<3x64x128xbf16, #tpu.memory_space<vmem>>, vector<1x64x128xbf16>
    %121 = vector.shape_cast %120 : vector<1x64x128xbf16> to vector<64x128xbf16>
    %c2_41 = arith.constant 2 : index
    %c0_42 = arith.constant 0 : index
    %c0_43 = arith.constant 0 : index
    %122 = vector.load %arg6[%c2_41, %c0_42, %c0_43] : memref<3x64x128xbf16, #tpu.memory_space<vmem>>, vector<1x64x128xbf16>
    %123 = vector.shape_cast %122 : vector<1x64x128xbf16> to vector<64x128xbf16>
    %c0_44 = arith.constant 0 : index
    %c0_45 = arith.constant 0 : index
    %124 = vector.load %arg7[%c0_44, %c0_45] : memref<1x128xf32, #tpu.memory_space<vmem>>, vector<1x128xf32>
    %cst_46 = arith.constant 0.000000e+00 : f32
    %125 = vector.broadcast %cst_46 : f32 to vector<1x64xf32>
    %126 = vector.extract_strided_slice %117 {offsets = [0, 0], sizes = [7, 64], strides = [1, 1]} : vector<8x64xf32> to vector<7x64xf32>
    %127 = tpu.concatenate %125, %126 in 0 : vector<1x64xf32>, vector<7x64xf32> -> vector<8x64xf32>
    %128 = arith.truncf %127 : vector<8x64xf32> to vector<8x64xbf16>
    %cst_47 = arith.constant dense<0.000000e+00> : vector<8x128xf32>
    %129 = tpu.matmul %128, %119, %cst_47 {dimension_numbers = #tpu.dot_dimension_numbers<[1], [0], [0], [1], [0, 0, 1, 1], [], []>} : vector<8x64xbf16>, vector<64x128xbf16>, vector<8x128xf32> -> vector<8x128xf32>
    %130 = arith.truncf %105 : vector<8x64xf32> to vector<8x64xbf16>
    %cst_48 = arith.constant dense<0.000000e+00> : vector<8x128xf32>
    %131 = tpu.matmul %130, %121, %cst_48 {dimension_numbers = #tpu.dot_dimension_numbers<[1], [0], [0], [1], [0, 0, 1, 1], [], []>} : vector<8x64xbf16>, vector<64x128xbf16>, vector<8x128xf32> -> vector<8x128xf32>
    %132 = arith.addf %129, %131 : vector<8x128xf32>
    %133 = arith.truncf %117 : vector<8x64xf32> to vector<8x64xbf16>
    %cst_49 = arith.constant dense<0.000000e+00> : vector<8x128xf32>
    %134 = tpu.matmul %133, %123, %cst_49 {dimension_numbers = #tpu.dot_dimension_numbers<[1], [0], [0], [1], [0, 0, 1, 1], [], []>} : vector<8x64xbf16>, vector<64x128xbf16>, vector<8x128xf32> -> vector<8x128xf32>
    %135 = arith.addf %132, %134 : vector<8x128xf32>
    %136 = vector.broadcast %124 : vector<1x128xf32> to vector<8x128xf32>
    %137 = arith.addf %135, %136 : vector<8x128xf32>
    %cst_50 = arith.constant 0.000000e+00 : f32
    %138 = vector.broadcast %cst_50 : f32 to vector<8x128xf32>
    %139 = arith.maximumf %137, %138 : vector<8x128xf32>
    %c0_51 = arith.constant 0 : index
    %c0_52 = arith.constant 0 : index
    %c0_53 = arith.constant 0 : index
    %140 = vector.load %arg20[%c0_51, %c0_52, %c0_53] : memref<1x8x128xf32, #tpu.memory_space<vmem>>, vector<1x8x128xf32>
    %141 = vector.shape_cast %140 : vector<1x8x128xf32> to vector<8x128xf32>
    %142 = vector.shape_cast %139 : vector<8x128xf32> to vector<1x8x128xf32>
    tpu.vector_store %arg20[%c0_51, %c0_52, %c0_53], %142 {strides = array<i32>} : memref<1x8x128xf32, #tpu.memory_space<vmem>>, vector<1x8x128xf32>,
    %c0_54 = arith.constant 0 : index
    %c0_55 = arith.constant 0 : index
    %c0_56 = arith.constant 0 : index
    %143 = vector.load %arg8[%c0_54, %c0_55, %c0_56] : memref<3x128x64xbf16, #tpu.memory_space<vmem>>, vector<1x128x64xbf16>
    %144 = vector.shape_cast %143 : vector<1x128x64xbf16> to vector<128x64xbf16>
    %c1_57 = arith.constant 1 : index
    %c0_58 = arith.constant 0 : index
    %c0_59 = arith.constant 0 : index
    %145 = vector.load %arg8[%c1_57, %c0_58, %c0_59] : memref<3x128x64xbf16, #tpu.memory_space<vmem>>, vector<1x128x64xbf16>
    %146 = vector.shape_cast %145 : vector<1x128x64xbf16> to vector<128x64xbf16>
    %c2_60 = arith.constant 2 : index
    %c0_61 = arith.constant 0 : index
    %c0_62 = arith.constant 0 : index
    %147 = vector.load %arg8[%c2_60, %c0_61, %c0_62] : memref<3x128x64xbf16, #tpu.memory_space<vmem>>, vector<1x128x64xbf16>
    %148 = vector.shape_cast %147 : vector<1x128x64xbf16> to vector<128x64xbf16>
    %c0_63 = arith.constant 0 : index
    %c0_64 = arith.constant 0 : index
    %149 = vector.load %arg9[%c0_63, %c0_64] : memref<1x64xf32, #tpu.memory_space<vmem>>, vector<1x64xf32>
    %150 = arith.truncf %139 : vector<8x128xf32> to vector<8x128xbf16>
    %cst_65 = arith.constant dense<0.000000e+00> : vector<8x64xf32>
    %151 = tpu.matmul %150, %146, %cst_65 {dimension_numbers = #tpu.dot_dimension_numbers<[1], [0], [0], [1], [0, 0, 1, 1], [], []>} : vector<8x128xbf16>, vector<128x64xbf16>, vector<8x64xf32> -> vector<8x64xf32>
    %152 = vector.broadcast %149 : vector<1x64xf32> to vector<8x64xf32>
    %153 = arith.addf %151, %152 : vector<8x64xf32>
    %cst_66 = arith.constant 0.000000e+00 : f32
    %154 = vector.broadcast %cst_66 : f32 to vector<8x64xf32>
    %155 = arith.maximumf %153, %154 : vector<8x64xf32>
    %156 = arith.truncf %139 : vector<8x128xf32> to vector<8x128xbf16>
    %cst_67 = arith.constant dense<0.000000e+00> : vector<8x64xf32>
    %157 = tpu.matmul %156, %148, %cst_67 {dimension_numbers = #tpu.dot_dimension_numbers<[1], [0], [0], [1], [0, 0, 1, 1], [], []>} : vector<8x128xbf16>, vector<128x64xbf16>, vector<8x64xf32> -> vector<8x64xf32>
    %158 = vector.extract_strided_slice %139 {offsets = [1, 0], sizes = [7, 128], strides = [1, 1]} : vector<8x128xf32> to vector<7x128xf32>
    %cst_68 = arith.constant 0.000000e+00 : f32
    %159 = vector.broadcast %cst_68 : f32 to vector<1x128xf32>
    %160 = tpu.concatenate %158, %159 in 0 : vector<7x128xf32>, vector<1x128xf32> -> vector<8x128xf32>
    %161 = arith.truncf %160 : vector<8x128xf32> to vector<8x128xbf16>
    %cst_69 = arith.constant dense<0.000000e+00> : vector<8x64xf32>
    %162 = tpu.matmul %161, %144, %cst_69 {dimension_numbers = #tpu.dot_dimension_numbers<[1], [0], [0], [1], [0, 0, 1, 1], [], []>} : vector<8x128xbf16>, vector<128x64xbf16>, vector<8x64xf32> -> vector<8x64xf32>
    %163 = arith.addf %157, %162 : vector<8x64xf32>
    %164 = vector.broadcast %149 : vector<1x64xf32> to vector<8x64xf32>
    %165 = arith.addf %163, %164 : vector<8x64xf32>
    %cst_70 = arith.constant 0.000000e+00 : f32
    %166 = vector.broadcast %cst_70 : f32 to vector<8x64xf32>
    %167 = arith.maximumf %165, %166 : vector<8x64xf32>
    %c0_71 = arith.constant 0 : index
    %c0_72 = arith.constant 0 : index
    %c0_73 = arith.constant 0 : index
    %168 = vector.load %arg10[%c0_71, %c0_72, %c0_73] : memref<3x64x32xbf16, #tpu.memory_space<vmem>>, vector<1x64x32xbf16>
    %169 = vector.shape_cast %168 : vector<1x64x32xbf16> to vector<64x32xbf16>
    %c1_74 = arith.constant 1 : index
    %c0_75 = arith.constant 0 : index
    %c0_76 = arith.constant 0 : index
    %170 = vector.load %arg10[%c1_74, %c0_75, %c0_76] : memref<3x64x32xbf16, #tpu.memory_space<vmem>>, vector<1x64x32xbf16>
    %171 = vector.shape_cast %170 : vector<1x64x32xbf16> to vector<64x32xbf16>
    %c2_77 = arith.constant 2 : index
    %c0_78 = arith.constant 0 : index
    %c0_79 = arith.constant 0 : index
    %172 = vector.load %arg10[%c2_77, %c0_78, %c0_79] : memref<3x64x32xbf16, #tpu.memory_space<vmem>>, vector<1x64x32xbf16>
    %173 = vector.shape_cast %172 : vector<1x64x32xbf16> to vector<64x32xbf16>
    %c0_80 = arith.constant 0 : index
    %c0_81 = arith.constant 0 : index
    %174 = vector.load %arg11[%c0_80, %c0_81] : memref<1x32xf32, #tpu.memory_space<vmem>>, vector<1x32xf32>
    %175 = arith.truncf %155 : vector<8x64xf32> to vector<8x64xbf16>
    %cst_82 = arith.constant dense<0.000000e+00> : vector<8x32xf32>
    %176 = tpu.matmul %175, %171, %cst_82 {dimension_numbers = #tpu.dot_dimension_numbers<[1], [0], [0], [1], [0, 0, 1, 1], [], []>} : vector<8x64xbf16>, vector<64x32xbf16>, vector<8x32xf32> -> vector<8x32xf32>
    %177 = vector.broadcast %174 : vector<1x32xf32> to vector<8x32xf32>
    %178 = arith.addf %176, %177 : vector<8x32xf32>
    %cst_83 = arith.constant 0.000000e+00 : f32
    %179 = vector.broadcast %cst_83 : f32 to vector<8x32xf32>
    %180 = arith.maximumf %178, %179 : vector<8x32xf32>
    %181 = arith.truncf %155 : vector<8x64xf32> to vector<8x64xbf16>
    %cst_84 = arith.constant dense<0.000000e+00> : vector<8x32xf32>
    %182 = tpu.matmul %181, %173, %cst_84 {dimension_numbers = #tpu.dot_dimension_numbers<[1], [0], [0], [1], [0, 0, 1, 1], [], []>} : vector<8x64xbf16>, vector<64x32xbf16>, vector<8x32xf32> -> vector<8x32xf32>
    %183 = arith.truncf %167 : vector<8x64xf32> to vector<8x64xbf16>
    %cst_85 = arith.constant dense<0.000000e+00> : vector<8x32xf32>
    %184 = tpu.matmul %183, %169, %cst_85 {dimension_numbers = #tpu.dot_dimension_numbers<[1], [0], [0], [1], [0, 0, 1, 1], [], []>} : vector<8x64xbf16>, vector<64x32xbf16>, vector<8x32xf32> -> vector<8x32xf32>
    %185 = arith.addf %182, %184 : vector<8x32xf32>
    %186 = vector.broadcast %174 : vector<1x32xf32> to vector<8x32xf32>
    %187 = arith.addf %185, %186 : vector<8x32xf32>
    %cst_86 = arith.constant 0.000000e+00 : f32
    %188 = vector.broadcast %cst_86 : f32 to vector<8x32xf32>
    %189 = arith.maximumf %187, %188 : vector<8x32xf32>
    %190 = arith.truncf %167 : vector<8x64xf32> to vector<8x64xbf16>
    %cst_87 = arith.constant dense<0.000000e+00> : vector<8x32xf32>
    %191 = tpu.matmul %190, %171, %cst_87 {dimension_numbers = #tpu.dot_dimension_numbers<[1], [0], [0], [1], [0, 0, 1, 1], [], []>} : vector<8x64xbf16>, vector<64x32xbf16>, vector<8x32xf32> -> vector<8x32xf32>
    %192 = vector.broadcast %174 : vector<1x32xf32> to vector<8x32xf32>
    %193 = arith.addf %191, %192 : vector<8x32xf32>
    %cst_88 = arith.constant 0.000000e+00 : f32
    %194 = vector.broadcast %cst_88 : f32 to vector<8x32xf32>
    %195 = arith.maximumf %193, %194 : vector<8x32xf32>
    %196 = arith.truncf %167 : vector<8x64xf32> to vector<8x64xbf16>
    %cst_89 = arith.constant dense<0.000000e+00> : vector<8x32xf32>
    %197 = tpu.matmul %196, %173, %cst_89 {dimension_numbers = #tpu.dot_dimension_numbers<[1], [0], [0], [1], [0, 0, 1, 1], [], []>} : vector<8x64xbf16>, vector<64x32xbf16>, vector<8x32xf32> -> vector<8x32xf32>
    %198 = vector.extract_strided_slice %155 {offsets = [1, 0], sizes = [7, 64], strides = [1, 1]} : vector<8x64xf32> to vector<7x64xf32>
    %cst_90 = arith.constant 0.000000e+00 : f32
    %199 = vector.broadcast %cst_90 : f32 to vector<1x64xf32>
    %200 = tpu.concatenate %198, %199 in 0 : vector<7x64xf32>, vector<1x64xf32> -> vector<8x64xf32>
    %201 = arith.truncf %200 : vector<8x64xf32> to vector<8x64xbf16>
    %cst_91 = arith.constant dense<0.000000e+00> : vector<8x32xf32>
    %202 = tpu.matmul %201, %169, %cst_91 {dimension_numbers = #tpu.dot_dimension_numbers<[1], [0], [0], [1], [0, 0, 1, 1], [], []>} : vector<8x64xbf16>, vector<64x32xbf16>, vector<8x32xf32> -> vector<8x32xf32>
    %203 = arith.addf %197, %202 : vector<8x32xf32>
    %204 = vector.broadcast %174 : vector<1x32xf32> to vector<8x32xf32>
    %205 = arith.addf %203, %204 : vector<8x32xf32>
    %cst_92 = arith.constant 0.000000e+00 : f32
    %206 = vector.broadcast %cst_92 : f32 to vector<8x32xf32>
    %207 = arith.maximumf %205, %206 : vector<8x32xf32>
    %c0_93 = arith.constant 0 : index
    %c0_94 = arith.constant 0 : index
    %c0_95 = arith.constant 0 : index
    %208 = vector.load %arg12[%c0_93, %c0_94, %c0_95] : memref<3x32x1xbf16, #tpu.memory_space<vmem>>, vector<1x32x1xbf16>
    %209 = vector.shape_cast %208 : vector<1x32x1xbf16> to vector<32x1xbf16>
    %c1_96 = arith.constant 1 : index
    %c0_97 = arith.constant 0 : index
    %c0_98 = arith.constant 0 : index
    %210 = vector.load %arg12[%c1_96, %c0_97, %c0_98] : memref<3x32x1xbf16, #tpu.memory_space<vmem>>, vector<1x32x1xbf16>
    %211 = vector.shape_cast %210 : vector<1x32x1xbf16> to vector<32x1xbf16>
    %c2_99 = arith.constant 2 : index
    %c0_100 = arith.constant 0 : index
    %c0_101 = arith.constant 0 : index
    %212 = vector.load %arg12[%c2_99, %c0_100, %c0_101] : memref<3x32x1xbf16, #tpu.memory_space<vmem>>, vector<1x32x1xbf16>
    %213 = vector.shape_cast %212 : vector<1x32x1xbf16> to vector<32x1xbf16>
    %c0_102 = arith.constant 0 : index
    %c0_103 = arith.constant 0 : index
    %214 = vector.load %arg13[%c0_102, %c0_103] : memref<1x1xf32, #tpu.memory_space<vmem>>, vector<1x1xf32>
    %215 = arith.truncf %180 : vector<8x32xf32> to vector<8x32xbf16>
    %cst_104 = arith.constant dense<0.000000e+00> : vector<8x1xf32>
    %216 = tpu.matmul %215, %211, %cst_104 {dimension_numbers = #tpu.dot_dimension_numbers<[1], [0], [0], [1], [0, 0, 1, 1], [], []>} : vector<8x32xbf16>, vector<32x1xbf16>, vector<8x1xf32> -> vector<8x1xf32>
    %217 = vector.broadcast %214 : vector<1x1xf32> to vector<8x1xf32>
    %218 = arith.addf %216, %217 : vector<8x1xf32>
    %cst_105 = arith.constant 0.000000e+00 : f32
    %219 = vector.broadcast %cst_105 : f32 to vector<8x1xf32>
    %220 = arith.maximumf %218, %219 : vector<8x1xf32>
    %221 = arith.truncf %180 : vector<8x32xf32> to vector<8x32xbf16>
    %cst_106 = arith.constant dense<0.000000e+00> : vector<8x1xf32>
    %222 = tpu.matmul %221, %213, %cst_106 {dimension_numbers = #tpu.dot_dimension_numbers<[1], [0], [0], [1], [0, 0, 1, 1], [], []>} : vector<8x32xbf16>, vector<32x1xbf16>, vector<8x1xf32> -> vector<8x1xf32>
    %223 = arith.truncf %189 : vector<8x32xf32> to vector<8x32xbf16>
    %cst_107 = arith.constant dense<0.000000e+00> : vector<8x1xf32>
    %224 = tpu.matmul %223, %209, %cst_107 {dimension_numbers = #tpu.dot_dimension_numbers<[1], [0], [0], [1], [0, 0, 1, 1], [], []>} : vector<8x32xbf16>, vector<32x1xbf16>, vector<8x1xf32> -> vector<8x1xf32>
    %225 = arith.addf %222, %224 : vector<8x1xf32>
    %226 = vector.broadcast %214 : vector<1x1xf32> to vector<8x1xf32>
    %227 = arith.addf %225, %226 : vector<8x1xf32>
    %cst_108 = arith.constant 0.000000e+00 : f32
    %228 = vector.broadcast %cst_108 : f32 to vector<8x1xf32>
    %229 = arith.maximumf %227, %228 : vector<8x1xf32>
    %230 = arith.truncf %189 : vector<8x32xf32> to vector<8x32xbf16>
    %cst_109 = arith.constant dense<0.000000e+00> : vector<8x1xf32>
    %231 = tpu.matmul %230, %211, %cst_109 {dimension_numbers = #tpu.dot_dimension_numbers<[1], [0], [0], [1], [0, 0, 1, 1], [], []>} : vector<8x32xbf16>, vector<32x1xbf16>, vector<8x1xf32> -> vector<8x1xf32>
    %232 = vector.broadcast %214 : vector<1x1xf32> to vector<8x1xf32>
    %233 = arith.addf %231, %232 : vector<8x1xf32>
    %cst_110 = arith.constant 0.000000e+00 : f32
    %234 = vector.broadcast %cst_110 : f32 to vector<8x1xf32>
    %235 = arith.maximumf %233, %234 : vector<8x1xf32>
    %236 = arith.truncf %189 : vector<8x32xf32> to vector<8x32xbf16>
    %cst_111 = arith.constant dense<0.000000e+00> : vector<8x1xf32>
    %237 = tpu.matmul %236, %213, %cst_111 {dimension_numbers = #tpu.dot_dimension_numbers<[1], [0], [0], [1], [0, 0, 1, 1], [], []>} : vector<8x32xbf16>, vector<32x1xbf16>, vector<8x1xf32> -> vector<8x1xf32>
    %238 = arith.truncf %195 : vector<8x32xf32> to vector<8x32xbf16>
    %cst_112 = arith.constant dense<0.000000e+00> : vector<8x1xf32>
    %239 = tpu.matmul %238, %209, %cst_112 {dimension_numbers = #tpu.dot_dimension_numbers<[1], [0], [0], [1], [0, 0, 1, 1], [], []>} : vector<8x32xbf16>, vector<32x1xbf16>, vector<8x1xf32> -> vector<8x1xf32>
    %240 = arith.addf %237, %239 : vector<8x1xf32>
    %241 = vector.broadcast %214 : vector<1x1xf32> to vector<8x1xf32>
    %242 = arith.addf %240, %241 : vector<8x1xf32>
    %cst_113 = arith.constant 0.000000e+00 : f32
    %243 = vector.broadcast %cst_113 : f32 to vector<8x1xf32>
    %244 = arith.maximumf %242, %243 : vector<8x1xf32>
    %245 = arith.truncf %195 : vector<8x32xf32> to vector<8x32xbf16>
    %cst_114 = arith.constant dense<0.000000e+00> : vector<8x1xf32>
    %246 = tpu.matmul %245, %211, %cst_114 {dimension_numbers = #tpu.dot_dimension_numbers<[1], [0], [0], [1], [0, 0, 1, 1], [], []>} : vector<8x32xbf16>, vector<32x1xbf16>, vector<8x1xf32> -> vector<8x1xf32>
    %247 = vector.broadcast %214 : vector<1x1xf32> to vector<8x1xf32>
    %248 = arith.addf %246, %247 : vector<8x1xf32>
    %cst_115 = arith.constant 0.000000e+00 : f32
    %249 = vector.broadcast %cst_115 : f32 to vector<8x1xf32>
    %250 = arith.maximumf %248, %249 : vector<8x1xf32>
    %251 = arith.truncf %195 : vector<8x32xf32> to vector<8x32xbf16>
    %cst_116 = arith.constant dense<0.000000e+00> : vector<8x1xf32>
    %252 = tpu.matmul %251, %213, %cst_116 {dimension_numbers = #tpu.dot_dimension_numbers<[1], [0], [0], [1], [0, 0, 1, 1], [], []>} : vector<8x32xbf16>, vector<32x1xbf16>, vector<8x1xf32> -> vector<8x1xf32>
    %253 = arith.truncf %207 : vector<8x32xf32> to vector<8x32xbf16>
    %cst_117 = arith.constant dense<0.000000e+00> : vector<8x1xf32>
    %254 = tpu.matmul %253, %209, %cst_117 {dimension_numbers = #tpu.dot_dimension_numbers<[1], [0], [0], [1], [0, 0, 1, 1], [], []>} : vector<8x32xbf16>, vector<32x1xbf16>, vector<8x1xf32> -> vector<8x1xf32>
    %255 = arith.addf %252, %254 : vector<8x1xf32>
    %256 = vector.broadcast %214 : vector<1x1xf32> to vector<8x1xf32>
    %257 = arith.addf %255, %256 : vector<8x1xf32>
    %cst_118 = arith.constant 0.000000e+00 : f32
    %258 = vector.broadcast %cst_118 : f32 to vector<8x1xf32>
    %259 = arith.maximumf %257, %258 : vector<8x1xf32>
    %260 = vector.extract_strided_slice %180 {offsets = [1, 0], sizes = [7, 32], strides = [1, 1]} : vector<8x32xf32> to vector<7x32xf32>
    %cst_119 = arith.constant 0.000000e+00 : f32
    %261 = vector.broadcast %cst_119 : f32 to vector<1x32xf32>
    %262 = tpu.concatenate %260, %261 in 0 : vector<7x32xf32>, vector<1x32xf32> -> vector<8x32xf32>
    %263 = arith.truncf %207 : vector<8x32xf32> to vector<8x32xbf16>
    %cst_120 = arith.constant dense<0.000000e+00> : vector<8x1xf32>
    %264 = tpu.matmul %263, %211, %cst_120 {dimension_numbers = #tpu.dot_dimension_numbers<[1], [0], [0], [1], [0, 0, 1, 1], [], []>} : vector<8x32xbf16>, vector<32x1xbf16>, vector<8x1xf32> -> vector<8x1xf32>
    %265 = vector.broadcast %214 : vector<1x1xf32> to vector<8x1xf32>
    %266 = arith.addf %264, %265 : vector<8x1xf32>
    %cst_121 = arith.constant 0.000000e+00 : f32
    %267 = vector.broadcast %cst_121 : f32 to vector<8x1xf32>
    %268 = arith.maximumf %266, %267 : vector<8x1xf32>
    %269 = arith.truncf %207 : vector<8x32xf32> to vector<8x32xbf16>
    %cst_122 = arith.constant dense<0.000000e+00> : vector<8x1xf32>
    %270 = tpu.matmul %269, %213, %cst_122 {dimension_numbers = #tpu.dot_dimension_numbers<[1], [0], [0], [1], [0, 0, 1, 1], [], []>} : vector<8x32xbf16>, vector<32x1xbf16>, vector<8x1xf32> -> vector<8x1xf32>
    %271 = arith.truncf %262 : vector<8x32xf32> to vector<8x32xbf16>
    %cst_123 = arith.constant dense<0.000000e+00> : vector<8x1xf32>
    %272 = tpu.matmul %271, %209, %cst_123 {dimension_numbers = #tpu.dot_dimension_numbers<[1], [0], [0], [1], [0, 0, 1, 1], [], []>} : vector<8x32xbf16>, vector<32x1xbf16>, vector<8x1xf32> -> vector<8x1xf32>
    %273 = arith.addf %270, %272 : vector<8x1xf32>
    %274 = vector.broadcast %214 : vector<1x1xf32> to vector<8x1xf32>
    %275 = arith.addf %273, %274 : vector<8x1xf32>
    %cst_124 = arith.constant 0.000000e+00 : f32
    %276 = vector.broadcast %cst_124 : f32 to vector<8x1xf32>
    %277 = arith.maximumf %275, %276 : vector<8x1xf32>
    %278 = tpu.concatenate %220, %229, %235, %244, %250, %259, %268, %277 in 1 : vector<8x1xf32>, vector<8x1xf32>, vector<8x1xf32>, vector<8x1xf32>, vector<8x1xf32>, vector<8x1xf32>, vector<8x1xf32>, vector<8x1xf32> -> vector<8x8xf32>
    %c0_125 = arith.constant 0 : index
    %c0_126 = arith.constant 0 : index
    %c0_127 = arith.constant 0 : index
    %279 = vector.load %arg21[%c0_125, %c0_126, %c0_127] : memref<1x8x8xf32, #tpu.memory_space<vmem>>, vector<1x8x8xf32>
    %280 = vector.shape_cast %279 : vector<1x8x8xf32> to vector<8x8xf32>
    %281 = vector.shape_cast %278 : vector<8x8xf32> to vector<1x8x8xf32>
    tpu.vector_store %arg21[%c0_125, %c0_126, %c0_127], %281 {strides = array<i32>} : memref<1x8x8xf32, #tpu.memory_space<vmem>>, vector<1x8x8xf32>,
    %282 = vector.extract_strided_slice %139 {offsets = [0, 0], sizes = [1, 128], strides = [1, 1]} : vector<8x128xf32> to vector<1x128xf32>
    %283 = vector.extract_strided_slice %139 {offsets = [1, 0], sizes = [1, 128], strides = [1, 1]} : vector<8x128xf32> to vector<1x128xf32>
    %284 = vector.extract_strided_slice %139 {offsets = [2, 0], sizes = [1, 128], strides = [1, 1]} : vector<8x128xf32> to vector<1x128xf32>
    %285 = vector.extract_strided_slice %139 {offsets = [3, 0], sizes = [1, 128], strides = [1, 1]} : vector<8x128xf32> to vector<1x128xf32>
    %286 = vector.extract_strided_slice %139 {offsets = [4, 0], sizes = [1, 128], strides = [1, 1]} : vector<8x128xf32> to vector<1x128xf32>
    %287 = vector.extract_strided_slice %139 {offsets = [5, 0], sizes = [1, 128], strides = [1, 1]} : vector<8x128xf32> to vector<1x128xf32>
    %288 = vector.extract_strided_slice %139 {offsets = [6, 0], sizes = [1, 128], strides = [1, 1]} : vector<8x128xf32> to vector<1x128xf32>
    %289 = vector.extract_strided_slice %139 {offsets = [7, 0], sizes = [1, 128], strides = [1, 1]} : vector<8x128xf32> to vector<1x128xf32>
    %290 = tpu.concatenate %282, %283, %284, %285, %286, %287, %288, %289 in 1 : vector<1x128xf32>, vector<1x128xf32>, vector<1x128xf32>, vector<1x128xf32>, vector<1x128xf32>, vector<1x128xf32>, vector<1x128xf32>, vector<1x128xf32> -> vector<1x1024xf32>
    %c0_128 = arith.constant 0 : index
    %c0_129 = arith.constant 0 : index
    %291 = vector.load %arg14[%c0_128, %c0_129] : memref<1024x128xbf16, #tpu.memory_space<vmem>>, vector<1024x128xbf16>
    %292 = arith.truncf %290 : vector<1x1024xf32> to vector<1x1024xbf16>
    %cst_130 = arith.constant dense<0.000000e+00> : vector<1x128xf32>
    %293 = tpu.matmul %292, %291, %cst_130 {dimension_numbers = #tpu.dot_dimension_numbers<[1], [0], [0], [1], [0, 0, 1, 1], [], []>} : vector<1x1024xbf16>, vector<1024x128xbf16>, vector<1x128xf32> -> vector<1x128xf32>
    %c0_131 = arith.constant 0 : index
    %c0_132 = arith.constant 0 : index
    %294 = vector.load %arg15[%c0_131, %c0_132] : memref<1x128xf32, #tpu.memory_space<vmem>>, vector<1x128xf32>
    %295 = arith.addf %293, %294 : vector<1x128xf32>
    %cst_133 = arith.constant 0.000000e+00 : f32
    %296 = vector.broadcast %cst_133 : f32 to vector<1x128xf32>
    %297 = arith.maximumf %295, %296 : vector<1x128xf32>
    %c0_134 = arith.constant 0 : index
    %c0_135 = arith.constant 0 : index
    %298 = vector.load %arg16[%c0_134, %c0_135] : memref<128x64xbf16, #tpu.memory_space<vmem>>, vector<128x64xbf16>
    %299 = arith.truncf %297 : vector<1x128xf32> to vector<1x128xbf16>
    %cst_136 = arith.constant dense<0.000000e+00> : vector<1x64xf32>
    %300 = tpu.matmul %299, %298, %cst_136 {dimension_numbers = #tpu.dot_dimension_numbers<[1], [0], [0], [1], [0, 0, 1, 1], [], []>} : vector<1x128xbf16>, vector<128x64xbf16>, vector<1x64xf32> -> vector<1x64xf32>
    %c0_137 = arith.constant 0 : index
    %c0_138 = arith.constant 0 : index
    %301 = vector.load %arg17[%c0_137, %c0_138] : memref<1x64xf32, #tpu.memory_space<vmem>>, vector<1x64xf32>
    %302 = arith.addf %300, %301 : vector<1x64xf32>
    %cst_139 = arith.constant 0.000000e+00 : f32
    %303 = vector.broadcast %cst_139 : f32 to vector<1x64xf32>
    %304 = arith.maximumf %302, %303 : vector<1x64xf32>
    %c0_140 = arith.constant 0 : index
    %c0_141 = arith.constant 0 : index
    %305 = vector.load %arg18[%c0_140, %c0_141] : memref<64x128xbf16, #tpu.memory_space<vmem>>, vector<64x128xbf16>
    %306 = arith.truncf %304 : vector<1x64xf32> to vector<1x64xbf16>
    %cst_142 = arith.constant dense<0.000000e+00> : vector<1x128xf32>
    %307 = tpu.matmul %306, %305, %cst_142 {dimension_numbers = #tpu.dot_dimension_numbers<[1], [0], [0], [1], [0, 0, 1, 1], [], []>} : vector<1x64xbf16>, vector<64x128xbf16>, vector<1x128xf32> -> vector<1x128xf32>
    %c0_143 = arith.constant 0 : index
    %c0_144 = arith.constant 0 : index
    %308 = vector.load %arg19[%c0_143, %c0_144] : memref<1x128xf32, #tpu.memory_space<vmem>>, vector<1x128xf32>
    %309 = arith.addf %307, %308 : vector<1x128xf32>
    %c0_145 = arith.constant 0 : index
    %c0_146 = arith.constant 0 : index
    %c0_147 = arith.constant 0 : index
    %310 = vector.load %arg22[%c0_145, %c0_146, %c0_147] : memref<1x1x128xf32, #tpu.memory_space<vmem>>, vector<1x1x128xf32>
    %311 = vector.shape_cast %310 : vector<1x1x128xf32> to vector<1x128xf32>
    %312 = vector.shape_cast %309 : vector<1x128xf32> to vector<1x1x128xf32>
    tpu.vector_store %arg22[%c0_145, %c0_146, %c0_147], %312 {strides = array<i32>} : memref<1x1x128xf32, #tpu.memory_space<vmem>>, vector<1x1x128xf32>,
    return
  }
  func.func @transform_0(%arg0: i32) -> (i32, i32, i32) {
    %c0_i32 = arith.constant 0 : i32
    %c0_i32_0 = arith.constant 0 : i32
    %c0_i32_1 = arith.constant 0 : i32
    return %arg0, %c0_i32, %c0_i32_0 : i32, i32, i32
  }
  func.func @transform_1(%arg0: i32) -> (i32, i32, i32) {
    %c0_i32 = arith.constant 0 : i32
    %c0_i32_0 = arith.constant 0 : i32
    %c0_i32_1 = arith.constant 0 : i32
    %c0_i32_2 = arith.constant 0 : i32
    return %c0_i32, %c0_i32_0, %c0_i32_1 : i32, i32, i32
  }
  func.func @transform_2(%arg0: i32) -> (i32, i32) {
    %c0_i32 = arith.constant 0 : i32
    %c0_i32_0 = arith.constant 0 : i32
    %c0_i32_1 = arith.constant 0 : i32
    return %c0_i32, %c0_i32_0 : i32, i32
  }
  func.func @transform_3(%arg0: i32) -> (i32, i32, i32) {
    %c0_i32 = arith.constant 0 : i32
    %c0_i32_0 = arith.constant 0 : i32
    %c0_i32_1 = arith.constant 0 : i32
    %c0_i32_2 = arith.constant 0 : i32
    return %c0_i32, %c0_i32_0, %c0_i32_1 : i32, i32, i32
  }
  func.func @transform_4(%arg0: i32) -> (i32, i32) {
    %c0_i32 = arith.constant 0 : i32
    %c0_i32_0 = arith.constant 0 : i32
    %c0_i32_1 = arith.constant 0 : i32
    return %c0_i32, %c0_i32_0 : i32, i32
  }
  func.func @transform_5(%arg0: i32) -> (i32, i32, i32) {
    %c0_i32 = arith.constant 0 : i32
    %c0_i32_0 = arith.constant 0 : i32
    %c0_i32_1 = arith.constant 0 : i32
    %c0_i32_2 = arith.constant 0 : i32
    return %c0_i32, %c0_i32_0, %c0_i32_1 : i32, i32, i32
  }
  func.func @transform_6(%arg0: i32) -> (i32, i32) {
    %c0_i32 = arith.constant 0 : i32
    %c0_i32_0 = arith.constant 0 : i32
    %c0_i32_1 = arith.constant 0 : i32
    return %c0_i32, %c0_i32_0 : i32, i32
  }
  func.func @transform_7(%arg0: i32) -> (i32, i32, i32) {
    %c0_i32 = arith.constant 0 : i32
    %c0_i32_0 = arith.constant 0 : i32
    %c0_i32_1 = arith.constant 0 : i32
    %c0_i32_2 = arith.constant 0 : i32
    return %c0_i32, %c0_i32_0, %c0_i32_1 : i32, i32, i32
  }
  func.func @transform_8(%arg0: i32) -> (i32, i32) {
    %c0_i32 = arith.constant 0 : i32
    %c0_i32_0 = arith.constant 0 : i32
    %c0_i32_1 = arith.constant 0 : i32
    return %c0_i32, %c0_i32_0 : i32, i32
  }
  func.func @transform_9(%arg0: i32) -> (i32, i32, i32) {
    %c0_i32 = arith.constant 0 : i32
    %c0_i32_0 = arith.constant 0 : i32
    %c0_i32_1 = arith.constant 0 : i32
    %c0_i32_2 = arith.constant 0 : i32
    return %c0_i32, %c0_i32_0, %c0_i32_1 : i32, i32, i32
  }
  func.func @transform_10(%arg0: i32) -> (i32, i32) {
    %c0_i32 = arith.constant 0 : i32
    %c0_i32_0 = arith.constant 0 : i32
    %c0_i32_1 = arith.constant 0 : i32
    return %c0_i32, %c0_i32_0 : i32, i32
  }
  func.func @transform_11(%arg0: i32) -> (i32, i32, i32) {
    %c0_i32 = arith.constant 0 : i32
    %c0_i32_0 = arith.constant 0 : i32
    %c0_i32_1 = arith.constant 0 : i32
    %c0_i32_2 = arith.constant 0 : i32
    return %c0_i32, %c0_i32_0, %c0_i32_1 : i32, i32, i32
  }
  func.func @transform_12(%arg0: i32) -> (i32, i32) {
    %c0_i32 = arith.constant 0 : i32
    %c0_i32_0 = arith.constant 0 : i32
    %c0_i32_1 = arith.constant 0 : i32
    return %c0_i32, %c0_i32_0 : i32, i32
  }
  func.func @transform_13(%arg0: i32) -> (i32, i32) {
    %c0_i32 = arith.constant 0 : i32
    %c0_i32_0 = arith.constant 0 : i32
    %c0_i32_1 = arith.constant 0 : i32
    return %c0_i32, %c0_i32_0 : i32, i32
  }
  func.func @transform_14(%arg0: i32) -> (i32, i32) {
    %c0_i32 = arith.constant 0 : i32
    %c0_i32_0 = arith.constant 0 : i32
    %c0_i32_1 = arith.constant 0 : i32
    return %c0_i32, %c0_i32_0 : i32, i32
  }
  func.func @transform_15(%arg0: i32) -> (i32, i32) {
    %c0_i32 = arith.constant 0 : i32
    %c0_i32_0 = arith.constant 0 : i32
    %c0_i32_1 = arith.constant 0 : i32
    return %c0_i32, %c0_i32_0 : i32, i32
  }
  func.func @transform_16(%arg0: i32) -> (i32, i32) {
    %c0_i32 = arith.constant 0 : i32
    %c0_i32_0 = arith.constant 0 : i32
    %c0_i32_1 = arith.constant 0 : i32
    return %c0_i32, %c0_i32_0 : i32, i32
  }
  func.func @transform_17(%arg0: i32) -> (i32, i32) {
    %c0_i32 = arith.constant 0 : i32
    %c0_i32_0 = arith.constant 0 : i32
    %c0_i32_1 = arith.constant 0 : i32
    return %c0_i32, %c0_i32_0 : i32, i32
  }
  func.func @transform_18(%arg0: i32) -> (i32, i32) {
    %c0_i32 = arith.constant 0 : i32
    %c0_i32_0 = arith.constant 0 : i32
    %c0_i32_1 = arith.constant 0 : i32
    return %c0_i32, %c0_i32_0 : i32, i32
  }
  func.func @transform_19(%arg0: i32) -> (i32, i32, i32) {
    %c0_i32 = arith.constant 0 : i32
    %c0_i32_0 = arith.constant 0 : i32
    %c0_i32_1 = arith.constant 0 : i32
    return %arg0, %c0_i32, %c0_i32_0 : i32, i32, i32
  }
  func.func @transform_20(%arg0: i32) -> (i32, i32, i32) {
    %c0_i32 = arith.constant 0 : i32
    %c0_i32_0 = arith.constant 0 : i32
    %c0_i32_1 = arith.constant 0 : i32
    return %arg0, %c0_i32, %c0_i32_0 : i32, i32, i32
  }
  func.func @transform_21(%arg0: i32) -> (i32, i32, i32) {
    %c0_i32 = arith.constant 0 : i32
    %c0_i32_0 = arith.constant 0 : i32
    %c0_i32_1 = arith.constant 0 : i32
    return %arg0, %c0_i32, %c0_i32_0 : i32, i32, i32
  }
}

</mosaic_0001>

<llo_original>
// kernel: deep_model_forward.1
$region0: #{deep_model_forward.1}
  #allocation0 [shape = 'u32[]', space=smem, size = 0x4, offset = 0x4, fixed_abs, tag = 'smem constant byte address 0x4 - core index']
  #allocation1 [shape = 'u32[144,128]{1,0:T(1,128)}', space=vmem, size = 0x12000, scoped, tag = 'internal scratch']
  #allocation2 [shape = 'f32[1,1]{1,0:T(1,128)S(1)}', space=vmem, size = 0x200, scoped, tag = 'scoped memory for deep_model_forward.1']
  %s0 = inlined_call_operand.vmem [shape: f32[2,8,8], index: 0, kind: input, shape index: {}]
  %s1 = inlined_call_operand.vmem [shape: f32[3,1,32], index: 1, kind: input, shape index: {}]
  %s2 = inlined_call_operand.vmem [shape: f32[1,32], index: 2, kind: input, shape index: {}]
  %s3 = inlined_call_operand.hbm [shape: bf16[3,32,64], index: 3, kind: input, shape index: {}]
  %s4 = inlined_call_operand.vmem [shape: f32[1,64], index: 4, kind: input, shape index: {}]
  %s5 = inlined_call_operand.vmem [shape: bf16[3,64,128], index: 5, kind: input, shape index: {}]
  %s6 = inlined_call_operand.vmem [shape: f32[1,128], index: 6, kind: input, shape index: {}]
  %s7 = inlined_call_operand.vmem [shape: bf16[3,128,64], index: 7, kind: input, shape index: {}]
  %s8 = inlined_call_operand.vmem [shape: f32[1,64], index: 8, kind: input, shape index: {}]
  %s9 = inlined_call_operand.vmem [shape: bf16[3,64,32], index: 9, kind: input, shape index: {}]
  %s10 = inlined_call_operand.vmem [shape: f32[1,32], index: 10, kind: input, shape index: {}]
  %s11 = inlined_call_operand.vmem [shape: bf16[3,32,1], index: 11, kind: input, shape index: {}]
  %s12 = inlined_call_operand.<no memory space> [shape: f32[1,1], index: 12, kind: input, shape index: {}]
  %s13 = inlined_call_operand.vmem [shape: bf16[1024,128], index: 13, kind: input, shape index: {}]
  %s14 = inlined_call_operand.vmem [shape: f32[1,128], index: 14, kind: input, shape index: {}]
  %s15 = inlined_call_operand.vmem [shape: bf16[128,64], index: 15, kind: input, shape index: {}]
  %s16 = inlined_call_operand.vmem [shape: f32[1,64], index: 16, kind: input, shape index: {}]
  %s17 = inlined_call_operand.hbm [shape: bf16[64,128], index: 17, kind: input, shape index: {}]
  %s18 = inlined_call_operand.vmem [shape: f32[1,128], index: 18, kind: input, shape index: {}]
  %s19 = inlined_call_operand.vmem [shape: f32[2,8,128], index: 19, kind: output, shape index: {0}]
  %s20 = inlined_call_operand.vmem [shape: f32[2,8,8], index: 20, kind: output, shape index: {1}]
  %s21 = inlined_call_operand.hbm [shape: f32[2,1,128], index: 21, kind: output, shape index: {2}]
  %22 = xla_tuple %s19, %s20, %s21
  %s23 = sld [smem:[#allocation0]]
  $region133: #{deep_model_forward.1} parent=0
    _
  %s25 = ssub.s32 1, %s23
  %s26 = scalar_select 0, %s25, %s23
  %v27 = vstv %s12
  %28 = vst [vmem:[#allocation2] sm:$0x1] %v27
  $region1: #{deep_model_forward.1} parent=0
    #allocation3 [shape = 'u8[24576]{0}', space=vmem, size = 0x6000, scoped, tag = 'input window, operand 3, single buffered']
    #allocation4 [shape = 's32[2]{0}', space=sflag, size = 0x8, scoped, tag = 'scoped memory for deep_model_forward.1']
    #allocation5 [shape = 's32[2]{0}', space=sflag, size = 0x8, scoped, tag = 'scoped memory for deep_model_forward.1']
    #allocation6 [shape = 'u8[16384]{0}', space=vmem, size = 0x4000, scoped, tag = 'input window, operand 17, single buffered']
    #allocation7 [shape = 's32[1]{0}', space=sflag, size = 0x4, scoped, tag = 'scoped memory for deep_model_forward.1']
    #allocation8 [shape = 'u8[1024]{0}', space=vmem, size = 0x400, scoped, tag = 'output window, operand 2']
    %29 = vsyncpa [#allocation4], 0
    %30 = vsyncpa [#allocation7], 0
    %31 = vsyncpa [#allocation5], 0
    %s32 = scalar_lea.sflag [#allocation5], 1
    %33 = vsyncpa %s32, 0
    loop: start=0, step=1, limit=4
    $region2: #{deep_model_forward.1} parent=1 // loop_pre_header
      _
    $region3: #{deep_model_forward.1} parent=1 // loop_header
      %s35 = sphi 0, %s39
      %p36 = scmp.ge.s32.totalorder %s35, 4
      %s45 = sphi 0, %s47
      %s48 = sphi 0, %s45
      %s49 = sphi 0, %s48
      %s65 = sphi 0, %s49
      %s69 = sphi 0, %s69
      %s71 = sphi 0, %s69
      %s72 = sphi 0, %s71
      %s86 = sphi 0, %s72
      %s90 = sphi 0, %s90
      %s92 = sphi 0, %s90
      %s93 = sphi 0, %s92
      %s107 = sphi 0, %s93
      %s111 = sphi 0, %s111
      %s113 = sphi 0, %s111
      %s114 = sphi 0, %s113
      %s128 = sphi 0, %s114
      %s132 = sphi 0, %s132
      %s134 = sphi 0, %s132
      %s135 = sphi 0, %s134
      %s149 = sphi 0, %s135
      %s153 = sphi 0, %s153
      %s155 = sphi 0, %s153
      %s156 = sphi 0, %s155
      %s170 = sphi 0, %s156
      %s174 = sphi 0, %s174
      %s176 = sphi 0, %s174
      %s177 = sphi 0, %s176
      %s191 = sphi 0, %s177
      %s195 = sphi 0, %s195
      %s197 = sphi 0, %s195
      %s198 = sphi 0, %s197
      %s212 = sphi 0, %s198
      %s216 = sphi 0, %s216
      %s218 = sphi 0, %s216
      %s219 = sphi 0, %s218
      %s233 = sphi 0, %s219
      %s237 = sphi 0, %s237
      %s239 = sphi 0, %s237
      %s240 = sphi 0, %s239
      %s254 = sphi 0, %s240
      %s258 = sphi 0, %s258
      %s260 = sphi 0, %s258
      %s261 = sphi 0, %s260
      %s275 = sphi 0, %s261
      %s279 = sphi 0, %s279
      %s281 = sphi 0, %s279
      %s282 = sphi 0, %s281
      %s296 = sphi 0, %s282
      %s300 = sphi 0, %s300
      %s302 = sphi 0, %s300
      %s303 = sphi 0, %s302
      %s317 = sphi 0, %s303
      %s321 = sphi 0, %s321
      %s323 = sphi 0, %s321
      %s324 = sphi 0, %s323
      %s338 = sphi 0, %s324
      %s342 = sphi 0, %s342
      %s344 = sphi 0, %s342
      %s345 = sphi 0, %s344
      %s359 = sphi 0, %s345
      %s363 = sphi 0, %s363
      %s365 = sphi 0, %s363
      %s366 = sphi 0, %s365
      %s380 = sphi 0, %s366
      %s384 = sphi 0, %s384
      %s386 = sphi 0, %s384
      %s387 = sphi 0, %s386
      %s401 = sphi 0, %s387
      %s405 = sphi 0, %s405
      %s407 = sphi 0, %s405
      %s408 = sphi 0, %s407
      %s422 = sphi 0, %s408
      %s426 = sphi 0, %s426
      %s428 = sphi 0, %s426
      %s429 = sphi 0, %s428
      %s443 = sphi 0, %s429
      %s449 = sphi 0, %s451
      %s452 = sphi 0, %s449
      %s453 = sphi 0, %s452
      %s469 = sphi 0, %s453
      %s475 = sphi 0, %s477
      %s478 = sphi 0, %s475
      %s479 = sphi 0, %s478
      %s495 = sphi 0, %s479
      %s501 = sphi 0, %s503
      %s504 = sphi 0, %s501
      %s505 = sphi 0, %s504
      %s521 = sphi 0, %s505
    $region4: #{deep_model_forward.1} parent=1 // loop_header_branch
      %38 = sbr.rel (%p36) target = $region8
    $region5: #{deep_model_forward.1} parent=1 // loop_body
      %s40 = ssub.s32 %s35, 1
      %s41 = ssub.s32 %s35, 2
      %s42 = sadd.s32 %s35, 1
      %s43 = ssub.s32 %s35, %s42
      %p44 = scmp.eq.s32.totalorder %s43, 0
      %s46 = sadd.s32 %s45, 1
      %s47 = scalar_select %p44, %s45, %s46
      %p50 = pneg %p44
      %p51 = scmp.eq.s32.totalorder %s35, 1
      %p52 = por %p50, %p51
      %p53 = scmp.ne.s32.totalorder %s45, %s48
      %p54 = scmp.eq.s32.totalorder %s35, 0
      %p55 = por %p53, %p54
      %p56 = scmp.ne.s32.totalorder %s45, %s48
      %p57 = scmp.eq.s32.totalorder %s40, 1
      %p58 = por %p56, %p57
      %p59 = scmp.ne.s32.totalorder %s48, %s49
      %p60 = scmp.eq.s32.totalorder %s40, 0
      %p61 = por %p59, %p60
      %p62 = scmp.ne.s32.totalorder %s48, %s49
      %p63 = scmp.eq.s32.totalorder %s41, 1
      %p64 = por %p62, %p63
      %p66 = scmp.ne.s32.totalorder %s49, %s65
      %p67 = scmp.eq.s32.totalorder %s41, 0
      %p68 = por %p66, %p67
      %s70 = sadd.s32 %s69, 1
      %p73 = scmp.eq.s32.totalorder %s35, 1
      %p74 = scmp.ne.s32.totalorder %s69, %s71
      %p75 = scmp.eq.s32.totalorder %s35, 0
      %p76 = por %p74, %p75
      %p77 = scmp.ne.s32.totalorder %s69, %s71
      %p78 = scmp.eq.s32.totalorder %s40, 1
      %p79 = por %p77, %p78
      %p80 = scmp.ne.s32.totalorder %s71, %s72
      %p81 = scmp.eq.s32.totalorder %s40, 0
      %p82 = por %p80, %p81
      %p83 = scmp.ne.s32.totalorder %s71, %s72
      %p84 = scmp.eq.s32.totalorder %s41, 1
      %p85 = por %p83, %p84
      %p87 = scmp.ne.s32.totalorder %s72, %s86
      %p88 = scmp.eq.s32.totalorder %s41, 0
      %p89 = por %p87, %p88
      %s91 = sadd.s32 %s90, 1
      %p94 = scmp.eq.s32.totalorder %s35, 1
      %p95 = scmp.ne.s32.totalorder %s90, %s92
      %p96 = scmp.eq.s32.totalorder %s35, 0
      %p97 = por %p95, %p96
      %p98 = scmp.ne.s32.totalorder %s90, %s92
      %p99 = scmp.eq.s32.totalorder %s40, 1
      %p100 = por %p98, %p99
      %p101 = scmp.ne.s32.totalorder %s92, %s93
      %p102 = scmp.eq.s32.totalorder %s40, 0
      %p103 = por %p101, %p102
      %p104 = scmp.ne.s32.totalorder %s92, %s93
      %p105 = scmp.eq.s32.totalorder %s41, 1
      %p106 = por %p104, %p105
      %p108 = scmp.ne.s32.totalorder %s93, %s107
      %p109 = scmp.eq.s32.totalorder %s41, 0
      %p110 = por %p108, %p109
      %s112 = sadd.s32 %s111, 1
      %p115 = scmp.eq.s32.totalorder %s35, 1
      %p116 = scmp.ne.s32.totalorder %s111, %s113
      %p117 = scmp.eq.s32.totalorder %s35, 0
      %p118 = por %p116, %p117
      %p119 = scmp.ne.s32.totalorder %s111, %s113
      %p120 = scmp.eq.s32.totalorder %s40, 1
      %p121 = por %p119, %p120
      %p122 = scmp.ne.s32.totalorder %s113, %s114
      %p123 = scmp.eq.s32.totalorder %s40, 0
      %p124 = por %p122, %p123
      %p125 = scmp.ne.s32.totalorder %s113, %s114
      %p126 = scmp.eq.s32.totalorder %s41, 1
      %p127 = por %p125, %p126
      %p129 = scmp.ne.s32.totalorder %s114, %s128
      %p130 = scmp.eq.s32.totalorder %s41, 0
      %p131 = por %p129, %p130
      %s133 = sadd.s32 %s132, 1
      %p136 = scmp.eq.s32.totalorder %s35, 1
      %p137 = scmp.ne.s32.totalorder %s132, %s134
      %p138 = scmp.eq.s32.totalorder %s35, 0
      %p139 = por %p137, %p138
      %p140 = scmp.ne.s32.totalorder %s132, %s134
      %p141 = scmp.eq.s32.totalorder %s40, 1
      %p142 = por %p140, %p141
      %p143 = scmp.ne.s32.totalorder %s134, %s135
      %p144 = scmp.eq.s32.totalorder %s40, 0
      %p145 = por %p143, %p144
      %p146 = scmp.ne.s32.totalorder %s134, %s135
      %p147 = scmp.eq.s32.totalorder %s41, 1
      %p148 = por %p146, %p147
      %p150 = scmp.ne.s32.totalorder %s135, %s149
      %p151 = scmp.eq.s32.totalorder %s41, 0
      %p152 = por %p150, %p151
      %s154 = sadd.s32 %s153, 1
      %p157 = scmp.eq.s32.totalorder %s35, 1
      %p158 = scmp.ne.s32.totalorder %s153, %s155
      %p159 = scmp.eq.s32.totalorder %s35, 0
      %p160 = por %p158, %p159
      %p161 = scmp.ne.s32.totalorder %s153, %s155
      %p162 = scmp.eq.s32.totalorder %s40, 1
      %p163 = por %p161, %p162
      %p164 = scmp.ne.s32.totalorder %s155, %s156
      %p165 = scmp.eq.s32.totalorder %s40, 0
      %p166 = por %p164, %p165
      %p167 = scmp.ne.s32.totalorder %s155, %s156
      %p168 = scmp.eq.s32.totalorder %s41, 1
      %p169 = por %p167, %p168
      %p171 = scmp.ne.s32.totalorder %s156, %s170
      %p172 = scmp.eq.s32.totalorder %s41, 0
      %p173 = por %p171, %p172
      %s175 = sadd.s32 %s174, 1
      %p178 = scmp.eq.s32.totalorder %s35, 1
      %p179 = scmp.ne.s32.totalorder %s174, %s176
      %p180 = scmp.eq.s32.totalorder %s35, 0
      %p181 = por %p179, %p180
      %p182 = scmp.ne.s32.totalorder %s174, %s176
      %p183 = scmp.eq.s32.totalorder %s40, 1
      %p184 = por %p182, %p183
      %p185 = scmp.ne.s32.totalorder %s176, %s177
      %p186 = scmp.eq.s32.totalorder %s40, 0
      %p187 = por %p185, %p186
      %p188 = scmp.ne.s32.totalorder %s176, %s177
      %p189 = scmp.eq.s32.totalorder %s41, 1
      %p190 = por %p188, %p189
      %p192 = scmp.ne.s32.totalorder %s177, %s191
      %p193 = scmp.eq.s32.totalorder %s41, 0
      %p194 = por %p192, %p193
      %s196 = sadd.s32 %s195, 1
      %p199 = scmp.eq.s32.totalorder %s35, 1
      %p200 = scmp.ne.s32.totalorder %s195, %s197
      %p201 = scmp.eq.s32.totalorder %s35, 0
      %p202 = por %p200, %p201
      %p203 = scmp.ne.s32.totalorder %s195, %s197
      %p204 = scmp.eq.s32.totalorder %s40, 1
      %p205 = por %p203, %p204
      %p206 = scmp.ne.s32.totalorder %s197, %s198
      %p207 = scmp.eq.s32.totalorder %s40, 0
      %p208 = por %p206, %p207
      %p209 = scmp.ne.s32.totalorder %s197, %s198
      %p210 = scmp.eq.s32.totalorder %s41, 1
      %p211 = por %p209, %p210
      %p213 = scmp.ne.s32.totalorder %s198, %s212
      %p214 = scmp.eq.s32.totalorder %s41, 0
      %p215 = por %p213, %p214
      %s217 = sadd.s32 %s216, 1
      %p220 = scmp.eq.s32.totalorder %s35, 1
      %p221 = scmp.ne.s32.totalorder %s216, %s218
      %p222 = scmp.eq.s32.totalorder %s35, 0
      %p223 = por %p221, %p222
      %p224 = scmp.ne.s32.totalorder %s216, %s218
      %p225 = scmp.eq.s32.totalorder %s40, 1
      %p226 = por %p224, %p225
      %p227 = scmp.ne.s32.totalorder %s218, %s219
      %p228 = scmp.eq.s32.totalorder %s40, 0
      %p229 = por %p227, %p228
      %p230 = scmp.ne.s32.totalorder %s218, %s219
      %p231 = scmp.eq.s32.totalorder %s41, 1
      %p232 = por %p230, %p231
      %p234 = scmp.ne.s32.totalorder %s219, %s233
      %p235 = scmp.eq.s32.totalorder %s41, 0
      %p236 = por %p234, %p235
      %s238 = sadd.s32 %s237, 1
      %p241 = scmp.eq.s32.totalorder %s35, 1
      %p242 = scmp.ne.s32.totalorder %s237, %s239
      %p243 = scmp.eq.s32.totalorder %s35, 0
      %p244 = por %p242, %p243
      %p245 = scmp.ne.s32.totalorder %s237, %s239
      %p246 = scmp.eq.s32.totalorder %s40, 1
      %p247 = por %p245, %p246
      %p248 = scmp.ne.s32.totalorder %s239, %s240
      %p249 = scmp.eq.s32.totalorder %s40, 0
      %p250 = por %p248, %p249
      %p251 = scmp.ne.s32.totalorder %s239, %s240
      %p252 = scmp.eq.s32.totalorder %s41, 1
      %p253 = por %p251, %p252
      %p255 = scmp.ne.s32.totalorder %s240, %s254
      %p256 = scmp.eq.s32.totalorder %s41, 0
      %p257 = por %p255, %p256
      %s259 = sadd.s32 %s258, 1
      %p262 = scmp.eq.s32.totalorder %s35, 1
      %p263 = scmp.ne.s32.totalorder %s258, %s260
      %p264 = scmp.eq.s32.totalorder %s35, 0
      %p265 = por %p263, %p264
      %p266 = scmp.ne.s32.totalorder %s258, %s260
      %p267 = scmp.eq.s32.totalorder %s40, 1
      %p268 = por %p266, %p267
      %p269 = scmp.ne.s32.totalorder %s260, %s261
      %p270 = scmp.eq.s32.totalorder %s40, 0
      %p271 = por %p269, %p270
      %p272 = scmp.ne.s32.totalorder %s260, %s261
      %p273 = scmp.eq.s32.totalorder %s41, 1
      %p274 = por %p272, %p273
      %p276 = scmp.ne.s32.totalorder %s261, %s275
      %p277 = scmp.eq.s32.totalorder %s41, 0
      %p278 = por %p276, %p277
      %s280 = sadd.s32 %s279, 1
      %p283 = scmp.eq.s32.totalorder %s35, 1
      %p284 = scmp.ne.s32.totalorder %s279, %s281
      %p285 = scmp.eq.s32.totalorder %s35, 0
      %p286 = por %p284, %p285
      %p287 = scmp.ne.s32.totalorder %s279, %s281
      %p288 = scmp.eq.s32.totalorder %s40, 1
      %p289 = por %p287, %p288
      %p290 = scmp.ne.s32.totalorder %s281, %s282
      %p291 = scmp.eq.s32.totalorder %s40, 0
      %p292 = por %p290, %p291
      %p293 = scmp.ne.s32.totalorder %s281, %s282
      %p294 = scmp.eq.s32.totalorder %s41, 1
      %p295 = por %p293, %p294
      %p297 = scmp.ne.s32.totalorder %s282, %s296
      %p298 = scmp.eq.s32.totalorder %s41, 0
      %p299 = por %p297, %p298
      %s301 = sadd.s32 %s300, 1
      %p304 = scmp.eq.s32.totalorder %s35, 1
      %p305 = scmp.ne.s32.totalorder %s300, %s302
      %p306 = scmp.eq.s32.totalorder %s35, 0
      %p307 = por %p305, %p306
      %p308 = scmp.ne.s32.totalorder %s300, %s302
      %p309 = scmp.eq.s32.totalorder %s40, 1
      %p310 = por %p308, %p309
      %p311 = scmp.ne.s32.totalorder %s302, %s303
      %p312 = scmp.eq.s32.totalorder %s40, 0
      %p313 = por %p311, %p312
      %p314 = scmp.ne.s32.totalorder %s302, %s303
      %p315 = scmp.eq.s32.totalorder %s41, 1
      %p316 = por %p314, %p315
      %p318 = scmp.ne.s32.totalorder %s303, %s317
      %p319 = scmp.eq.s32.totalorder %s41, 0
      %p320 = por %p318, %p319
      %s322 = sadd.s32 %s321, 1
      %p325 = scmp.eq.s32.totalorder %s35, 1
      %p326 = scmp.ne.s32.totalorder %s321, %s323
      %p327 = scmp.eq.s32.totalorder %s35, 0
      %p328 = por %p326, %p327
      %p329 = scmp.ne.s32.totalorder %s321, %s323
      %p330 = scmp.eq.s32.totalorder %s40, 1
      %p331 = por %p329, %p330
      %p332 = scmp.ne.s32.totalorder %s323, %s324
      %p333 = scmp.eq.s32.totalorder %s40, 0
      %p334 = por %p332, %p333
      %p335 = scmp.ne.s32.totalorder %s323, %s324
      %p336 = scmp.eq.s32.totalorder %s41, 1
      %p337 = por %p335, %p336
      %p339 = scmp.ne.s32.totalorder %s324, %s338
      %p340 = scmp.eq.s32.totalorder %s41, 0
      %p341 = por %p339, %p340
      %s343 = sadd.s32 %s342, 1
      %p346 = scmp.eq.s32.totalorder %s35, 1
      %p347 = scmp.ne.s32.totalorder %s342, %s344
      %p348 = scmp.eq.s32.totalorder %s35, 0
      %p349 = por %p347, %p348
      %p350 = scmp.ne.s32.totalorder %s342, %s344
      %p351 = scmp.eq.s32.totalorder %s40, 1
      %p352 = por %p350, %p351
      %p353 = scmp.ne.s32.totalorder %s344, %s345
      %p354 = scmp.eq.s32.totalorder %s40, 0
      %p355 = por %p353, %p354
      %p356 = scmp.ne.s32.totalorder %s344, %s345
      %p357 = scmp.eq.s32.totalorder %s41, 1
      %p358 = por %p356, %p357
      %p360 = scmp.ne.s32.totalorder %s345, %s359
      %p361 = scmp.eq.s32.totalorder %s41, 0
      %p362 = por %p360, %p361
      %s364 = sadd.s32 %s363, 1
      %p367 = scmp.eq.s32.totalorder %s35, 1
      %p368 = scmp.ne.s32.totalorder %s363, %s365
      %p369 = scmp.eq.s32.totalorder %s35, 0
      %p370 = por %p368, %p369
      %p371 = scmp.ne.s32.totalorder %s363, %s365
      %p372 = scmp.eq.s32.totalorder %s40, 1
      %p373 = por %p371, %p372
      %p374 = scmp.ne.s32.totalorder %s365, %s366
      %p375 = scmp.eq.s32.totalorder %s40, 0
      %p376 = por %p374, %p375
      %p377 = scmp.ne.s32.totalorder %s365, %s366
      %p378 = scmp.eq.s32.totalorder %s41, 1
      %p379 = por %p377, %p378
      %p381 = scmp.ne.s32.totalorder %s366, %s380
      %p382 = scmp.eq.s32.totalorder %s41, 0
      %p383 = por %p381, %p382
      %s385 = sadd.s32 %s384, 1
      %p388 = scmp.eq.s32.totalorder %s35, 1
      %p389 = scmp.ne.s32.totalorder %s384, %s386
      %p390 = scmp.eq.s32.totalorder %s35, 0
      %p391 = por %p389, %p390
      %p392 = scmp.ne.s32.totalorder %s384, %s386
      %p393 = scmp.eq.s32.totalorder %s40, 1
      %p394 = por %p392, %p393
      %p395 = scmp.ne.s32.totalorder %s386, %s387
      %p396 = scmp.eq.s32.totalorder %s40, 0
      %p397 = por %p395, %p396
      %p398 = scmp.ne.s32.totalorder %s386, %s387
      %p399 = scmp.eq.s32.totalorder %s41, 1
      %p400 = por %p398, %p399
      %p402 = scmp.ne.s32.totalorder %s387, %s401
      %p403 = scmp.eq.s32.totalorder %s41, 0
      %p404 = por %p402, %p403
      %s406 = sadd.s32 %s405, 1
      %p409 = scmp.eq.s32.totalorder %s35, 1
      %p410 = scmp.ne.s32.totalorder %s405, %s407
      %p411 = scmp.eq.s32.totalorder %s35, 0
      %p412 = por %p410, %p411
      %p413 = scmp.ne.s32.totalorder %s405, %s407
      %p414 = scmp.eq.s32.totalorder %s40, 1
      %p415 = por %p413, %p414
      %p416 = scmp.ne.s32.totalorder %s407, %s408
      %p417 = scmp.eq.s32.totalorder %s40, 0
      %p418 = por %p416, %p417
      %p419 = scmp.ne.s32.totalorder %s407, %s408
      %p420 = scmp.eq.s32.totalorder %s41, 1
      %p421 = por %p419, %p420
      %p423 = scmp.ne.s32.totalorder %s408, %s422
      %p424 = scmp.eq.s32.totalorder %s41, 0
      %p425 = por %p423, %p424
      %s427 = sadd.s32 %s426, 1
      %p430 = scmp.eq.s32.totalorder %s35, 1
      %p431 = scmp.ne.s32.totalorder %s426, %s428
      %p432 = scmp.eq.s32.totalorder %s35, 0
      %p433 = por %p431, %p432
      %p434 = scmp.ne.s32.totalorder %s426, %s428
      %p435 = scmp.eq.s32.totalorder %s40, 1
      %p436 = por %p434, %p435
      %p437 = scmp.ne.s32.totalorder %s428, %s429
      %p438 = scmp.eq.s32.totalorder %s40, 0
      %p439 = por %p437, %p438
      %p440 = scmp.ne.s32.totalorder %s428, %s429
      %p441 = scmp.eq.s32.totalorder %s41, 1
      %p442 = por %p440, %p441
      %p444 = scmp.ne.s32.totalorder %s429, %s443
      %p445 = scmp.eq.s32.totalorder %s41, 0
      %p446 = por %p444, %p445
      %s447 = ssub.s32 %s35, %s42
      %p448 = scmp.eq.s32.totalorder %s447, 0
      %s450 = sadd.s32 %s449, 1
      %s451 = scalar_select %p448, %s449, %s450
      %p454 = pneg %p448
      %p455 = scmp.eq.s32.totalorder %s35, 1
      %p456 = por %p454, %p455
      %p457 = scmp.ne.s32.totalorder %s449, %s452
      %p458 = scmp.eq.s32.totalorder %s35, 0
      %p459 = por %p457, %p458
      %p460 = scmp.ne.s32.totalorder %s449, %s452
      %p461 = scmp.eq.s32.totalorder %s40, 1
      %p462 = por %p460, %p461
      %p463 = scmp.ne.s32.totalorder %s452, %s453
      %p464 = scmp.eq.s32.totalorder %s40, 0
      %p465 = por %p463, %p464
      %p466 = scmp.ne.s32.totalorder %s452, %s453
      %p467 = scmp.eq.s32.totalorder %s41, 1
      %p468 = por %p466, %p467
      %p470 = scmp.ne.s32.totalorder %s453, %s469
      %p471 = scmp.eq.s32.totalorder %s41, 0
      %p472 = por %p470, %p471
      %s473 = ssub.s32 %s35, %s42
      %p474 = scmp.eq.s32.totalorder %s473, 0
      %s476 = sadd.s32 %s475, 1
      %s477 = scalar_select %p474, %s475, %s476
      %p480 = pneg %p474
      %p481 = scmp.eq.s32.totalorder %s35, 1
      %p482 = por %p480, %p481
      %p483 = scmp.ne.s32.totalorder %s475, %s478
      %p484 = scmp.eq.s32.totalorder %s35, 0
      %p485 = por %p483, %p484
      %p486 = scmp.ne.s32.totalorder %s475, %s478
      %p487 = scmp.eq.s32.totalorder %s40, 1
      %p488 = por %p486, %p487
      %p489 = scmp.ne.s32.totalorder %s478, %s479
      %p490 = scmp.eq.s32.totalorder %s40, 0
      %p491 = por %p489, %p490
      %p492 = scmp.ne.s32.totalorder %s478, %s479
      %p493 = scmp.eq.s32.totalorder %s41, 1
      %p494 = por %p492, %p493
      %p496 = scmp.ne.s32.totalorder %s479, %s495
      %p497 = scmp.eq.s32.totalorder %s41, 0
      %p498 = por %p496, %p497
      %s499 = ssub.s32 %s35, %s42
      %p500 = scmp.eq.s32.totalorder %s499, 0
      %s502 = sadd.s32 %s501, 1
      %s503 = scalar_select %p500, %s501, %s502
      %p506 = pneg %p500
      %p507 = scmp.eq.s32.totalorder %s35, 1
      %p508 = por %p506, %p507
      %p509 = scmp.ne.s32.totalorder %s501, %s504
      %p510 = scmp.eq.s32.totalorder %s35, 0
      %p511 = por %p509, %p510
      %p512 = scmp.ne.s32.totalorder %s501, %s504
      %p513 = scmp.eq.s32.totalorder %s40, 1
      %p514 = por %p512, %p513
      %p515 = scmp.ne.s32.totalorder %s504, %s505
      %p516 = scmp.eq.s32.totalorder %s40, 0
      %p517 = por %p515, %p516
      %p518 = scmp.ne.s32.totalorder %s504, %s505
      %p519 = scmp.eq.s32.totalorder %s41, 1
      %p520 = por %p518, %p519
      %p522 = scmp.ne.s32.totalorder %s505, %s521
      %p523 = scmp.eq.s32.totalorder %s41, 0
      %p524 = por %p522, %p523
      %p525 = scmp.le.s32.totalorder 1, %s35
      %p526 = scmp.lt.s32.totalorder %s35, 3
      %p527 = pnand %p525, %p526
      %p528 = pneg %p527
      // Predicated region
      $region9: #{deep_model_forward.1} parent=5 // pred_check
        _
      $region10: #{deep_model_forward.1} parent=5 // pred_check_branch
        %530 = sbr.rel (%p527) target = $region12
      $region11: #{deep_model_forward.1} parent=5 // pred_region
        %s531 = ssub.s32 %s35, 1
        // Predicated region
        $region13: #{deep_model_forward.1} parent=11 // pred_check
          %p532 = pneg %p82
        $region14: #{deep_model_forward.1} parent=11 // pred_check_branch
          %534 = sbr.rel (%p532) target = $region16
        $region15: #{deep_model_forward.1} parent=11 // pred_region
          _
        $region16: #{deep_model_forward.1} parent=11 // pred_fallthru
          _
        // Predicated region
        $region17: #{deep_model_forward.1} parent=11 // pred_check
          %p535 = pneg %p103
        $region18: #{deep_model_forward.1} parent=11 // pred_check_branch
          %537 = sbr.rel (%p535) target = $region20
        $region19: #{deep_model_forward.1} parent=11 // pred_region
          _
        $region20: #{deep_model_forward.1} parent=11 // pred_fallthru
          _
        // Predicated region
        $region21: #{deep_model_forward.1} parent=11 // pred_check
          %p538 = pneg %p124
        $region22: #{deep_model_forward.1} parent=11 // pred_check_branch
          %540 = sbr.rel (%p538) target = $region24
        $region23: #{deep_model_forward.1} parent=11 // pred_region
          %s542 = ssub.s32 768, 768
          %543 = vsyncadd [#allocation4], %s542
          %s544 = sshll.u32 [#allocation3], 4
          %s545 = int_to_ptr.vmem [resolvable:$true] %s544
          %550 = dma.hbm_to_vmem [thread:$0]  %s3, 768, %s545, [#allocation4], 64, 64, 4
        $region24: #{deep_model_forward.1} parent=11 // pred_fallthru
          _
        // Predicated region
        $region25: #{deep_model_forward.1} parent=11 // pred_check
          %p551 = pneg %p145
        $region26: #{deep_model_forward.1} parent=11 // pred_check_branch
          %553 = sbr.rel (%p551) target = $region28
        $region27: #{deep_model_forward.1} parent=11 // pred_region
          _
        $region28: #{deep_model_forward.1} parent=11 // pred_fallthru
          _
        // Predicated region
        $region29: #{deep_model_forward.1} parent=11 // pred_check
          %p554 = pneg %p166
        $region30: #{deep_model_forward.1} parent=11 // pred_check_branch
          %556 = sbr.rel (%p554) target = $region32
        $region31: #{deep_model_forward.1} parent=11 // pred_region
          _
        $region32: #{deep_model_forward.1} parent=11 // pred_fallthru
          _
        // Predicated region
        $region33: #{deep_model_forward.1} parent=11 // pred_check
          %p557 = pneg %p187
        $region34: #{deep_model_forward.1} parent=11 // pred_check_branch
          %559 = sbr.rel (%p557) target = $region36
        $region35: #{deep_model_forward.1} parent=11 // pred_region
          _
        $region36: #{deep_model_forward.1} parent=11 // pred_fallthru
          _
        // Predicated region
        $region37: #{deep_model_forward.1} parent=11 // pred_check
          %p560 = pneg %p208
        $region38: #{deep_model_forward.1} parent=11 // pred_check_branch
          %562 = sbr.rel (%p560) target = $region40
        $region39: #{deep_model_forward.1} parent=11 // pred_region
          _
        $region40: #{deep_model_forward.1} parent=11 // pred_fallthru
          _
        // Predicated region
        $region41: #{deep_model_forward.1} parent=11 // pred_check
          %p563 = pneg %p229
        $region42: #{deep_model_forward.1} parent=11 // pred_check_branch
          %565 = sbr.rel (%p563) target = $region44
        $region43: #{deep_model_forward.1} parent=11 // pred_region
          _
        $region44: #{deep_model_forward.1} parent=11 // pred_fallthru
          _
        // Predicated region
        $region45: #{deep_model_forward.1} parent=11 // pred_check
          %p566 = pneg %p250
        $region46: #{deep_model_forward.1} parent=11 // pred_check_branch
          %568 = sbr.rel (%p566) target = $region48
        $region47: #{deep_model_forward.1} parent=11 // pred_region
          _
        $region48: #{deep_model_forward.1} parent=11 // pred_fallthru
          _
        // Predicated region
        $region49: #{deep_model_forward.1} parent=11 // pred_check
          %p569 = pneg %p271
        $region50: #{deep_model_forward.1} parent=11 // pred_check_branch
          %571 = sbr.rel (%p569) target = $region52
        $region51: #{deep_model_forward.1} parent=11 // pred_region
          _
        $region52: #{deep_model_forward.1} parent=11 // pred_fallthru
          _
        // Predicated region
        $region53: #{deep_model_forward.1} parent=11 // pred_check
          %p572 = pneg %p292
        $region54: #{deep_model_forward.1} parent=11 // pred_check_branch
          %574 = sbr.rel (%p572) target = $region56
        $region55: #{deep_model_forward.1} parent=11 // pred_region
          _
        $region56: #{deep_model_forward.1} parent=11 // pred_fallthru
          _
        // Predicated region
        $region57: #{deep_model_forward.1} parent=11 // pred_check
          %p575 = pneg %p313
        $region58: #{deep_model_forward.1} parent=11 // pred_check_branch
          %577 = sbr.rel (%p575) target = $region60
        $region59: #{deep_model_forward.1} parent=11 // pred_region
          _
        $region60: #{deep_model_forward.1} parent=11 // pred_fallthru
          _
        // Predicated region
        $region61: #{deep_model_forward.1} parent=11 // pred_check
          %p578 = pneg %p334
        $region62: #{deep_model_forward.1} parent=11 // pred_check_branch
          %580 = sbr.rel (%p578) target = $region64
        $region63: #{deep_model_forward.1} parent=11 // pred_region
          _
        $region64: #{deep_model_forward.1} parent=11 // pred_fallthru
          _
        // Predicated region
        $region65: #{deep_model_forward.1} parent=11 // pred_check
          %p581 = pneg %p355
        $region66: #{deep_model_forward.1} parent=11 // pred_check_branch
          %583 = sbr.rel (%p581) target = $region68
        $region67: #{deep_model_forward.1} parent=11 // pred_region
          _
        $region68: #{deep_model_forward.1} parent=11 // pred_fallthru
          _
        // Predicated region
        $region69: #{deep_model_forward.1} parent=11 // pred_check
          %p584 = pneg %p376
        $region70: #{deep_model_forward.1} parent=11 // pred_check_branch
          %586 = sbr.rel (%p584) target = $region72
        $region71: #{deep_model_forward.1} parent=11 // pred_region
          _
        $region72: #{deep_model_forward.1} parent=11 // pred_fallthru
          _
        // Predicated region
        $region73: #{deep_model_forward.1} parent=11 // pred_check
          %p587 = pneg %p397
        $region74: #{deep_model_forward.1} parent=11 // pred_check_branch
          %589 = sbr.rel (%p587) target = $region76
        $region75: #{deep_model_forward.1} parent=11 // pred_region
          _
        $region76: #{deep_model_forward.1} parent=11 // pred_fallthru
          _
        // Predicated region
        $region77: #{deep_model_forward.1} parent=11 // pred_check
          %p590 = pneg %p418
        $region78: #{deep_model_forward.1} parent=11 // pred_check_branch
          %592 = sbr.rel (%p590) target = $region80
        $region79: #{deep_model_forward.1} parent=11 // pred_region
          %s594 = ssub.s32 512, 512
          %595 = vsyncadd [#allocation7], %s594
          %s596 = sshll.u32 [#allocation6], 4
          %s597 = int_to_ptr.vmem [resolvable:$true] %s596
          %602 = dma.hbm_to_vmem [thread:$0]  %s17, 512, %s597, [#allocation7], 64, 64, 4
        $region80: #{deep_model_forward.1} parent=11 // pred_fallthru
          _
        // Predicated region
        $region81: #{deep_model_forward.1} parent=11 // pred_check
          %p603 = pneg %p439
        $region82: #{deep_model_forward.1} parent=11 // pred_check_branch
          %605 = sbr.rel (%p603) target = $region84
        $region83: #{deep_model_forward.1} parent=11 // pred_region
          _
        $region84: #{deep_model_forward.1} parent=11 // pred_fallthru
          _
      $region12: #{deep_model_forward.1} parent=5 // pred_fallthru
        _
      %p606 = scmp.lt.s32.totalorder %s35, 2
      // Predicated region
      $region85: #{deep_model_forward.1} parent=5 // pred_check
        %p607 = pneg %p606
      $region86: #{deep_model_forward.1} parent=5 // pred_check_branch
        %609 = sbr.rel (%p607) target = $region88
      $region87: #{deep_model_forward.1} parent=5 // pred_region
        // Predicated region
        $region89: #{deep_model_forward.1} parent=87 // pred_check
          %p610 = pneg %p55
        $region90: #{deep_model_forward.1} parent=87 // pred_check_branch
          %612 = sbr.rel (%p610) target = $region92
        $region91: #{deep_model_forward.1} parent=87 // pred_region
          %p613 = scmp.lt.s32.totalorder %s35, 1
          %s614 = scalar_select %p613, %s35, 1
          %s615 = smul.addr %s614, 8
          %s616 = scalar_lea.vmem %s0, %s615
        $region92: #{deep_model_forward.1} parent=87 // pred_fallthru
          _
      $region88: #{deep_model_forward.1} parent=5 // pred_fallthru
        _
      %p617 = scmp.le.s32.totalorder 1, %s35
      %p618 = scmp.lt.s32.totalorder %s35, 3
      %p619 = pnand %p617, %p618
      %p620 = pneg %p619
      // Predicated region
      $region93: #{deep_model_forward.1} parent=5 // pred_check
        _
      $region94: #{deep_model_forward.1} parent=5 // pred_check_branch
        %622 = sbr.rel (%p619) target = $region96
      $region95: #{deep_model_forward.1} parent=5 // pred_region
        %s623 = ssub.s32 %s35, 1
        // Predicated region
        $region97: #{deep_model_forward.1} parent=95 // pred_check
          %p624 = pneg %p124
        $region98: #{deep_model_forward.1} parent=95 // pred_check_branch
          %626 = sbr.rel (%p624) target = $region100
        $region99: #{deep_model_forward.1} parent=95 // pred_region
          %627 = dma.done [#allocation4], 768
        $region100: #{deep_model_forward.1} parent=95 // pred_fallthru
          _
        // Predicated region
        $region101: #{deep_model_forward.1} parent=95 // pred_check
          %p628 = pneg %p418
        $region102: #{deep_model_forward.1} parent=95 // pred_check_branch
          %630 = sbr.rel (%p628) target = $region104
        $region103: #{deep_model_forward.1} parent=95 // pred_region
          %631 = dma.done [#allocation7], 512
        $region104: #{deep_model_forward.1} parent=95 // pred_fallthru
          _
        %p632 = scmp.lt.s32.totalorder %s40, 1
        %s633 = scalar_select %p632, %s40, 1
        %s634 = smul.addr %s633, 8
        %s635 = scalar_lea.vmem %s0, %s634
        %p636 = pneg %p61
        %p637 = pneg %p58
        %p638 = pneg %p82
        %p639 = pneg %p79
        %p640 = pneg %p103
        %p641 = pneg %p100
        %p642 = pneg %p124
        %p643 = pneg %p121
        %p644 = pneg %p145
        %p645 = pneg %p142
        %p646 = pneg %p166
        %p647 = pneg %p163
        %p648 = pneg %p187
        %p649 = pneg %p184
        %p650 = pneg %p208
        %p651 = pneg %p205
        %p652 = pneg %p229
        %p653 = pneg %p226
        %p654 = pneg %p250
        %p655 = pneg %p247
        %p656 = pneg %p271
        %p657 = pneg %p268
        %p658 = pneg %p292
        %p659 = pneg %p289
        %p660 = pneg %p313
        %p661 = pneg %p310
        %p662 = pneg %p334
        %p663 = pneg %p331
        %p664 = pneg %p355
        %p665 = pneg %p352
        %p666 = pneg %p376
        %p667 = pneg %p373
        %p668 = pneg %p397
        %p669 = pneg %p394
        %p670 = pneg %p418
        %p671 = pneg %p415
        %p672 = pneg %p439
        %p673 = pneg %p436
        %p674 = pneg %p465
        %p675 = pneg %p462
        %p676 = scmp.lt.s32.totalorder %s40, 1
        %s677 = scalar_select %p676, %s40, 1
        %s678 = smul.addr %s677, 8
        %s679 = scalar_lea.vmem %s19, %s678
        %p680 = pneg %p491
        %p681 = pneg %p488
        %p682 = scmp.lt.s32.totalorder %s40, 1
        %s683 = scalar_select %p682, %s40, 1
        %s684 = smul.addr %s683, 8
        %s685 = scalar_lea.vmem %s20, %s684
        %p686 = pneg %p517
        %p687 = pneg %p514
        %s688 = sand.u32 %s504, 1
        %s689 = scalar_lea.sflag [#allocation5], %s688
        %s690 = sand.u32 %s504, 1
        %s691 = scalar_lea.vmem [#allocation8], %s690
        %p692 = scmp.lt.s32.totalorder %s40, 1
        %s693 = scalar_select %p692, %s40, 1
        %s694 = smul.addr %s693, 8
        %s695 = scalar_lea.vmem %s0, %s694
        %p696 = scmp.lt.s32.totalorder %s40, 1
        %s697 = scalar_select %p696, %s40, 1
        %s698 = smul.addr %s697, 8
        %s699 = scalar_lea.vmem %s19, %s698
        %p700 = scmp.lt.s32.totalorder %s40, 1
        %s701 = scalar_select %p700, %s40, 1
        %s702 = smul.addr %s701, 8
        %s703 = scalar_lea.vmem %s20, %s702
        %v705 = vld [vmem:[%s695] sm:$0xff]
        %v706 = vld [vmem:[%s1] sm:$0x1]
        %s707 = scalar_lea.vmem %s1, 1
        %v708 = vld [vmem:[%s707] sm:$0x1]
        %s709 = scalar_lea.vmem %s1, 2
        %v710 = vld [vmem:[%s709] sm:$0x1]
        %v711 = vld [vmem:[%s2] sm:$0x1]
        %v713 = vrot.slane %v705, 7
        %714 = vrot.lane.b32.xlu0 %v713, 121
        %v715 = vpop.permute.xlu0 %714
        %vm717 = vcmask 1040384
        %v718 = vsel %vm717, 0.0, %v715
        %720 = vset.pattern.permute.xlu0 0
        %721 = vperm.xlu0 %720, %v718
        %v722 = vpop.permute.xlu0 %721
        %v725 = vlaneseq
        %v726 = vshrl.u32 %v725, 7
        %v727 = vsub.s32 0, %v726
        %v728 = vrot.slane %v706, %v727
        %v730 = vmul.f32 %v722, %v728
        %731 = vset.pattern.permute.xlu0 0
        %732 = vperm.xlu0 %731, %v705
        %v733 = vpop.permute.xlu0 %732
        %v736 = vlaneseq
        %v737 = vshrl.u32 %v736, 7
        %v738 = vsub.s32 0, %v737
        %v739 = vrot.slane %v708, %v738
        %v741 = vmul.f32 %v733, %v739
        %v742 = vadd.f32 %v730, %v741
        %743 = vset.pattern.permute.xlu0 1
        %744 = vperm.xlu0 %743, %v705
        %v745 = vpop.permute.xlu0 %744
        %v748 = vlaneseq
        %v749 = vshrl.u32 %v748, 7
        %v750 = vsub.s32 0, %v749
        %v751 = vrot.slane %v710, %v750
        %v753 = vmul.f32 %v745, %v751
        %v754 = vadd.f32 %v742, %v753
        %v756 = vlaneseq
        %v757 = vshrl.u32 %v756, 7
        %v758 = vsub.s32 0, %v757
        %v759 = vrot.slane %v711, %v758
        %v761 = vadd.f32 %v754, %v759
        %v762 = vmax.f32 %v761, 0.0
        %v763 = vmul.f32 %v745, %v728
        %764 = vset.pattern.permute.xlu0 2
        %765 = vperm.xlu0 %764, %v705
        %v766 = vpop.permute.xlu0 %765
        %v768 = vmul.f32 %v766, %v739
        %v769 = vadd.f32 %v763, %v768
        %770 = vset.pattern.permute.xlu0 3
        %771 = vperm.xlu0 %770, %v705
        %v772 = vpop.permute.xlu0 %771
        %v774 = vmul.f32 %v772, %v751
        %v775 = vadd.f32 %v769, %v774
        %v776 = vadd.f32 %v775, %v759
        %v777 = vmax.f32 %v776, 0.0
        %v778 = vmul.f32 %v772, %v728
        %779 = vset.pattern.permute.xlu0 4
        %780 = vperm.xlu0 %779, %v705
        %v781 = vpop.permute.xlu0 %780
        %v783 = vmul.f32 %v781, %v739
        %v784 = vadd.f32 %v778, %v783
        %785 = vset.pattern.permute.xlu0 5
        %786 = vperm.xlu0 %785, %v705
        %v787 = vpop.permute.xlu0 %786
        %v789 = vmul.f32 %v787, %v751
        %v790 = vadd.f32 %v784, %v789
        %v791 = vadd.f32 %v790, %v759
        %v792 = vmax.f32 %v791, 0.0
        %v793 = vmul.f32 %v787, %v728
        %794 = vset.pattern.permute.xlu0 6
        %795 = vperm.xlu0 %794, %v705
        %v796 = vpop.permute.xlu0 %795
        %v798 = vmul.f32 %v796, %v739
        %v799 = vadd.f32 %v793, %v798
        %800 = vset.pattern.permute.xlu0 7
        %801 = vperm.xlu0 %800, %v705
        %v802 = vpop.permute.xlu0 %801
        %v804 = vmul.f32 %v802, %v751
        %v805 = vadd.f32 %v799, %v804
        %v806 = vadd.f32 %v805, %v759
        %v807 = vmax.f32 %v806, 0.0
        %v808 = vld [vmem:[#allocation3] sm:$0xf]
        %v809 = vld [vmem:[#allocation3 + $0x4] sm:$0xf]
        %v810 = vld [vmem:[#allocation3 + $0x8] sm:$0xf]
        %v811 = vld [vmem:[#allocation3 + $0xc] sm:$0xf]
        %s812 = scalar_lea.vmem [#allocation3], 16
        %v813 = vld [vmem:[%s812] sm:$0xf]
        %v814 = vld [vmem:[%s812 + $0x4] sm:$0xf]
        %v815 = vld [vmem:[%s812 + $0x8] sm:$0xf]
        %v816 = vld [vmem:[%s812 + $0xc] sm:$0xf]
        %s817 = scalar_lea.vmem [#allocation3], 32
        %v818 = vld [vmem:[%s817] sm:$0xf]
        %v819 = vld [vmem:[%s817 + $0x4] sm:$0xf]
        %v820 = vld [vmem:[%s817 + $0x8] sm:$0xf]
        %v821 = vld [vmem:[%s817 + $0xc] sm:$0xf]
        %v822 = vld [vmem:[%s4] sm:$0x1]
        %v824 = vrot.slane %v807, 7
        %v826 = vsel %vm717, 0.0, %v824
        %v827 = vpack.c.bf16 %v826, %v826
        %v828 = vpack.c.bf16 %v762, %v762
        %v833 = vunpack.c.l.b16 %v813
        %v834 = vunpack.c.l.b16 %v814
        %v835 = vunpack.c.l.b16 %v815
        %v836 = vunpack.c.l.b16 %v816
        %v837 = vpack.c.b16 %v834, %v833
        %v838 = vpack.c.b16 %v836, %v835
        %vm841 = vcmask 261120
        %v843 = vsel %vm841, %v828, 0
        %845 = vmatprep.subr.bf16.mxu0 0
        %846 = vmatpush1.bf16.msra.mxu0 %v837
        %847 = vmatprep.subr.bf16.mxu0 0
        %848 = vmatpush1.bf16.msra.mxu0 %v838
        %849 = vmatprep.subr.bf16.mxu0 0
        %850 = vmatpush1.bf16.msra.mxu0 0
        %851 = vmatprep.subr.bf16.mxu0 0
        %852 = vmatpush1.bf16.msra.mxu0 0
        %853 = vmatprep.subr.bf16.mxu0 0
        %854 = vmatpush1.bf16.msra.mxu0 0
        %855 = vmatprep.subr.bf16.mxu0 0
        %856 = vmatpush1.bf16.msra.mxu0 0
        %857 = vmatprep.subr.bf16.mxu0 0
        %858 = vmatpush1.bf16.msra.mxu0 0
        %859 = vmatprep.subr.bf16.mxu0 0
        %860 = vmatpush1.bf16.msra.mxu0 0
        %861 = vmatprep.subr.bf16.mxu0 0
        %862 = vmatpush1.bf16.msra.mxu0 0
        %863 = vmatprep.subr.bf16.mxu0 0
        %864 = vmatpush1.bf16.msra.mxu0 0
        %865 = vmatprep.subr.bf16.mxu0 0
        %866 = vmatpush1.bf16.msra.mxu0 0
        %867 = vmatprep.subr.bf16.mxu0 0
        %868 = vmatpush1.bf16.msra.mxu0 0
        %869 = vmatprep.subr.bf16.mxu0 0
        %870 = vmatpush1.bf16.msra.mxu0 0
        %871 = vmatprep.subr.bf16.mxu0 0
        %872 = vmatpush1.bf16.msra.mxu0 0
        %873 = vmatprep.subr.bf16.mxu0 0
        %874 = vmatpush1.bf16.msra.mxu0 0
        %875 = vmatprep.subr.bf16.mxu0 0
        %876 = vmatpush1.bf16.msra.mxu0 0
        %877 = vmatprep.mubr.bf16.mxu0 0
        %878 = vmatmul.mubr.bf16.gmra.mrb[0].mxu0 %v843
        %v879 = vpop.f32.mrb[0].mxu0
        %v880 = vadd.f32 0.0, %v879
        %v881 = vpop.f32.mrb[0].mxu0
        %v882 = vpop.f32.mrb[0].mxu0
        %v883 = vpop.f32.mrb[0].mxu0
        %884 = vdwg.mxu0
        %v889 = vunpack.c.l.b16 %v808
        %v890 = vunpack.c.l.b16 %v809
        %v891 = vunpack.c.l.b16 %v810
        %v892 = vunpack.c.l.b16 %v811
        %v893 = vpack.c.b16 %v890, %v889
        %v894 = vpack.c.b16 %v892, %v891
        %v898 = vsel %vm841, %v827, 0
        %900 = vmatprep.subr.bf16.mxu0 0
        %901 = vmatpush1.bf16.msra.mxu0 %v893
        %902 = vmatprep.subr.bf16.mxu0 0
        %903 = vmatpush1.bf16.msra.mxu0 %v894
        %904 = vmatprep.subr.bf16.mxu0 0
        %905 = vmatpush1.bf16.msra.mxu0 0
        %906 = vmatprep.subr.bf16.mxu0 0
        %907 = vmatpush1.bf16.msra.mxu0 0
        %908 = vmatprep.subr.bf16.mxu0 0
        %909 = vmatpush1.bf16.msra.mxu0 0
        %910 = vmatprep.subr.bf16.mxu0 0
        %911 = vmatpush1.bf16.msra.mxu0 0
        %912 = vmatprep.subr.bf16.mxu0 0
        %913 = vmatpush1.bf16.msra.mxu0 0
        %914 = vmatprep.subr.bf16.mxu0 0
        %915 = vmatpush1.bf16.msra.mxu0 0
        %916 = vmatprep.subr.bf16.mxu0 0
        %917 = vmatpush1.bf16.msra.mxu0 0
        %918 = vmatprep.subr.bf16.mxu0 0
        %919 = vmatpush1.bf16.msra.mxu0 0
        %920 = vmatprep.subr.bf16.mxu0 0
        %921 = vmatpush1.bf16.msra.mxu0 0
        %922 = vmatprep.subr.bf16.mxu0 0
        %923 = vmatpush1.bf16.msra.mxu0 0
        %924 = vmatprep.subr.bf16.mxu0 0
        %925 = vmatpush1.bf16.msra.mxu0 0
        %926 = vmatprep.subr.bf16.mxu0 0
        %927 = vmatpush1.bf16.msra.mxu0 0
        %928 = vmatprep.subr.bf16.mxu0 0
        %929 = vmatpush1.bf16.msra.mxu0 0
        %930 = vmatprep.subr.bf16.mxu0 0
        %931 = vmatpush1.bf16.msra.mxu0 0
        %932 = vmatprep.mubr.bf16.mxu0 0
        %933 = vmatmul.mubr.bf16.gmra.mrb[0].mxu0 %v898
        %v934 = vpop.f32.mrb[0].mxu0
        %v935 = vadd.f32 %v880, %v934
        %v936 = vpop.f32.mrb[0].mxu0
        %v937 = vpop.f32.mrb[0].mxu0
        %v938 = vpop.f32.mrb[0].mxu0
        %939 = vdwg.mxu0
        %v940 = vpack.c.bf16 %v777, %v777
        %v945 = vunpack.c.l.b16 %v818
        %v946 = vunpack.c.l.b16 %v819
        %v947 = vunpack.c.l.b16 %v820
        %v948 = vunpack.c.l.b16 %v821
        %v949 = vpack.c.b16 %v946, %v945
        %v950 = vpack.c.b16 %v948, %v947
        %v954 = vsel %vm841, %v940, 0
        %956 = vmatprep.subr.bf16.mxu0 0
        %957 = vmatpush1.bf16.msra.mxu0 %v949
        %958 = vmatprep.subr.bf16.mxu0 0
        %959 = vmatpush1.bf16.msra.mxu0 %v950
        %960 = vmatprep.subr.bf16.mxu0 0
        %961 = vmatpush1.bf16.msra.mxu0 0
        %962 = vmatprep.subr.bf16.mxu0 0
        %963 = vmatpush1.bf16.msra.mxu0 0
        %964 = vmatprep.subr.bf16.mxu0 0
        %965 = vmatpush1.bf16.msra.mxu0 0
        %966 = vmatprep.subr.bf16.mxu0 0
        %967 = vmatpush1.bf16.msra.mxu0 0
        %968 = vmatprep.subr.bf16.mxu0 0
        %969 = vmatpush1.bf16.msra.mxu0 0
        %970 = vmatprep.subr.bf16.mxu0 0
        %971 = vmatpush1.bf16.msra.mxu0 0
        %972 = vmatprep.subr.bf16.mxu0 0
        %973 = vmatpush1.bf16.msra.mxu0 0
        %974 = vmatprep.subr.bf16.mxu0 0
        %975 = vmatpush1.bf16.msra.mxu0 0
        %976 = vmatprep.subr.bf16.mxu0 0
        %977 = vmatpush1.bf16.msra.mxu0 0
        %978 = vmatprep.subr.bf16.mxu0 0
        %979 = vmatpush1.bf16.msra.mxu0 0
        %980 = vmatprep.subr.bf16.mxu0 0
        %981 = vmatpush1.bf16.msra.mxu0 0
        %982 = vmatprep.subr.bf16.mxu0 0
        %983 = vmatpush1.bf16.msra.mxu0 0
        %984 = vmatprep.subr.bf16.mxu0 0
        %985 = vmatpush1.bf16.msra.mxu0 0
        %986 = vmatprep.subr.bf16.mxu0 0
        %987 = vmatpush1.bf16.msra.mxu0 0
        %988 = vmatprep.mubr.bf16.mxu0 0
        %989 = vmatmul.mubr.bf16.gmra.mrb[0].mxu0 %v954
        %v990 = vpop.f32.mrb[0].mxu0
        %v991 = vadd.f32 0.0, %v990
        %v992 = vpop.f32.mrb[0].mxu0
        %v993 = vpop.f32.mrb[0].mxu0
        %v994 = vpop.f32.mrb[0].mxu0
        %995 = vdwg.mxu0
        %v996 = vadd.f32 %v935, %v991
        %v998 = vlaneseq
        %v999 = vshrl.u32 %v998, 7
        %v1000 = vsub.s32 0, %v999
        %v1001 = vrot.slane %v822, %v1000
        %v1003 = vadd.f32 %v996, %v1001
        %v1004 = vmax.f32 %v1003, 0.0
        %v1005 = vpack.c.bf16 %v792, %v792
        %v1007 = vsel %vm841, %v1005, 0
        %1009 = vmatprep.subr.bf16.mxu0 0
        %1010 = vmatpush1.bf16.msra.mxu0 %v837
        %1011 = vmatprep.subr.bf16.mxu0 0
        %1012 = vmatpush1.bf16.msra.mxu0 %v838
        %1013 = vmatprep.subr.bf16.mxu0 0
        %1014 = vmatpush1.bf16.msra.mxu0 0
        %1015 = vmatprep.subr.bf16.mxu0 0
        %1016 = vmatpush1.bf16.msra.mxu0 0
        %1017 = vmatprep.subr.bf16.mxu0 0
        %1018 = vmatpush1.bf16.msra.mxu0 0
        %1019 = vmatprep.subr.bf16.mxu0 0
        %1020 = vmatpush1.bf16.msra.mxu0 0
        %1021 = vmatprep.subr.bf16.mxu0 0
        %1022 = vmatpush1.bf16.msra.mxu0 0
        %1023 = vmatprep.subr.bf16.mxu0 0
        %1024 = vmatpush1.bf16.msra.mxu0 0
        %1025 = vmatprep.subr.bf16.mxu0 0
        %1026 = vmatpush1.bf16.msra.mxu0 0
        %1027 = vmatprep.subr.bf16.mxu0 0
        %1028 = vmatpush1.bf16.msra.mxu0 0
        %1029 = vmatprep.subr.bf16.mxu0 0
        %1030 = vmatpush1.bf16.msra.mxu0 0
        %1031 = vmatprep.subr.bf16.mxu0 0
        %1032 = vmatpush1.bf16.msra.mxu0 0
        %1033 = vmatprep.subr.bf16.mxu0 0
        %1034 = vmatpush1.bf16.msra.mxu0 0
        %1035 = vmatprep.subr.bf16.mxu0 0
        %1036 = vmatpush1.bf16.msra.mxu0 0
        %1037 = vmatprep.subr.bf16.mxu0 0
        %1038 = vmatpush1.bf16.msra.mxu0 0
        %1039 = vmatprep.subr.bf16.mxu0 0
        %1040 = vmatpush1.bf16.msra.mxu0 0
        %1041 = vmatprep.mubr.bf16.mxu0 0
        %1042 = vmatmul.mubr.bf16.gmra.mrb[0].mxu0 %v1007
        %v1043 = vpop.f32.mrb[0].mxu0
        %v1044 = vadd.f32 0.0, %v1043
        %v1045 = vpop.f32.mrb[0].mxu0
        %v1046 = vpop.f32.mrb[0].mxu0
        %v1047 = vpop.f32.mrb[0].mxu0
        %1048 = vdwg.mxu0
        %1049 = vmatprep.subr.bf16.mxu0 0
        %1050 = vmatpush1.bf16.msra.mxu0 %v893
        %1051 = vmatprep.subr.bf16.mxu0 0
        %1052 = vmatpush1.bf16.msra.mxu0 %v894
        %1053 = vmatprep.subr.bf16.mxu0 0
        %1054 = vmatpush1.bf16.msra.mxu0 0
        %1055 = vmatprep.subr.bf16.mxu0 0
        %1056 = vmatpush1.bf16.msra.mxu0 0
        %1057 = vmatprep.subr.bf16.mxu0 0
        %1058 = vmatpush1.bf16.msra.mxu0 0
        %1059 = vmatprep.subr.bf16.mxu0 0
        %1060 = vmatpush1.bf16.msra.mxu0 0
        %1061 = vmatprep.subr.bf16.mxu0 0
        %1062 = vmatpush1.bf16.msra.mxu0 0
        %1063 = vmatprep.subr.bf16.mxu0 0
        %1064 = vmatpush1.bf16.msra.mxu0 0
        %1065 = vmatprep.subr.bf16.mxu0 0
        %1066 = vmatpush1.bf16.msra.mxu0 0
        %1067 = vmatprep.subr.bf16.mxu0 0
        %1068 = vmatpush1.bf16.msra.mxu0 0
        %1069 = vmatprep.subr.bf16.mxu0 0
        %1070 = vmatpush1.bf16.msra.mxu0 0
        %1071 = vmatprep.subr.bf16.mxu0 0
        %1072 = vmatpush1.bf16.msra.mxu0 0
        %1073 = vmatprep.subr.bf16.mxu0 0
        %1074 = vmatpush1.bf16.msra.mxu0 0
        %1075 = vmatprep.subr.bf16.mxu0 0
        %1076 = vmatpush1.bf16.msra.mxu0 0
        %1077 = vmatprep.subr.bf16.mxu0 0
        %1078 = vmatpush1.bf16.msra.mxu0 0
        %1079 = vmatprep.subr.bf16.mxu0 0
        %1080 = vmatpush1.bf16.msra.mxu0 0
        %1081 = vmatprep.mubr.bf16.mxu0 0
        %1082 = vmatmul.mubr.bf16.gmra.mrb[0].mxu0 %v954
        %v1083 = vpop.f32.mrb[0].mxu0
        %v1084 = vadd.f32 %v1044, %v1083
        %v1085 = vpop.f32.mrb[0].mxu0
        %v1086 = vpop.f32.mrb[0].mxu0
        %v1087 = vpop.f32.mrb[0].mxu0
        %1088 = vdwg.mxu0
        %v1089 = vpack.c.bf16 %v807, %v807
        %v1091 = vsel %vm841, %v1089, 0
        %1093 = vmatprep.subr.bf16.mxu0 0
        %1094 = vmatpush1.bf16.msra.mxu0 %v949
        %1095 = vmatprep.subr.bf16.mxu0 0
        %1096 = vmatpush1.bf16.msra.mxu0 %v950
        %1097 = vmatprep.subr.bf16.mxu0 0
        %1098 = vmatpush1.bf16.msra.mxu0 0
        %1099 = vmatprep.subr.bf16.mxu0 0
        %1100 = vmatpush1.bf16.msra.mxu0 0
        %1101 = vmatprep.subr.bf16.mxu0 0
        %1102 = vmatpush1.bf16.msra.mxu0 0
        %1103 = vmatprep.subr.bf16.mxu0 0
        %1104 = vmatpush1.bf16.msra.mxu0 0
        %1105 = vmatprep.subr.bf16.mxu0 0
        %1106 = vmatpush1.bf16.msra.mxu0 0
        %1107 = vmatprep.subr.bf16.mxu0 0
        %1108 = vmatpush1.bf16.msra.mxu0 0
        %1109 = vmatprep.subr.bf16.mxu0 0
        %1110 = vmatpush1.bf16.msra.mxu0 0
        %1111 = vmatprep.subr.bf16.mxu0 0
        %1112 = vmatpush1.bf16.msra.mxu0 0
        %1113 = vmatprep.subr.bf16.mxu0 0
        %1114 = vmatpush1.bf16.msra.mxu0 0
        %1115 = vmatprep.subr.bf16.mxu0 0
        %1116 = vmatpush1.bf16.msra.mxu0 0
        %1117 = vmatprep.subr.bf16.mxu0 0
        %1118 = vmatpush1.bf16.msra.mxu0 0
        %1119 = vmatprep.subr.bf16.mxu0 0
        %1120 = vmatpush1.bf16.msra.mxu0 0
        %1121 = vmatprep.subr.bf16.mxu0 0
        %1122 = vmatpush1.bf16.msra.mxu0 0
        %1123 = vmatprep.subr.bf16.mxu0 0
        %1124 = vmatpush1.bf16.msra.mxu0 0
        %1125 = vmatprep.mubr.bf16.mxu0 0
        %1126 = vmatmul.mubr.bf16.gmra.mrb[0].mxu0 %v1091
        %v1127 = vpop.f32.mrb[0].mxu0
        %v1128 = vadd.f32 0.0, %v1127
        %v1129 = vpop.f32.mrb[0].mxu0
        %v1130 = vpop.f32.mrb[0].mxu0
        %v1131 = vpop.f32.mrb[0].mxu0
        %1132 = vdwg.mxu0
        %v1133 = vadd.f32 %v1084, %v1128
        %v1134 = vadd.f32 %v1133, %v1001
        %v1135 = vmax.f32 %v1134, 0.0
        %v1136 = vld [vmem:[%s5] sm:$0xf]
        %v1137 = vld [vmem:[%s5 + $0x4] sm:$0xf]
        %v1138 = vld [vmem:[%s5 + $0x8] sm:$0xf]
        %v1139 = vld [vmem:[%s5 + $0xc] sm:$0xf]
        %v1140 = vld [vmem:[%s5 + $0x10] sm:$0xf]
        %v1141 = vld [vmem:[%s5 + $0x14] sm:$0xf]
        %v1142 = vld [vmem:[%s5 + $0x18] sm:$0xf]
        %v1143 = vld [vmem:[%s5 + $0x1c] sm:$0xf]
        %s1144 = scalar_lea.vmem %s5, 32
        %v1145 = vld [vmem:[%s1144] sm:$0xf]
        %v1146 = vld [vmem:[%s1144 + $0x4] sm:$0xf]
        %v1147 = vld [vmem:[%s1144 + $0x8] sm:$0xf]
        %v1148 = vld [vmem:[%s1144 + $0xc] sm:$0xf]
        %v1149 = vld [vmem:[%s1144 + $0x10] sm:$0xf]
        %v1150 = vld [vmem:[%s1144 + $0x14] sm:$0xf]
        %v1151 = vld [vmem:[%s1144 + $0x18] sm:$0xf]
        %v1152 = vld [vmem:[%s1144 + $0x1c] sm:$0xf]
        %s1153 = scalar_lea.vmem %s5, 64
        %v1154 = vld [vmem:[%s1153] sm:$0xf]
        %v1155 = vld [vmem:[%s1153 + $0x4] sm:$0xf]
        %v1156 = vld [vmem:[%s1153 + $0x8] sm:$0xf]
        %v1157 = vld [vmem:[%s1153 + $0xc] sm:$0xf]
        %v1158 = vld [vmem:[%s1153 + $0x10] sm:$0xf]
        %v1159 = vld [vmem:[%s1153 + $0x14] sm:$0xf]
        %v1160 = vld [vmem:[%s1153 + $0x18] sm:$0xf]
        %v1161 = vld [vmem:[%s1153 + $0x1c] sm:$0xf]
        %v1162 = vld [vmem:[%s6] sm:$0x1]
        %v1164 = vrot.slane %v1135, 7
        %v1166 = vsel %vm717, 0.0, %v1164
        %v1167 = vpack.c.bf16 %v1166, %v1166
        %v1168 = vpack.c.bf16 %v1004, %v1004
        %v1177 = vunpack.c.l.b16 %v1145
        %v1178 = vunpack.c.l.b16 %v1146
        %v1179 = vunpack.c.l.b16 %v1147
        %v1180 = vunpack.c.l.b16 %v1148
        %v1181 = vunpack.c.l.b16 %v1149
        %v1182 = vunpack.c.l.b16 %v1150
        %v1183 = vunpack.c.l.b16 %v1151
        %v1184 = vunpack.c.l.b16 %v1152
        %v1185 = vpack.c.b16 %v1178, %v1177
        %v1186 = vpack.c.b16 %v1180, %v1179
        %v1187 = vpack.c.b16 %v1182, %v1181
        %v1188 = vpack.c.b16 %v1184, %v1183
        %vm1193 = vcmask 523264
        %v1195 = vsel %vm1193, %v1168, 0
        %1197 = vmatprep.subr.bf16.mxu0 0
        %1198 = vmatpush1.bf16.msra.mxu0 %v1185
        %1199 = vmatprep.subr.bf16.mxu0 0
        %1200 = vmatpush1.bf16.msra.mxu0 %v1186
        %1201 = vmatprep.subr.bf16.mxu0 0
        %1202 = vmatpush1.bf16.msra.mxu0 %v1187
        %1203 = vmatprep.subr.bf16.mxu0 0
        %1204 = vmatpush1.bf16.msra.mxu0 %v1188
        %1205 = vmatprep.subr.bf16.mxu0 0
        %1206 = vmatpush1.bf16.msra.mxu0 0
        %1207 = vmatprep.subr.bf16.mxu0 0
        %1208 = vmatpush1.bf16.msra.mxu0 0
        %1209 = vmatprep.subr.bf16.mxu0 0
        %1210 = vmatpush1.bf16.msra.mxu0 0
        %1211 = vmatprep.subr.bf16.mxu0 0
        %1212 = vmatpush1.bf16.msra.mxu0 0
        %1213 = vmatprep.subr.bf16.mxu0 0
        %1214 = vmatpush1.bf16.msra.mxu0 0
        %1215 = vmatprep.subr.bf16.mxu0 0
        %1216 = vmatpush1.bf16.msra.mxu0 0
        %1217 = vmatprep.subr.bf16.mxu0 0
        %1218 = vmatpush1.bf16.msra.mxu0 0
        %1219 = vmatprep.subr.bf16.mxu0 0
        %1220 = vmatpush1.bf16.msra.mxu0 0
        %1221 = vmatprep.subr.bf16.mxu0 0
        %1222 = vmatpush1.bf16.msra.mxu0 0
        %1223 = vmatprep.subr.bf16.mxu0 0
        %1224 = vmatpush1.bf16.msra.mxu0 0
        %1225 = vmatprep.subr.bf16.mxu0 0
        %1226 = vmatpush1.bf16.msra.mxu0 0
        %1227 = vmatprep.subr.bf16.mxu0 0
        %1228 = vmatpush1.bf16.msra.mxu0 0
        %1229 = vmatprep.mubr.bf16.mxu0 0
        %1230 = vmatmul.mubr.bf16.gmra.mrb[0].mxu0 %v1195
        %v1231 = vpop.f32.mrb[0].mxu0
        %v1232 = vadd.f32 0.0, %v1231
        %v1233 = vpop.f32.mrb[0].mxu0
        %v1234 = vpop.f32.mrb[0].mxu0
        %v1235 = vpop.f32.mrb[0].mxu0
        %1236 = vdwg.mxu0
        %v1245 = vunpack.c.l.b16 %v1136
        %v1246 = vunpack.c.l.b16 %v1137
        %v1247 = vunpack.c.l.b16 %v1138
        %v1248 = vunpack.c.l.b16 %v1139
        %v1249 = vunpack.c.l.b16 %v1140
        %v1250 = vunpack.c.l.b16 %v1141
        %v1251 = vunpack.c.l.b16 %v1142
        %v1252 = vunpack.c.l.b16 %v1143
        %v1253 = vpack.c.b16 %v1246, %v1245
        %v1254 = vpack.c.b16 %v1248, %v1247
        %v1255 = vpack.c.b16 %v1250, %v1249
        %v1256 = vpack.c.b16 %v1252, %v1251
        %v1262 = vsel %vm1193, %v1167, 0
        %1264 = vmatprep.subr.bf16.mxu0 0
        %1265 = vmatpush1.bf16.msra.mxu0 %v1253
        %1266 = vmatprep.subr.bf16.mxu0 0
        %1267 = vmatpush1.bf16.msra.mxu0 %v1254
        %1268 = vmatprep.subr.bf16.mxu0 0
        %1269 = vmatpush1.bf16.msra.mxu0 %v1255
        %1270 = vmatprep.subr.bf16.mxu0 0
        %1271 = vmatpush1.bf16.msra.mxu0 %v1256
        %1272 = vmatprep.subr.bf16.mxu0 0
        %1273 = vmatpush1.bf16.msra.mxu0 0
        %1274 = vmatprep.subr.bf16.mxu0 0
        %1275 = vmatpush1.bf16.msra.mxu0 0
        %1276 = vmatprep.subr.bf16.mxu0 0
        %1277 = vmatpush1.bf16.msra.mxu0 0
        %1278 = vmatprep.subr.bf16.mxu0 0
        %1279 = vmatpush1.bf16.msra.mxu0 0
        %1280 = vmatprep.subr.bf16.mxu0 0
        %1281 = vmatpush1.bf16.msra.mxu0 0
        %1282 = vmatprep.subr.bf16.mxu0 0
        %1283 = vmatpush1.bf16.msra.mxu0 0
        %1284 = vmatprep.subr.bf16.mxu0 0
        %1285 = vmatpush1.bf16.msra.mxu0 0
        %1286 = vmatprep.subr.bf16.mxu0 0
        %1287 = vmatpush1.bf16.msra.mxu0 0
        %1288 = vmatprep.subr.bf16.mxu0 0
        %1289 = vmatpush1.bf16.msra.mxu0 0
        %1290 = vmatprep.subr.bf16.mxu0 0
        %1291 = vmatpush1.bf16.msra.mxu0 0
        %1292 = vmatprep.subr.bf16.mxu0 0
        %1293 = vmatpush1.bf16.msra.mxu0 0
        %1294 = vmatprep.subr.bf16.mxu0 0
        %1295 = vmatpush1.bf16.msra.mxu0 0
        %1296 = vmatprep.mubr.bf16.mxu0 0
        %1297 = vmatmul.mubr.bf16.gmra.mrb[0].mxu0 %v1262
        %v1298 = vpop.f32.mrb[0].mxu0
        %v1299 = vadd.f32 %v1232, %v1298
        %v1300 = vpop.f32.mrb[0].mxu0
        %v1301 = vpop.f32.mrb[0].mxu0
        %v1302 = vpop.f32.mrb[0].mxu0
        %1303 = vdwg.mxu0
        %v1304 = vpack.c.bf16 %v1135, %v1135
        %v1313 = vunpack.c.l.b16 %v1154
        %v1314 = vunpack.c.l.b16 %v1155
        %v1315 = vunpack.c.l.b16 %v1156
        %v1316 = vunpack.c.l.b16 %v1157
        %v1317 = vunpack.c.l.b16 %v1158
        %v1318 = vunpack.c.l.b16 %v1159
        %v1319 = vunpack.c.l.b16 %v1160
        %v1320 = vunpack.c.l.b16 %v1161
        %v1321 = vpack.c.b16 %v1314, %v1313
        %v1322 = vpack.c.b16 %v1316, %v1315
        %v1323 = vpack.c.b16 %v1318, %v1317
        %v1324 = vpack.c.b16 %v1320, %v1319
        %v1330 = vsel %vm1193, %v1304, 0
        %1332 = vmatprep.subr.bf16.mxu0 0
        %1333 = vmatpush1.bf16.msra.mxu0 %v1321
        %1334 = vmatprep.subr.bf16.mxu0 0
        %1335 = vmatpush1.bf16.msra.mxu0 %v1322
        %1336 = vmatprep.subr.bf16.mxu0 0
        %1337 = vmatpush1.bf16.msra.mxu0 %v1323
        %1338 = vmatprep.subr.bf16.mxu0 0
        %1339 = vmatpush1.bf16.msra.mxu0 %v1324
        %1340 = vmatprep.subr.bf16.mxu0 0
        %1341 = vmatpush1.bf16.msra.mxu0 0
        %1342 = vmatprep.subr.bf16.mxu0 0
        %1343 = vmatpush1.bf16.msra.mxu0 0
        %1344 = vmatprep.subr.bf16.mxu0 0
        %1345 = vmatpush1.bf16.msra.mxu0 0
        %1346 = vmatprep.subr.bf16.mxu0 0
        %1347 = vmatpush1.bf16.msra.mxu0 0
        %1348 = vmatprep.subr.bf16.mxu0 0
        %1349 = vmatpush1.bf16.msra.mxu0 0
        %1350 = vmatprep.subr.bf16.mxu0 0
        %1351 = vmatpush1.bf16.msra.mxu0 0
        %1352 = vmatprep.subr.bf16.mxu0 0
        %1353 = vmatpush1.bf16.msra.mxu0 0
        %1354 = vmatprep.subr.bf16.mxu0 0
        %1355 = vmatpush1.bf16.msra.mxu0 0
        %1356 = vmatprep.subr.bf16.mxu0 0
        %1357 = vmatpush1.bf16.msra.mxu0 0
        %1358 = vmatprep.subr.bf16.mxu0 0
        %1359 = vmatpush1.bf16.msra.mxu0 0
        %1360 = vmatprep.subr.bf16.mxu0 0
        %1361 = vmatpush1.bf16.msra.mxu0 0
        %1362 = vmatprep.subr.bf16.mxu0 0
        %1363 = vmatpush1.bf16.msra.mxu0 0
        %1364 = vmatprep.mubr.bf16.mxu0 0
        %1365 = vmatmul.mubr.bf16.gmra.mrb[0].mxu0 %v1330
        %v1366 = vpop.f32.mrb[0].mxu0
        %v1367 = vadd.f32 0.0, %v1366
        %v1368 = vpop.f32.mrb[0].mxu0
        %v1369 = vpop.f32.mrb[0].mxu0
        %v1370 = vpop.f32.mrb[0].mxu0
        %1371 = vdwg.mxu0
        %v1372 = vadd.f32 %v1299, %v1367
        %v1374 = vlaneseq
        %v1375 = vshrl.u32 %v1374, 7
        %v1376 = vsub.s32 0, %v1375
        %v1377 = vrot.slane %v1162, %v1376
        %v1379 = vadd.f32 %v1372, %v1377
        %v1380 = vmax.f32 %v1379, 0.0
        %1381 = vst [vmem:[%s699] sm:$0xff] %v1380
        %v1382 = vld [vmem:[%s7] sm:$0xf]
        %v1383 = vld [vmem:[%s7 + $0x4] sm:$0xf]
        %v1384 = vld [vmem:[%s7 + $0x8] sm:$0xf]
        %v1385 = vld [vmem:[%s7 + $0xc] sm:$0xf]
        %v1386 = vld [vmem:[%s7 + $0x10] sm:$0xf]
        %v1387 = vld [vmem:[%s7 + $0x14] sm:$0xf]
        %v1388 = vld [vmem:[%s7 + $0x18] sm:$0xf]
        %v1389 = vld [vmem:[%s7 + $0x1c] sm:$0xf]
        %v1390 = vld [vmem:[%s7 + $0x20] sm:$0xf]
        %v1391 = vld [vmem:[%s7 + $0x24] sm:$0xf]
        %v1392 = vld [vmem:[%s7 + $0x28] sm:$0xf]
        %v1393 = vld [vmem:[%s7 + $0x2c] sm:$0xf]
        %v1394 = vld [vmem:[%s7 + $0x30] sm:$0xf]
        %v1395 = vld [vmem:[%s7 + $0x34] sm:$0xf]
        %v1396 = vld [vmem:[%s7 + $0x38] sm:$0xf]
        %v1397 = vld [vmem:[%s7 + $0x3c] sm:$0xf]
        %s1398 = scalar_lea.vmem %s7, 64
        %v1399 = vld [vmem:[%s1398] sm:$0xf]
        %v1400 = vld [vmem:[%s1398 + $0x4] sm:$0xf]
        %v1401 = vld [vmem:[%s1398 + $0x8] sm:$0xf]
        %v1402 = vld [vmem:[%s1398 + $0xc] sm:$0xf]
        %v1403 = vld [vmem:[%s1398 + $0x10] sm:$0xf]
        %v1404 = vld [vmem:[%s1398 + $0x14] sm:$0xf]
        %v1405 = vld [vmem:[%s1398 + $0x18] sm:$0xf]
        %v1406 = vld [vmem:[%s1398 + $0x1c] sm:$0xf]
        %v1407 = vld [vmem:[%s1398 + $0x20] sm:$0xf]
        %v1408 = vld [vmem:[%s1398 + $0x24] sm:$0xf]
        %v1409 = vld [vmem:[%s1398 + $0x28] sm:$0xf]
        %v1410 = vld [vmem:[%s1398 + $0x2c] sm:$0xf]
        %v1411 = vld [vmem:[%s1398 + $0x30] sm:$0xf]
        %v1412 = vld [vmem:[%s1398 + $0x34] sm:$0xf]
        %v1413 = vld [vmem:[%s1398 + $0x38] sm:$0xf]
        %v1414 = vld [vmem:[%s1398 + $0x3c] sm:$0xf]
        %s1415 = scalar_lea.vmem %s7, 128
        %v1416 = vld [vmem:[%s1415] sm:$0xf]
        %v1417 = vld [vmem:[%s1415 + $0x4] sm:$0xf]
        %v1418 = vld [vmem:[%s1415 + $0x8] sm:$0xf]
        %v1419 = vld [vmem:[%s1415 + $0xc] sm:$0xf]
        %v1420 = vld [vmem:[%s1415 + $0x10] sm:$0xf]
        %v1421 = vld [vmem:[%s1415 + $0x14] sm:$0xf]
        %v1422 = vld [vmem:[%s1415 + $0x18] sm:$0xf]
        %v1423 = vld [vmem:[%s1415 + $0x1c] sm:$0xf]
        %v1424 = vld [vmem:[%s1415 + $0x20] sm:$0xf]
        %v1425 = vld [vmem:[%s1415 + $0x24] sm:$0xf]
        %v1426 = vld [vmem:[%s1415 + $0x28] sm:$0xf]
        %v1427 = vld [vmem:[%s1415 + $0x2c] sm:$0xf]
        %v1428 = vld [vmem:[%s1415 + $0x30] sm:$0xf]
        %v1429 = vld [vmem:[%s1415 + $0x34] sm:$0xf]
        %v1430 = vld [vmem:[%s1415 + $0x38] sm:$0xf]
        %v1431 = vld [vmem:[%s1415 + $0x3c] sm:$0xf]
        %v1432 = vld [vmem:[%s8] sm:$0x1]
        %v1433 = vpack.c.bf16 %v1380, %v1380
        %v1435 = vlaneseq
        %v1436 = vshrl.u32 %v1435, 7
        %v1437 = vsub.s32 0, %v1436
        %v1438 = vrot.slane %v1432, %v1437
        %v1456 = vunpack.c.l.b16 %v1399
        %v1457 = vunpack.c.l.b16 %v1400
        %v1458 = vunpack.c.l.b16 %v1401
        %v1459 = vunpack.c.l.b16 %v1402
        %v1460 = vunpack.c.l.b16 %v1403
        %v1461 = vunpack.c.l.b16 %v1404
        %v1462 = vunpack.c.l.b16 %v1405
        %v1463 = vunpack.c.l.b16 %v1406
        %v1464 = vunpack.c.l.b16 %v1407
        %v1465 = vunpack.c.l.b16 %v1408
        %v1466 = vunpack.c.l.b16 %v1409
        %v1467 = vunpack.c.l.b16 %v1410
        %v1468 = vunpack.c.l.b16 %v1411
        %v1469 = vunpack.c.l.b16 %v1412
        %v1470 = vunpack.c.l.b16 %v1413
        %v1471 = vunpack.c.l.b16 %v1414
        %v1472 = vpack.c.b16 %v1457, %v1456
        %v1473 = vpack.c.b16 %v1459, %v1458
        %v1474 = vpack.c.b16 %v1461, %v1460
        %v1475 = vpack.c.b16 %v1463, %v1462
        %v1476 = vpack.c.b16 %v1465, %v1464
        %v1477 = vpack.c.b16 %v1467, %v1466
        %v1478 = vpack.c.b16 %v1469, %v1468
        %v1479 = vpack.c.b16 %v1471, %v1470
        %1488 = vmatprep.subr.bf16.mxu0 0
        %1489 = vmatpush1.bf16.msra.mxu0 %v1472
        %1490 = vmatprep.subr.bf16.mxu0 0
        %1491 = vmatpush1.bf16.msra.mxu0 %v1473
        %1492 = vmatprep.subr.bf16.mxu0 0
        %1493 = vmatpush1.bf16.msra.mxu0 %v1474
        %1494 = vmatprep.subr.bf16.mxu0 0
        %1495 = vmatpush1.bf16.msra.mxu0 %v1475
        %1496 = vmatprep.subr.bf16.mxu0 0
        %1497 = vmatpush1.bf16.msra.mxu0 %v1476
        %1498 = vmatprep.subr.bf16.mxu0 0
        %1499 = vmatpush1.bf16.msra.mxu0 %v1477
        %1500 = vmatprep.subr.bf16.mxu0 0
        %1501 = vmatpush1.bf16.msra.mxu0 %v1478
        %1502 = vmatprep.subr.bf16.mxu0 0
        %1503 = vmatpush1.bf16.msra.mxu0 %v1479
        %1504 = vmatprep.subr.bf16.mxu0 0
        %1505 = vmatpush1.bf16.msra.mxu0 0
        %1506 = vmatprep.subr.bf16.mxu0 0
        %1507 = vmatpush1.bf16.msra.mxu0 0
        %1508 = vmatprep.subr.bf16.mxu0 0
        %1509 = vmatpush1.bf16.msra.mxu0 0
        %1510 = vmatprep.subr.bf16.mxu0 0
        %1511 = vmatpush1.bf16.msra.mxu0 0
        %1512 = vmatprep.subr.bf16.mxu0 0
        %1513 = vmatpush1.bf16.msra.mxu0 0
        %1514 = vmatprep.subr.bf16.mxu0 0
        %1515 = vmatpush1.bf16.msra.mxu0 0
        %1516 = vmatprep.subr.bf16.mxu0 0
        %1517 = vmatpush1.bf16.msra.mxu0 0
        %1518 = vmatprep.subr.bf16.mxu0 0
        %1519 = vmatpush1.bf16.msra.mxu0 0
        %1520 = vmatprep.mubr.bf16.mxu0 0
        %1521 = vmatmul.mubr.bf16.gmra.mrb[0].mxu0 %v1433
        %v1522 = vpop.f32.mrb[0].mxu0
        %v1523 = vadd.f32 %v1438, %v1522
        %v1524 = vpop.f32.mrb[0].mxu0
        %v1525 = vpop.f32.mrb[0].mxu0
        %v1526 = vpop.f32.mrb[0].mxu0
        %1527 = vdwg.mxu0
        %v1528 = vmax.f32 %v1523, 0.0
        %v1530 = vrot.slane %v1380, 1
        %vm1532 = vcmask 1046528
        %v1533 = vsel %vm1532, %v1530, 0.0
        %v1534 = vpack.c.bf16 %v1533, %v1533
        %v1551 = vunpack.c.l.b16 %v1382
        %v1552 = vunpack.c.l.b16 %v1383
        %v1553 = vunpack.c.l.b16 %v1384
        %v1554 = vunpack.c.l.b16 %v1385
        %v1555 = vunpack.c.l.b16 %v1386
        %v1556 = vunpack.c.l.b16 %v1387
        %v1557 = vunpack.c.l.b16 %v1388
        %v1558 = vunpack.c.l.b16 %v1389
        %v1559 = vunpack.c.l.b16 %v1390
        %v1560 = vunpack.c.l.b16 %v1391
        %v1561 = vunpack.c.l.b16 %v1392
        %v1562 = vunpack.c.l.b16 %v1393
        %v1563 = vunpack.c.l.b16 %v1394
        %v1564 = vunpack.c.l.b16 %v1395
        %v1565 = vunpack.c.l.b16 %v1396
        %v1566 = vunpack.c.l.b16 %v1397
        %v1567 = vpack.c.b16 %v1552, %v1551
        %v1568 = vpack.c.b16 %v1554, %v1553
        %v1569 = vpack.c.b16 %v1556, %v1555
        %v1570 = vpack.c.b16 %v1558, %v1557
        %v1571 = vpack.c.b16 %v1560, %v1559
        %v1572 = vpack.c.b16 %v1562, %v1561
        %v1573 = vpack.c.b16 %v1564, %v1563
        %v1574 = vpack.c.b16 %v1566, %v1565
        %1583 = vmatprep.subr.bf16.mxu0 0
        %1584 = vmatpush1.bf16.msra.mxu0 %v1567
        %1585 = vmatprep.subr.bf16.mxu0 0
        %1586 = vmatpush1.bf16.msra.mxu0 %v1568
        %1587 = vmatprep.subr.bf16.mxu0 0
        %1588 = vmatpush1.bf16.msra.mxu0 %v1569
        %1589 = vmatprep.subr.bf16.mxu0 0
        %1590 = vmatpush1.bf16.msra.mxu0 %v1570
        %1591 = vmatprep.subr.bf16.mxu0 0
        %1592 = vmatpush1.bf16.msra.mxu0 %v1571
        %1593 = vmatprep.subr.bf16.mxu0 0
        %1594 = vmatpush1.bf16.msra.mxu0 %v1572
        %1595 = vmatprep.subr.bf16.mxu0 0
        %1596 = vmatpush1.bf16.msra.mxu0 %v1573
        %1597 = vmatprep.subr.bf16.mxu0 0
        %1598 = vmatpush1.bf16.msra.mxu0 %v1574
        %1599 = vmatprep.subr.bf16.mxu0 0
        %1600 = vmatpush1.bf16.msra.mxu0 0
        %1601 = vmatprep.subr.bf16.mxu0 0
        %1602 = vmatpush1.bf16.msra.mxu0 0
        %1603 = vmatprep.subr.bf16.mxu0 0
        %1604 = vmatpush1.bf16.msra.mxu0 0
        %1605 = vmatprep.subr.bf16.mxu0 0
        %1606 = vmatpush1.bf16.msra.mxu0 0
        %1607 = vmatprep.subr.bf16.mxu0 0
        %1608 = vmatpush1.bf16.msra.mxu0 0
        %1609 = vmatprep.subr.bf16.mxu0 0
        %1610 = vmatpush1.bf16.msra.mxu0 0
        %1611 = vmatprep.subr.bf16.mxu0 0
        %1612 = vmatpush1.bf16.msra.mxu0 0
        %1613 = vmatprep.subr.bf16.mxu0 0
        %1614 = vmatpush1.bf16.msra.mxu0 0
        %1615 = vmatprep.mubr.bf16.mxu0 0
        %1616 = vmatmul.mubr.bf16.gmra.mrb[0].mxu0 %v1534
        %v1617 = vpop.f32.mrb[0].mxu0
        %v1618 = vadd.f32 0.0, %v1617
        %v1619 = vpop.f32.mrb[0].mxu0
        %v1620 = vpop.f32.mrb[0].mxu0
        %v1621 = vpop.f32.mrb[0].mxu0
        %1622 = vdwg.mxu0
        %v1639 = vunpack.c.l.b16 %v1416
        %v1640 = vunpack.c.l.b16 %v1417
        %v1641 = vunpack.c.l.b16 %v1418
        %v1642 = vunpack.c.l.b16 %v1419
        %v1643 = vunpack.c.l.b16 %v1420
        %v1644 = vunpack.c.l.b16 %v1421
        %v1645 = vunpack.c.l.b16 %v1422
        %v1646 = vunpack.c.l.b16 %v1423
        %v1647 = vunpack.c.l.b16 %v1424
        %v1648 = vunpack.c.l.b16 %v1425
        %v1649 = vunpack.c.l.b16 %v1426
        %v1650 = vunpack.c.l.b16 %v1427
        %v1651 = vunpack.c.l.b16 %v1428
        %v1652 = vunpack.c.l.b16 %v1429
        %v1653 = vunpack.c.l.b16 %v1430
        %v1654 = vunpack.c.l.b16 %v1431
        %v1655 = vpack.c.b16 %v1640, %v1639
        %v1656 = vpack.c.b16 %v1642, %v1641
        %v1657 = vpack.c.b16 %v1644, %v1643
        %v1658 = vpack.c.b16 %v1646, %v1645
        %v1659 = vpack.c.b16 %v1648, %v1647
        %v1660 = vpack.c.b16 %v1650, %v1649
        %v1661 = vpack.c.b16 %v1652, %v1651
        %v1662 = vpack.c.b16 %v1654, %v1653
        %1671 = vmatprep.subr.bf16.mxu0 0
        %1672 = vmatpush1.bf16.msra.mxu0 %v1655
        %1673 = vmatprep.subr.bf16.mxu0 0
        %1674 = vmatpush1.bf16.msra.mxu0 %v1656
        %1675 = vmatprep.subr.bf16.mxu0 0
        %1676 = vmatpush1.bf16.msra.mxu0 %v1657
        %1677 = vmatprep.subr.bf16.mxu0 0
        %1678 = vmatpush1.bf16.msra.mxu0 %v1658
        %1679 = vmatprep.subr.bf16.mxu0 0
        %1680 = vmatpush1.bf16.msra.mxu0 %v1659
        %1681 = vmatprep.subr.bf16.mxu0 0
        %1682 = vmatpush1.bf16.msra.mxu0 %v1660
        %1683 = vmatprep.subr.bf16.mxu0 0
        %1684 = vmatpush1.bf16.msra.mxu0 %v1661
        %1685 = vmatprep.subr.bf16.mxu0 0
        %1686 = vmatpush1.bf16.msra.mxu0 %v1662
        %1687 = vmatprep.subr.bf16.mxu0 0
        %1688 = vmatpush1.bf16.msra.mxu0 0
        %1689 = vmatprep.subr.bf16.mxu0 0
        %1690 = vmatpush1.bf16.msra.mxu0 0
        %1691 = vmatprep.subr.bf16.mxu0 0
        %1692 = vmatpush1.bf16.msra.mxu0 0
        %1693 = vmatprep.subr.bf16.mxu0 0
        %1694 = vmatpush1.bf16.msra.mxu0 0
        %1695 = vmatprep.subr.bf16.mxu0 0
        %1696 = vmatpush1.bf16.msra.mxu0 0
        %1697 = vmatprep.subr.bf16.mxu0 0
        %1698 = vmatpush1.bf16.msra.mxu0 0
        %1699 = vmatprep.subr.bf16.mxu0 0
        %1700 = vmatpush1.bf16.msra.mxu0 0
        %1701 = vmatprep.subr.bf16.mxu0 0
        %1702 = vmatpush1.bf16.msra.mxu0 0
        %1703 = vmatprep.mubr.bf16.mxu0 0
        %1704 = vmatmul.mubr.bf16.gmra.mrb[0].mxu0 %v1433
        %v1705 = vpop.f32.mrb[0].mxu0
        %v1706 = vadd.f32 %v1618, %v1705
        %v1707 = vpop.f32.mrb[0].mxu0
        %v1708 = vpop.f32.mrb[0].mxu0
        %v1709 = vpop.f32.mrb[0].mxu0
        %1710 = vdwg.mxu0
        %v1711 = vadd.f32 %v1706, %v1438
        %v1712 = vmax.f32 %v1711, 0.0
        %v1713 = vld [vmem:[%s9] sm:$0xf]
        %v1714 = vld [vmem:[%s9 + $0x4] sm:$0xf]
        %v1715 = vld [vmem:[%s9 + $0x8] sm:$0xf]
        %v1716 = vld [vmem:[%s9 + $0xc] sm:$0xf]
        %v1717 = vld [vmem:[%s9 + $0x10] sm:$0xf]
        %v1718 = vld [vmem:[%s9 + $0x14] sm:$0xf]
        %v1719 = vld [vmem:[%s9 + $0x18] sm:$0xf]
        %v1720 = vld [vmem:[%s9 + $0x1c] sm:$0xf]
        %s1721 = scalar_lea.vmem %s9, 32
        %v1722 = vld [vmem:[%s1721] sm:$0xf]
        %v1723 = vld [vmem:[%s1721 + $0x4] sm:$0xf]
        %v1724 = vld [vmem:[%s1721 + $0x8] sm:$0xf]
        %v1725 = vld [vmem:[%s1721 + $0xc] sm:$0xf]
        %v1726 = vld [vmem:[%s1721 + $0x10] sm:$0xf]
        %v1727 = vld [vmem:[%s1721 + $0x14] sm:$0xf]
        %v1728 = vld [vmem:[%s1721 + $0x18] sm:$0xf]
        %v1729 = vld [vmem:[%s1721 + $0x1c] sm:$0xf]
        %s1730 = scalar_lea.vmem %s9, 64
        %v1731 = vld [vmem:[%s1730] sm:$0xf]
        %v1732 = vld [vmem:[%s1730 + $0x4] sm:$0xf]
        %v1733 = vld [vmem:[%s1730 + $0x8] sm:$0xf]
        %v1734 = vld [vmem:[%s1730 + $0xc] sm:$0xf]
        %v1735 = vld [vmem:[%s1730 + $0x10] sm:$0xf]
        %v1736 = vld [vmem:[%s1730 + $0x14] sm:$0xf]
        %v1737 = vld [vmem:[%s1730 + $0x18] sm:$0xf]
        %v1738 = vld [vmem:[%s1730 + $0x1c] sm:$0xf]
        %v1739 = vld [vmem:[%s10] sm:$0x1]
        %v1740 = vpack.c.bf16 %v1528, %v1528
        %v1742 = vlaneseq
        %v1743 = vshrl.u32 %v1742, 7
        %v1744 = vsub.s32 0, %v1743
        %v1745 = vrot.slane %v1739, %v1744
        %v1755 = vunpack.c.l.b16 %v1722
        %v1756 = vunpack.c.l.b16 %v1723
        %v1757 = vunpack.c.l.b16 %v1724
        %v1758 = vunpack.c.l.b16 %v1725
        %v1759 = vunpack.c.l.b16 %v1726
        %v1760 = vunpack.c.l.b16 %v1727
        %v1761 = vunpack.c.l.b16 %v1728
        %v1762 = vunpack.c.l.b16 %v1729
        %v1763 = vpack.c.b16 %v1756, %v1755
        %v1764 = vpack.c.b16 %v1758, %v1757
        %v1765 = vpack.c.b16 %v1760, %v1759
        %v1766 = vpack.c.b16 %v1762, %v1761
        %v1772 = vsel %vm1193, %v1740, 0
        %1774 = vmatprep.subr.bf16.mxu0 0
        %1775 = vmatpush1.bf16.msra.mxu0 %v1763
        %1776 = vmatprep.subr.bf16.mxu0 0
        %1777 = vmatpush1.bf16.msra.mxu0 %v1764
        %1778 = vmatprep.subr.bf16.mxu0 0
        %1779 = vmatpush1.bf16.msra.mxu0 %v1765
        %1780 = vmatprep.subr.bf16.mxu0 0
        %1781 = vmatpush1.bf16.msra.mxu0 %v1766
        %1782 = vmatprep.subr.bf16.mxu0 0
        %1783 = vmatpush1.bf16.msra.mxu0 0
        %1784 = vmatprep.subr.bf16.mxu0 0
        %1785 = vmatpush1.bf16.msra.mxu0 0
        %1786 = vmatprep.subr.bf16.mxu0 0
        %1787 = vmatpush1.bf16.msra.mxu0 0
        %1788 = vmatprep.subr.bf16.mxu0 0
        %1789 = vmatpush1.bf16.msra.mxu0 0
        %1790 = vmatprep.subr.bf16.mxu0 0
        %1791 = vmatpush1.bf16.msra.mxu0 0
        %1792 = vmatprep.subr.bf16.mxu0 0
        %1793 = vmatpush1.bf16.msra.mxu0 0
        %1794 = vmatprep.subr.bf16.mxu0 0
        %1795 = vmatpush1.bf16.msra.mxu0 0
        %1796 = vmatprep.subr.bf16.mxu0 0
        %1797 = vmatpush1.bf16.msra.mxu0 0
        %1798 = vmatprep.subr.bf16.mxu0 0
        %1799 = vmatpush1.bf16.msra.mxu0 0
        %1800 = vmatprep.subr.bf16.mxu0 0
        %1801 = vmatpush1.bf16.msra.mxu0 0
        %1802 = vmatprep.subr.bf16.mxu0 0
        %1803 = vmatpush1.bf16.msra.mxu0 0
        %1804 = vmatprep.subr.bf16.mxu0 0
        %1805 = vmatpush1.bf16.msra.mxu0 0
        %1806 = vmatprep.mubr.bf16.mxu0 0
        %1807 = vmatmul.mubr.bf16.gmra.mrb[0].mxu0 %v1772
        %v1808 = vpop.f32.mrb[0].mxu0
        %v1809 = vadd.f32 %v1745, %v1808
        %v1810 = vpop.f32.mrb[0].mxu0
        %v1811 = vpop.f32.mrb[0].mxu0
        %v1812 = vpop.f32.mrb[0].mxu0
        %1813 = vdwg.mxu0
        %v1814 = vmax.f32 %v1809, 0.0
        %v1815 = vpack.c.bf16 %v1712, %v1712
        %v1824 = vunpack.c.l.b16 %v1713
        %v1825 = vunpack.c.l.b16 %v1714
        %v1826 = vunpack.c.l.b16 %v1715
        %v1827 = vunpack.c.l.b16 %v1716
        %v1828 = vunpack.c.l.b16 %v1717
        %v1829 = vunpack.c.l.b16 %v1718
        %v1830 = vunpack.c.l.b16 %v1719
        %v1831 = vunpack.c.l.b16 %v1720
        %v1832 = vpack.c.b16 %v1825, %v1824
        %v1833 = vpack.c.b16 %v1827, %v1826
        %v1834 = vpack.c.b16 %v1829, %v1828
        %v1835 = vpack.c.b16 %v1831, %v1830
        %v1841 = vsel %vm1193, %v1815, 0
        %1843 = vmatprep.subr.bf16.mxu0 0
        %1844 = vmatpush1.bf16.msra.mxu0 %v1832
        %1845 = vmatprep.subr.bf16.mxu0 0
        %1846 = vmatpush1.bf16.msra.mxu0 %v1833
        %1847 = vmatprep.subr.bf16.mxu0 0
        %1848 = vmatpush1.bf16.msra.mxu0 %v1834
        %1849 = vmatprep.subr.bf16.mxu0 0
        %1850 = vmatpush1.bf16.msra.mxu0 %v1835
        %1851 = vmatprep.subr.bf16.mxu0 0
        %1852 = vmatpush1.bf16.msra.mxu0 0
        %1853 = vmatprep.subr.bf16.mxu0 0
        %1854 = vmatpush1.bf16.msra.mxu0 0
        %1855 = vmatprep.subr.bf16.mxu0 0
        %1856 = vmatpush1.bf16.msra.mxu0 0
        %1857 = vmatprep.subr.bf16.mxu0 0
        %1858 = vmatpush1.bf16.msra.mxu0 0
        %1859 = vmatprep.subr.bf16.mxu0 0
        %1860 = vmatpush1.bf16.msra.mxu0 0
        %1861 = vmatprep.subr.bf16.mxu0 0
        %1862 = vmatpush1.bf16.msra.mxu0 0
        %1863 = vmatprep.subr.bf16.mxu0 0
        %1864 = vmatpush1.bf16.msra.mxu0 0
        %1865 = vmatprep.subr.bf16.mxu0 0
        %1866 = vmatpush1.bf16.msra.mxu0 0
        %1867 = vmatprep.subr.bf16.mxu0 0
        %1868 = vmatpush1.bf16.msra.mxu0 0
        %1869 = vmatprep.subr.bf16.mxu0 0
        %1870 = vmatpush1.bf16.msra.mxu0 0
        %1871 = vmatprep.subr.bf16.mxu0 0
        %1872 = vmatpush1.bf16.msra.mxu0 0
        %1873 = vmatprep.subr.bf16.mxu0 0
        %1874 = vmatpush1.bf16.msra.mxu0 0
        %1875 = vmatprep.mubr.bf16.mxu0 0
        %1876 = vmatmul.mubr.bf16.gmra.mrb[0].mxu0 %v1841
        %v1877 = vpop.f32.mrb[0].mxu0
        %v1878 = vadd.f32 0.0, %v1877
        %v1879 = vpop.f32.mrb[0].mxu0
        %v1880 = vpop.f32.mrb[0].mxu0
        %v1881 = vpop.f32.mrb[0].mxu0
        %1882 = vdwg.mxu0
        %v1891 = vunpack.c.l.b16 %v1731
        %v1892 = vunpack.c.l.b16 %v1732
        %v1893 = vunpack.c.l.b16 %v1733
        %v1894 = vunpack.c.l.b16 %v1734
        %v1895 = vunpack.c.l.b16 %v1735
        %v1896 = vunpack.c.l.b16 %v1736
        %v1897 = vunpack.c.l.b16 %v1737
        %v1898 = vunpack.c.l.b16 %v1738
        %v1899 = vpack.c.b16 %v1892, %v1891
        %v1900 = vpack.c.b16 %v1894, %v1893
        %v1901 = vpack.c.b16 %v1896, %v1895
        %v1902 = vpack.c.b16 %v1898, %v1897
        %1907 = vmatprep.subr.bf16.mxu0 0
        %1908 = vmatpush1.bf16.msra.mxu0 %v1899
        %1909 = vmatprep.subr.bf16.mxu0 0
        %1910 = vmatpush1.bf16.msra.mxu0 %v1900
        %1911 = vmatprep.subr.bf16.mxu0 0
        %1912 = vmatpush1.bf16.msra.mxu0 %v1901
        %1913 = vmatprep.subr.bf16.mxu0 0
        %1914 = vmatpush1.bf16.msra.mxu0 %v1902
        %1915 = vmatprep.subr.bf16.mxu0 0
        %1916 = vmatpush1.bf16.msra.mxu0 0
        %1917 = vmatprep.subr.bf16.mxu0 0
        %1918 = vmatpush1.bf16.msra.mxu0 0
        %1919 = vmatprep.subr.bf16.mxu0 0
        %1920 = vmatpush1.bf16.msra.mxu0 0
        %1921 = vmatprep.subr.bf16.mxu0 0
        %1922 = vmatpush1.bf16.msra.mxu0 0
        %1923 = vmatprep.subr.bf16.mxu0 0
        %1924 = vmatpush1.bf16.msra.mxu0 0
        %1925 = vmatprep.subr.bf16.mxu0 0
        %1926 = vmatpush1.bf16.msra.mxu0 0
        %1927 = vmatprep.subr.bf16.mxu0 0
        %1928 = vmatpush1.bf16.msra.mxu0 0
        %1929 = vmatprep.subr.bf16.mxu0 0
        %1930 = vmatpush1.bf16.msra.mxu0 0
        %1931 = vmatprep.subr.bf16.mxu0 0
        %1932 = vmatpush1.bf16.msra.mxu0 0
        %1933 = vmatprep.subr.bf16.mxu0 0
        %1934 = vmatpush1.bf16.msra.mxu0 0
        %1935 = vmatprep.subr.bf16.mxu0 0
        %1936 = vmatpush1.bf16.msra.mxu0 0
        %1937 = vmatprep.subr.bf16.mxu0 0
        %1938 = vmatpush1.bf16.msra.mxu0 0
        %1939 = vmatprep.mubr.bf16.mxu0 0
        %1940 = vmatmul.mubr.bf16.gmra.mrb[0].mxu0 %v1772
        %v1941 = vpop.f32.mrb[0].mxu0
        %v1942 = vadd.f32 %v1878, %v1941
        %v1943 = vpop.f32.mrb[0].mxu0
        %v1944 = vpop.f32.mrb[0].mxu0
        %v1945 = vpop.f32.mrb[0].mxu0
        %1946 = vdwg.mxu0
        %v1947 = vadd.f32 %v1942, %v1745
        %v1948 = vmax.f32 %v1947, 0.0
        %1949 = vmatprep.subr.bf16.mxu0 0
        %1950 = vmatpush1.bf16.msra.mxu0 %v1763
        %1951 = vmatprep.subr.bf16.mxu0 0
        %1952 = vmatpush1.bf16.msra.mxu0 %v1764
        %1953 = vmatprep.subr.bf16.mxu0 0
        %1954 = vmatpush1.bf16.msra.mxu0 %v1765
        %1955 = vmatprep.subr.bf16.mxu0 0
        %1956 = vmatpush1.bf16.msra.mxu0 %v1766
        %1957 = vmatprep.subr.bf16.mxu0 0
        %1958 = vmatpush1.bf16.msra.mxu0 0
        %1959 = vmatprep.subr.bf16.mxu0 0
        %1960 = vmatpush1.bf16.msra.mxu0 0
        %1961 = vmatprep.subr.bf16.mxu0 0
        %1962 = vmatpush1.bf16.msra.mxu0 0
        %1963 = vmatprep.subr.bf16.mxu0 0
        %1964 = vmatpush1.bf16.msra.mxu0 0
        %1965 = vmatprep.subr.bf16.mxu0 0
        %1966 = vmatpush1.bf16.msra.mxu0 0
        %1967 = vmatprep.subr.bf16.mxu0 0
        %1968 = vmatpush1.bf16.msra.mxu0 0
        %1969 = vmatprep.subr.bf16.mxu0 0
        %1970 = vmatpush1.bf16.msra.mxu0 0
        %1971 = vmatprep.subr.bf16.mxu0 0
        %1972 = vmatpush1.bf16.msra.mxu0 0
        %1973 = vmatprep.subr.bf16.mxu0 0
        %1974 = vmatpush1.bf16.msra.mxu0 0
        %1975 = vmatprep.subr.bf16.mxu0 0
        %1976 = vmatpush1.bf16.msra.mxu0 0
        %1977 = vmatprep.subr.bf16.mxu0 0
        %1978 = vmatpush1.bf16.msra.mxu0 0
        %1979 = vmatprep.subr.bf16.mxu0 0
        %1980 = vmatpush1.bf16.msra.mxu0 0
        %1981 = vmatprep.mubr.bf16.mxu0 0
        %1982 = vmatmul.mubr.bf16.gmra.mrb[0].mxu0 %v1841
        %v1983 = vpop.f32.mrb[0].mxu0
        %v1984 = vadd.f32 %v1745, %v1983
        %v1985 = vpop.f32.mrb[0].mxu0
        %v1986 = vpop.f32.mrb[0].mxu0
        %v1987 = vpop.f32.mrb[0].mxu0
        %1988 = vdwg.mxu0
        %v1989 = vmax.f32 %v1984, 0.0
        %v1991 = vrot.slane %v1528, 1
        %v1993 = vsel %vm1532, %v1991, 0.0
        %v1994 = vpack.c.bf16 %v1993, %v1993
        %v1996 = vsel %vm1193, %v1994, 0
        %1998 = vmatprep.subr.bf16.mxu0 0
        %1999 = vmatpush1.bf16.msra.mxu0 %v1832
        %2000 = vmatprep.subr.bf16.mxu0 0
        %2001 = vmatpush1.bf16.msra.mxu0 %v1833
        %2002 = vmatprep.subr.bf16.mxu0 0
        %2003 = vmatpush1.bf16.msra.mxu0 %v1834
        %2004 = vmatprep.subr.bf16.mxu0 0
        %2005 = vmatpush1.bf16.msra.mxu0 %v1835
        %2006 = vmatprep.subr.bf16.mxu0 0
        %2007 = vmatpush1.bf16.msra.mxu0 0
        %2008 = vmatprep.subr.bf16.mxu0 0
        %2009 = vmatpush1.bf16.msra.mxu0 0
        %2010 = vmatprep.subr.bf16.mxu0 0
        %2011 = vmatpush1.bf16.msra.mxu0 0
        %2012 = vmatprep.subr.bf16.mxu0 0
        %2013 = vmatpush1.bf16.msra.mxu0 0
        %2014 = vmatprep.subr.bf16.mxu0 0
        %2015 = vmatpush1.bf16.msra.mxu0 0
        %2016 = vmatprep.subr.bf16.mxu0 0
        %2017 = vmatpush1.bf16.msra.mxu0 0
        %2018 = vmatprep.subr.bf16.mxu0 0
        %2019 = vmatpush1.bf16.msra.mxu0 0
        %2020 = vmatprep.subr.bf16.mxu0 0
        %2021 = vmatpush1.bf16.msra.mxu0 0
        %2022 = vmatprep.subr.bf16.mxu0 0
        %2023 = vmatpush1.bf16.msra.mxu0 0
        %2024 = vmatprep.subr.bf16.mxu0 0
        %2025 = vmatpush1.bf16.msra.mxu0 0
        %2026 = vmatprep.subr.bf16.mxu0 0
        %2027 = vmatpush1.bf16.msra.mxu0 0
        %2028 = vmatprep.subr.bf16.mxu0 0
        %2029 = vmatpush1.bf16.msra.mxu0 0
        %2030 = vmatprep.mubr.bf16.mxu0 0
        %2031 = vmatmul.mubr.bf16.gmra.mrb[0].mxu0 %v1996
        %v2032 = vpop.f32.mrb[0].mxu0
        %v2033 = vadd.f32 0.0, %v2032
        %v2034 = vpop.f32.mrb[0].mxu0
        %v2035 = vpop.f32.mrb[0].mxu0
        %v2036 = vpop.f32.mrb[0].mxu0
        %2037 = vdwg.mxu0
        %2038 = vmatprep.subr.bf16.mxu0 0
        %2039 = vmatpush1.bf16.msra.mxu0 %v1899
        %2040 = vmatprep.subr.bf16.mxu0 0
        %2041 = vmatpush1.bf16.msra.mxu0 %v1900
        %2042 = vmatprep.subr.bf16.mxu0 0
        %2043 = vmatpush1.bf16.msra.mxu0 %v1901
        %2044 = vmatprep.subr.bf16.mxu0 0
        %2045 = vmatpush1.bf16.msra.mxu0 %v1902
        %2046 = vmatprep.subr.bf16.mxu0 0
        %2047 = vmatpush1.bf16.msra.mxu0 0
        %2048 = vmatprep.subr.bf16.mxu0 0
        %2049 = vmatpush1.bf16.msra.mxu0 0
        %2050 = vmatprep.subr.bf16.mxu0 0
        %2051 = vmatpush1.bf16.msra.mxu0 0
        %2052 = vmatprep.subr.bf16.mxu0 0
        %2053 = vmatpush1.bf16.msra.mxu0 0
        %2054 = vmatprep.subr.bf16.mxu0 0
        %2055 = vmatpush1.bf16.msra.mxu0 0
        %2056 = vmatprep.subr.bf16.mxu0 0
        %2057 = vmatpush1.bf16.msra.mxu0 0
        %2058 = vmatprep.subr.bf16.mxu0 0
        %2059 = vmatpush1.bf16.msra.mxu0 0
        %2060 = vmatprep.subr.bf16.mxu0 0
        %2061 = vmatpush1.bf16.msra.mxu0 0
        %2062 = vmatprep.subr.bf16.mxu0 0
        %2063 = vmatpush1.bf16.msra.mxu0 0
        %2064 = vmatprep.subr.bf16.mxu0 0
        %2065 = vmatpush1.bf16.msra.mxu0 0
        %2066 = vmatprep.subr.bf16.mxu0 0
        %2067 = vmatpush1.bf16.msra.mxu0 0
        %2068 = vmatprep.subr.bf16.mxu0 0
        %2069 = vmatpush1.bf16.msra.mxu0 0
        %2070 = vmatprep.mubr.bf16.mxu0 0
        %2071 = vmatmul.mubr.bf16.gmra.mrb[0].mxu0 %v1841
        %v2072 = vpop.f32.mrb[0].mxu0
        %v2073 = vadd.f32 %v2033, %v2072
        %v2074 = vpop.f32.mrb[0].mxu0
        %v2075 = vpop.f32.mrb[0].mxu0
        %v2076 = vpop.f32.mrb[0].mxu0
        %2077 = vdwg.mxu0
        %v2078 = vadd.f32 %v2073, %v1745
        %v2079 = vmax.f32 %v2078, 0.0
        %v2080 = vld [vmem:[%s11] sm:$0xf]
        %v2081 = vld [vmem:[%s11 + $0x4] sm:$0xf]
        %v2082 = vld [vmem:[%s11 + $0x8] sm:$0xf]
        %v2083 = vld [vmem:[%s11 + $0xc] sm:$0xf]
        %s2084 = scalar_lea.vmem %s11, 16
        %v2085 = vld [vmem:[%s2084] sm:$0xf]
        %v2086 = vld [vmem:[%s2084 + $0x4] sm:$0xf]
        %v2087 = vld [vmem:[%s2084 + $0x8] sm:$0xf]
        %v2088 = vld [vmem:[%s2084 + $0xc] sm:$0xf]
        %s2089 = scalar_lea.vmem %s11, 32
        %v2090 = vld [vmem:[%s2089] sm:$0xf]
        %v2091 = vld [vmem:[%s2089 + $0x4] sm:$0xf]
        %v2092 = vld [vmem:[%s2089 + $0x8] sm:$0xf]
        %v2093 = vld [vmem:[%s2089 + $0xc] sm:$0xf]
        %v2094 = vld [vmem:[#allocation2] sm:$0x1]
        %v2095 = vpack.c.bf16 %v1814, %v1814
        %v2097 = vlaneseq
        %v2098 = vshrl.u32 %v2097, 7
        %v2099 = vsub.s32 0, %v2098
        %v2100 = vrot.slane %v2094, %v2099
        %v2106 = vunpack.c.l.b16 %v2085
        %v2107 = vunpack.c.l.b16 %v2086
        %v2108 = vunpack.c.l.b16 %v2087
        %v2109 = vunpack.c.l.b16 %v2088
        %v2110 = vpack.c.b16 %v2107, %v2106
        %v2111 = vpack.c.b16 %v2109, %v2108
        %v2115 = vsel %vm841, %v2095, 0
        %2117 = vmatprep.subr.bf16.mxu0 0
        %2118 = vmatpush1.bf16.msra.mxu0 %v2110
        %2119 = vmatprep.subr.bf16.mxu0 0
        %2120 = vmatpush1.bf16.msra.mxu0 %v2111
        %2121 = vmatprep.subr.bf16.mxu0 0
        %2122 = vmatpush1.bf16.msra.mxu0 0
        %2123 = vmatprep.subr.bf16.mxu0 0
        %2124 = vmatpush1.bf16.msra.mxu0 0
        %2125 = vmatprep.subr.bf16.mxu0 0
        %2126 = vmatpush1.bf16.msra.mxu0 0
        %2127 = vmatprep.subr.bf16.mxu0 0
        %2128 = vmatpush1.bf16.msra.mxu0 0
        %2129 = vmatprep.subr.bf16.mxu0 0
        %2130 = vmatpush1.bf16.msra.mxu0 0
        %2131 = vmatprep.subr.bf16.mxu0 0
        %2132 = vmatpush1.bf16.msra.mxu0 0
        %2133 = vmatprep.subr.bf16.mxu0 0
        %2134 = vmatpush1.bf16.msra.mxu0 0
        %2135 = vmatprep.subr.bf16.mxu0 0
        %2136 = vmatpush1.bf16.msra.mxu0 0
        %2137 = vmatprep.subr.bf16.mxu0 0
        %2138 = vmatpush1.bf16.msra.mxu0 0
        %2139 = vmatprep.subr.bf16.mxu0 0
        %2140 = vmatpush1.bf16.msra.mxu0 0
        %2141 = vmatprep.subr.bf16.mxu0 0
        %2142 = vmatpush1.bf16.msra.mxu0 0
        %2143 = vmatprep.subr.bf16.mxu0 0
        %2144 = vmatpush1.bf16.msra.mxu0 0
        %2145 = vmatprep.subr.bf16.mxu0 0
        %2146 = vmatpush1.bf16.msra.mxu0 0
        %2147 = vmatprep.subr.bf16.mxu0 0
        %2148 = vmatpush1.bf16.msra.mxu0 0
        %2149 = vmatprep.mubr.bf16.mxu0 0
        %2150 = vmatmul.mubr.bf16.gmra.mrb[0].mxu0 %v2115
        %v2151 = vpop.f32.mrb[0].mxu0
        %v2152 = vadd.f32 %v2100, %v2151
        %v2153 = vpop.f32.mrb[0].mxu0
        %v2154 = vpop.f32.mrb[0].mxu0
        %v2155 = vpop.f32.mrb[0].mxu0
        %2156 = vdwg.mxu0
        %v2157 = vmax.f32 %v2152, 0.0
        %v2158 = vpack.c.bf16 %v1948, %v1948
        %v2163 = vunpack.c.l.b16 %v2080
        %v2164 = vunpack.c.l.b16 %v2081
        %v2165 = vunpack.c.l.b16 %v2082
        %v2166 = vunpack.c.l.b16 %v2083
        %v2167 = vpack.c.b16 %v2164, %v2163
        %v2168 = vpack.c.b16 %v2166, %v2165
        %v2172 = vsel %vm841, %v2158, 0
        %2174 = vmatprep.subr.bf16.mxu0 0
        %2175 = vmatpush1.bf16.msra.mxu0 %v2167
        %2176 = vmatprep.subr.bf16.mxu0 0
        %2177 = vmatpush1.bf16.msra.mxu0 %v2168
        %2178 = vmatprep.subr.bf16.mxu0 0
        %2179 = vmatpush1.bf16.msra.mxu0 0
        %2180 = vmatprep.subr.bf16.mxu0 0
        %2181 = vmatpush1.bf16.msra.mxu0 0
        %2182 = vmatprep.subr.bf16.mxu0 0
        %2183 = vmatpush1.bf16.msra.mxu0 0
        %2184 = vmatprep.subr.bf16.mxu0 0
        %2185 = vmatpush1.bf16.msra.mxu0 0
        %2186 = vmatprep.subr.bf16.mxu0 0
        %2187 = vmatpush1.bf16.msra.mxu0 0
        %2188 = vmatprep.subr.bf16.mxu0 0
        %2189 = vmatpush1.bf16.msra.mxu0 0
        %2190 = vmatprep.subr.bf16.mxu0 0
        %2191 = vmatpush1.bf16.msra.mxu0 0
        %2192 = vmatprep.subr.bf16.mxu0 0
        %2193 = vmatpush1.bf16.msra.mxu0 0
        %2194 = vmatprep.subr.bf16.mxu0 0
        %2195 = vmatpush1.bf16.msra.mxu0 0
        %2196 = vmatprep.subr.bf16.mxu0 0
        %2197 = vmatpush1.bf16.msra.mxu0 0
        %2198 = vmatprep.subr.bf16.mxu0 0
        %2199 = vmatpush1.bf16.msra.mxu0 0
        %2200 = vmatprep.subr.bf16.mxu0 0
        %2201 = vmatpush1.bf16.msra.mxu0 0
        %2202 = vmatprep.subr.bf16.mxu0 0
        %2203 = vmatpush1.bf16.msra.mxu0 0
        %2204 = vmatprep.subr.bf16.mxu0 0
        %2205 = vmatpush1.bf16.msra.mxu0 0
        %2206 = vmatprep.mubr.bf16.mxu0 0
        %2207 = vmatmul.mubr.bf16.gmra.mrb[0].mxu0 %v2172
        %v2208 = vpop.f32.mrb[0].mxu0
        %v2209 = vadd.f32 0.0, %v2208
        %v2210 = vpop.f32.mrb[0].mxu0
        %v2211 = vpop.f32.mrb[0].mxu0
        %v2212 = vpop.f32.mrb[0].mxu0
        %2213 = vdwg.mxu0
        %v2218 = vunpack.c.l.b16 %v2090
        %v2219 = vunpack.c.l.b16 %v2091
        %v2220 = vunpack.c.l.b16 %v2092
        %v2221 = vunpack.c.l.b16 %v2093
        %v2222 = vpack.c.b16 %v2219, %v2218
        %v2223 = vpack.c.b16 %v2221, %v2220
        %2226 = vmatprep.subr.bf16.mxu0 0
        %2227 = vmatpush1.bf16.msra.mxu0 %v2222
        %2228 = vmatprep.subr.bf16.mxu0 0
        %2229 = vmatpush1.bf16.msra.mxu0 %v2223
        %2230 = vmatprep.subr.bf16.mxu0 0
        %2231 = vmatpush1.bf16.msra.mxu0 0
        %2232 = vmatprep.subr.bf16.mxu0 0
        %2233 = vmatpush1.bf16.msra.mxu0 0
        %2234 = vmatprep.subr.bf16.mxu0 0
        %2235 = vmatpush1.bf16.msra.mxu0 0
        %2236 = vmatprep.subr.bf16.mxu0 0
        %2237 = vmatpush1.bf16.msra.mxu0 0
        %2238 = vmatprep.subr.bf16.mxu0 0
        %2239 = vmatpush1.bf16.msra.mxu0 0
        %2240 = vmatprep.subr.bf16.mxu0 0
        %2241 = vmatpush1.bf16.msra.mxu0 0
        %2242 = vmatprep.subr.bf16.mxu0 0
        %2243 = vmatpush1.bf16.msra.mxu0 0
        %2244 = vmatprep.subr.bf16.mxu0 0
        %2245 = vmatpush1.bf16.msra.mxu0 0
        %2246 = vmatprep.subr.bf16.mxu0 0
        %2247 = vmatpush1.bf16.msra.mxu0 0
        %2248 = vmatprep.subr.bf16.mxu0 0
        %2249 = vmatpush1.bf16.msra.mxu0 0
        %2250 = vmatprep.subr.bf16.mxu0 0
        %2251 = vmatpush1.bf16.msra.mxu0 0
        %2252 = vmatprep.subr.bf16.mxu0 0
        %2253 = vmatpush1.bf16.msra.mxu0 0
        %2254 = vmatprep.subr.bf16.mxu0 0
        %2255 = vmatpush1.bf16.msra.mxu0 0
        %2256 = vmatprep.subr.bf16.mxu0 0
        %2257 = vmatpush1.bf16.msra.mxu0 0
        %2258 = vmatprep.mubr.bf16.mxu0 0
        %2259 = vmatmul.mubr.bf16.gmra.mrb[0].mxu0 %v2115
        %v2260 = vpop.f32.mrb[0].mxu0
        %v2261 = vadd.f32 %v2209, %v2260
        %v2262 = vpop.f32.mrb[0].mxu0
        %v2263 = vpop.f32.mrb[0].mxu0
        %v2264 = vpop.f32.mrb[0].mxu0
        %2265 = vdwg.mxu0
        %v2266 = vadd.f32 %v2261, %v2100
        %v2267 = vmax.f32 %v2266, 0.0
        %2268 = vmatprep.subr.bf16.mxu0 0
        %2269 = vmatpush1.bf16.msra.mxu0 %v2110
        %2270 = vmatprep.subr.bf16.mxu0 0
        %2271 = vmatpush1.bf16.msra.mxu0 %v2111
        %2272 = vmatprep.subr.bf16.mxu0 0
        %2273 = vmatpush1.bf16.msra.mxu0 0
        %2274 = vmatprep.subr.bf16.mxu0 0
        %2275 = vmatpush1.bf16.msra.mxu0 0
        %2276 = vmatprep.subr.bf16.mxu0 0
        %2277 = vmatpush1.bf16.msra.mxu0 0
        %2278 = vmatprep.subr.bf16.mxu0 0
        %2279 = vmatpush1.bf16.msra.mxu0 0
        %2280 = vmatprep.subr.bf16.mxu0 0
        %2281 = vmatpush1.bf16.msra.mxu0 0
        %2282 = vmatprep.subr.bf16.mxu0 0
        %2283 = vmatpush1.bf16.msra.mxu0 0
        %2284 = vmatprep.subr.bf16.mxu0 0
        %2285 = vmatpush1.bf16.msra.mxu0 0
        %2286 = vmatprep.subr.bf16.mxu0 0
        %2287 = vmatpush1.bf16.msra.mxu0 0
        %2288 = vmatprep.subr.bf16.mxu0 0
        %2289 = vmatpush1.bf16.msra.mxu0 0
        %2290 = vmatprep.subr.bf16.mxu0 0
        %2291 = vmatpush1.bf16.msra.mxu0 0
        %2292 = vmatprep.subr.bf16.mxu0 0
        %2293 = vmatpush1.bf16.msra.mxu0 0
        %2294 = vmatprep.subr.bf16.mxu0 0
        %2295 = vmatpush1.bf16.msra.mxu0 0
        %2296 = vmatprep.subr.bf16.mxu0 0
        %2297 = vmatpush1.bf16.msra.mxu0 0
        %2298 = vmatprep.subr.bf16.mxu0 0
        %2299 = vmatpush1.bf16.msra.mxu0 0
        %2300 = vmatprep.mubr.bf16.mxu0 0
        %2301 = vmatmul.mubr.bf16.gmra.mrb[0].mxu0 %v2172
        %v2302 = vpop.f32.mrb[0].mxu0
        %v2303 = vadd.f32 %v2100, %v2302
        %v2304 = vpop.f32.mrb[0].mxu0
        %v2305 = vpop.f32.mrb[0].mxu0
        %v2306 = vpop.f32.mrb[0].mxu0
        %2307 = vdwg.mxu0
        %v2308 = vmax.f32 %v2303, 0.0
        %v2309 = vpack.c.bf16 %v1989, %v1989
        %v2311 = vsel %vm841, %v2309, 0
        %2313 = vmatprep.subr.bf16.mxu0 0
        %2314 = vmatpush1.bf16.msra.mxu0 %v2167
        %2315 = vmatprep.subr.bf16.mxu0 0
        %2316 = vmatpush1.bf16.msra.mxu0 %v2168
        %2317 = vmatprep.subr.bf16.mxu0 0
        %2318 = vmatpush1.bf16.msra.mxu0 0
        %2319 = vmatprep.subr.bf16.mxu0 0
        %2320 = vmatpush1.bf16.msra.mxu0 0
        %2321 = vmatprep.subr.bf16.mxu0 0
        %2322 = vmatpush1.bf16.msra.mxu0 0
        %2323 = vmatprep.subr.bf16.mxu0 0
        %2324 = vmatpush1.bf16.msra.mxu0 0
        %2325 = vmatprep.subr.bf16.mxu0 0
        %2326 = vmatpush1.bf16.msra.mxu0 0
        %2327 = vmatprep.subr.bf16.mxu0 0
        %2328 = vmatpush1.bf16.msra.mxu0 0
        %2329 = vmatprep.subr.bf16.mxu0 0
        %2330 = vmatpush1.bf16.msra.mxu0 0
        %2331 = vmatprep.subr.bf16.mxu0 0
        %2332 = vmatpush1.bf16.msra.mxu0 0
        %2333 = vmatprep.subr.bf16.mxu0 0
        %2334 = vmatpush1.bf16.msra.mxu0 0
        %2335 = vmatprep.subr.bf16.mxu0 0
        %2336 = vmatpush1.bf16.msra.mxu0 0
        %2337 = vmatprep.subr.bf16.mxu0 0
        %2338 = vmatpush1.bf16.msra.mxu0 0
        %2339 = vmatprep.subr.bf16.mxu0 0
        %2340 = vmatpush1.bf16.msra.mxu0 0
        %2341 = vmatprep.subr.bf16.mxu0 0
        %2342 = vmatpush1.bf16.msra.mxu0 0
        %2343 = vmatprep.subr.bf16.mxu0 0
        %2344 = vmatpush1.bf16.msra.mxu0 0
        %2345 = vmatprep.mubr.bf16.mxu0 0
        %2346 = vmatmul.mubr.bf16.gmra.mrb[0].mxu0 %v2311
        %v2347 = vpop.f32.mrb[0].mxu0
        %v2348 = vadd.f32 0.0, %v2347
        %v2349 = vpop.f32.mrb[0].mxu0
        %v2350 = vpop.f32.mrb[0].mxu0
        %v2351 = vpop.f32.mrb[0].mxu0
        %2352 = vdwg.mxu0
        %2353 = vmatprep.subr.bf16.mxu0 0
        %2354 = vmatpush1.bf16.msra.mxu0 %v2222
        %2355 = vmatprep.subr.bf16.mxu0 0
        %2356 = vmatpush1.bf16.msra.mxu0 %v2223
        %2357 = vmatprep.subr.bf16.mxu0 0
        %2358 = vmatpush1.bf16.msra.mxu0 0
        %2359 = vmatprep.subr.bf16.mxu0 0
        %2360 = vmatpush1.bf16.msra.mxu0 0
        %2361 = vmatprep.subr.bf16.mxu0 0
        %2362 = vmatpush1.bf16.msra.mxu0 0
        %2363 = vmatprep.subr.bf16.mxu0 0
        %2364 = vmatpush1.bf16.msra.mxu0 0
        %2365 = vmatprep.subr.bf16.mxu0 0
        %2366 = vmatpush1.bf16.msra.mxu0 0
        %2367 = vmatprep.subr.bf16.mxu0 0
        %2368 = vmatpush1.bf16.msra.mxu0 0
        %2369 = vmatprep.subr.bf16.mxu0 0
        %2370 = vmatpush1.bf16.msra.mxu0 0
        %2371 = vmatprep.subr.bf16.mxu0 0
        %2372 = vmatpush1.bf16.msra.mxu0 0
        %2373 = vmatprep.subr.bf16.mxu0 0
        %2374 = vmatpush1.bf16.msra.mxu0 0
        %2375 = vmatprep.subr.bf16.mxu0 0
        %2376 = vmatpush1.bf16.msra.mxu0 0
        %2377 = vmatprep.subr.bf16.mxu0 0
        %2378 = vmatpush1.bf16.msra.mxu0 0
        %2379 = vmatprep.subr.bf16.mxu0 0
        %2380 = vmatpush1.bf16.msra.mxu0 0
        %2381 = vmatprep.subr.bf16.mxu0 0
        %2382 = vmatpush1.bf16.msra.mxu0 0
        %2383 = vmatprep.subr.bf16.mxu0 0
        %2384 = vmatpush1.bf16.msra.mxu0 0
        %2385 = vmatprep.mubr.bf16.mxu0 0
        %2386 = vmatmul.mubr.bf16.gmra.mrb[0].mxu0 %v2172
        %v2387 = vpop.f32.mrb[0].mxu0
        %v2388 = vadd.f32 %v2348, %v2387
        %v2389 = vpop.f32.mrb[0].mxu0
        %v2390 = vpop.f32.mrb[0].mxu0
        %v2391 = vpop.f32.mrb[0].mxu0
        %2392 = vdwg.mxu0
        %v2393 = vadd.f32 %v2388, %v2100
        %v2394 = vmax.f32 %v2393, 0.0
        %2395 = vmatprep.subr.bf16.mxu0 0
        %2396 = vmatpush1.bf16.msra.mxu0 %v2110
        %2397 = vmatprep.subr.bf16.mxu0 0
        %2398 = vmatpush1.bf16.msra.mxu0 %v2111
        %2399 = vmatprep.subr.bf16.mxu0 0
        %2400 = vmatpush1.bf16.msra.mxu0 0
        %2401 = vmatprep.subr.bf16.mxu0 0
        %2402 = vmatpush1.bf16.msra.mxu0 0
        %2403 = vmatprep.subr.bf16.mxu0 0
        %2404 = vmatpush1.bf16.msra.mxu0 0
        %2405 = vmatprep.subr.bf16.mxu0 0
        %2406 = vmatpush1.bf16.msra.mxu0 0
        %2407 = vmatprep.subr.bf16.mxu0 0
        %2408 = vmatpush1.bf16.msra.mxu0 0
        %2409 = vmatprep.subr.bf16.mxu0 0
        %2410 = vmatpush1.bf16.msra.mxu0 0
        %2411 = vmatprep.subr.bf16.mxu0 0
        %2412 = vmatpush1.bf16.msra.mxu0 0
        %2413 = vmatprep.subr.bf16.mxu0 0
        %2414 = vmatpush1.bf16.msra.mxu0 0
        %2415 = vmatprep.subr.bf16.mxu0 0
        %2416 = vmatpush1.bf16.msra.mxu0 0
        %2417 = vmatprep.subr.bf16.mxu0 0
        %2418 = vmatpush1.bf16.msra.mxu0 0
        %2419 = vmatprep.subr.bf16.mxu0 0
        %2420 = vmatpush1.bf16.msra.mxu0 0
        %2421 = vmatprep.subr.bf16.mxu0 0
        %2422 = vmatpush1.bf16.msra.mxu0 0
        %2423 = vmatprep.subr.bf16.mxu0 0
        %2424 = vmatpush1.bf16.msra.mxu0 0
        %2425 = vmatprep.subr.bf16.mxu0 0
        %2426 = vmatpush1.bf16.msra.mxu0 0
        %2427 = vmatprep.mubr.bf16.mxu0 0
        %2428 = vmatmul.mubr.bf16.gmra.mrb[0].mxu0 %v2311
        %v2429 = vpop.f32.mrb[0].mxu0
        %v2430 = vadd.f32 %v2100, %v2429
        %v2431 = vpop.f32.mrb[0].mxu0
        %v2432 = vpop.f32.mrb[0].mxu0
        %v2433 = vpop.f32.mrb[0].mxu0
        %2434 = vdwg.mxu0
        %v2435 = vmax.f32 %v2430, 0.0
        %v2436 = vpack.c.bf16 %v2079, %v2079
        %v2438 = vsel %vm841, %v2436, 0
        %2440 = vmatprep.subr.bf16.mxu0 0
        %2441 = vmatpush1.bf16.msra.mxu0 %v2167
        %2442 = vmatprep.subr.bf16.mxu0 0
        %2443 = vmatpush1.bf16.msra.mxu0 %v2168
        %2444 = vmatprep.subr.bf16.mxu0 0
        %2445 = vmatpush1.bf16.msra.mxu0 0
        %2446 = vmatprep.subr.bf16.mxu0 0
        %2447 = vmatpush1.bf16.msra.mxu0 0
        %2448 = vmatprep.subr.bf16.mxu0 0
        %2449 = vmatpush1.bf16.msra.mxu0 0
        %2450 = vmatprep.subr.bf16.mxu0 0
        %2451 = vmatpush1.bf16.msra.mxu0 0
        %2452 = vmatprep.subr.bf16.mxu0 0
        %2453 = vmatpush1.bf16.msra.mxu0 0
        %2454 = vmatprep.subr.bf16.mxu0 0
        %2455 = vmatpush1.bf16.msra.mxu0 0
        %2456 = vmatprep.subr.bf16.mxu0 0
        %2457 = vmatpush1.bf16.msra.mxu0 0
        %2458 = vmatprep.subr.bf16.mxu0 0
        %2459 = vmatpush1.bf16.msra.mxu0 0
        %2460 = vmatprep.subr.bf16.mxu0 0
        %2461 = vmatpush1.bf16.msra.mxu0 0
        %2462 = vmatprep.subr.bf16.mxu0 0
        %2463 = vmatpush1.bf16.msra.mxu0 0
        %2464 = vmatprep.subr.bf16.mxu0 0
        %2465 = vmatpush1.bf16.msra.mxu0 0
        %2466 = vmatprep.subr.bf16.mxu0 0
        %2467 = vmatpush1.bf16.msra.mxu0 0
        %2468 = vmatprep.subr.bf16.mxu0 0
        %2469 = vmatpush1.bf16.msra.mxu0 0
        %2470 = vmatprep.subr.bf16.mxu0 0
        %2471 = vmatpush1.bf16.msra.mxu0 0
        %2472 = vmatprep.mubr.bf16.mxu0 0
        %2473 = vmatmul.mubr.bf16.gmra.mrb[0].mxu0 %v2438
        %v2474 = vpop.f32.mrb[0].mxu0
        %v2475 = vadd.f32 0.0, %v2474
        %v2476 = vpop.f32.mrb[0].mxu0
        %v2477 = vpop.f32.mrb[0].mxu0
        %v2478 = vpop.f32.mrb[0].mxu0
        %2479 = vdwg.mxu0
        %2480 = vmatprep.subr.bf16.mxu0 0
        %2481 = vmatpush1.bf16.msra.mxu0 %v2222
        %2482 = vmatprep.subr.bf16.mxu0 0
        %2483 = vmatpush1.bf16.msra.mxu0 %v2223
        %2484 = vmatprep.subr.bf16.mxu0 0
        %2485 = vmatpush1.bf16.msra.mxu0 0
        %2486 = vmatprep.subr.bf16.mxu0 0
        %2487 = vmatpush1.bf16.msra.mxu0 0
        %2488 = vmatprep.subr.bf16.mxu0 0
        %2489 = vmatpush1.bf16.msra.mxu0 0
        %2490 = vmatprep.subr.bf16.mxu0 0
        %2491 = vmatpush1.bf16.msra.mxu0 0
        %2492 = vmatprep.subr.bf16.mxu0 0
        %2493 = vmatpush1.bf16.msra.mxu0 0
        %2494 = vmatprep.subr.bf16.mxu0 0
        %2495 = vmatpush1.bf16.msra.mxu0 0
        %2496 = vmatprep.subr.bf16.mxu0 0
        %2497 = vmatpush1.bf16.msra.mxu0 0
        %2498 = vmatprep.subr.bf16.mxu0 0
        %2499 = vmatpush1.bf16.msra.mxu0 0
        %2500 = vmatprep.subr.bf16.mxu0 0
        %2501 = vmatpush1.bf16.msra.mxu0 0
        %2502 = vmatprep.subr.bf16.mxu0 0
        %2503 = vmatpush1.bf16.msra.mxu0 0
        %2504 = vmatprep.subr.bf16.mxu0 0
        %2505 = vmatpush1.bf16.msra.mxu0 0
        %2506 = vmatprep.subr.bf16.mxu0 0
        %2507 = vmatpush1.bf16.msra.mxu0 0
        %2508 = vmatprep.subr.bf16.mxu0 0
        %2509 = vmatpush1.bf16.msra.mxu0 0
        %2510 = vmatprep.subr.bf16.mxu0 0
        %2511 = vmatpush1.bf16.msra.mxu0 0
        %2512 = vmatprep.mubr.bf16.mxu0 0
        %2513 = vmatmul.mubr.bf16.gmra.mrb[0].mxu0 %v2311
        %v2514 = vpop.f32.mrb[0].mxu0
        %v2515 = vadd.f32 %v2475, %v2514
        %v2516 = vpop.f32.mrb[0].mxu0
        %v2517 = vpop.f32.mrb[0].mxu0
        %v2518 = vpop.f32.mrb[0].mxu0
        %2519 = vdwg.mxu0
        %v2520 = vadd.f32 %v2515, %v2100
        %v2521 = vmax.f32 %v2520, 0.0
        %v2523 = vrot.slane %v1814, 1
        %v2525 = vsel %vm1532, %v2523, 0.0
        %2526 = vmatprep.subr.bf16.mxu0 0
        %2527 = vmatpush1.bf16.msra.mxu0 %v2110
        %2528 = vmatprep.subr.bf16.mxu0 0
        %2529 = vmatpush1.bf16.msra.mxu0 %v2111
        %2530 = vmatprep.subr.bf16.mxu0 0
        %2531 = vmatpush1.bf16.msra.mxu0 0
        %2532 = vmatprep.subr.bf16.mxu0 0
        %2533 = vmatpush1.bf16.msra.mxu0 0
        %2534 = vmatprep.subr.bf16.mxu0 0
        %2535 = vmatpush1.bf16.msra.mxu0 0
        %2536 = vmatprep.subr.bf16.mxu0 0
        %2537 = vmatpush1.bf16.msra.mxu0 0
        %2538 = vmatprep.subr.bf16.mxu0 0
        %2539 = vmatpush1.bf16.msra.mxu0 0
        %2540 = vmatprep.subr.bf16.mxu0 0
        %2541 = vmatpush1.bf16.msra.mxu0 0
        %2542 = vmatprep.subr.bf16.mxu0 0
        %2543 = vmatpush1.bf16.msra.mxu0 0
        %2544 = vmatprep.subr.bf16.mxu0 0
        %2545 = vmatpush1.bf16.msra.mxu0 0
        %2546 = vmatprep.subr.bf16.mxu0 0
        %2547 = vmatpush1.bf16.msra.mxu0 0
        %2548 = vmatprep.subr.bf16.mxu0 0
        %2549 = vmatpush1.bf16.msra.mxu0 0
        %2550 = vmatprep.subr.bf16.mxu0 0
        %2551 = vmatpush1.bf16.msra.mxu0 0
        %2552 = vmatprep.subr.bf16.mxu0 0
        %2553 = vmatpush1.bf16.msra.mxu0 0
        %2554 = vmatprep.subr.bf16.mxu0 0
        %2555 = vmatpush1.bf16.msra.mxu0 0
        %2556 = vmatprep.subr.bf16.mxu0 0
        %2557 = vmatpush1.bf16.msra.mxu0 0
        %2558 = vmatprep.mubr.bf16.mxu0 0
        %2559 = vmatmul.mubr.bf16.gmra.mrb[0].mxu0 %v2438
        %v2560 = vpop.f32.mrb[0].mxu0
        %v2561 = vadd.f32 %v2100, %v2560
        %v2562 = vpop.f32.mrb[0].mxu0
        %v2563 = vpop.f32.mrb[0].mxu0
        %v2564 = vpop.f32.mrb[0].mxu0
        %2565 = vdwg.mxu0
        %v2566 = vmax.f32 %v2561, 0.0
        %v2567 = vpack.c.bf16 %v2525, %v2525
        %v2569 = vsel %vm841, %v2567, 0
        %2571 = vmatprep.subr.bf16.mxu0 0
        %2572 = vmatpush1.bf16.msra.mxu0 %v2167
        %2573 = vmatprep.subr.bf16.mxu0 0
        %2574 = vmatpush1.bf16.msra.mxu0 %v2168
        %2575 = vmatprep.subr.bf16.mxu0 0
        %2576 = vmatpush1.bf16.msra.mxu0 0
        %2577 = vmatprep.subr.bf16.mxu0 0
        %2578 = vmatpush1.bf16.msra.mxu0 0
        %2579 = vmatprep.subr.bf16.mxu0 0
        %2580 = vmatpush1.bf16.msra.mxu0 0
        %2581 = vmatprep.subr.bf16.mxu0 0
        %2582 = vmatpush1.bf16.msra.mxu0 0
        %2583 = vmatprep.subr.bf16.mxu0 0
        %2584 = vmatpush1.bf16.msra.mxu0 0
        %2585 = vmatprep.subr.bf16.mxu0 0
        %2586 = vmatpush1.bf16.msra.mxu0 0
        %2587 = vmatprep.subr.bf16.mxu0 0
        %2588 = vmatpush1.bf16.msra.mxu0 0
        %2589 = vmatprep.subr.bf16.mxu0 0
        %2590 = vmatpush1.bf16.msra.mxu0 0
        %2591 = vmatprep.subr.bf16.mxu0 0
        %2592 = vmatpush1.bf16.msra.mxu0 0
        %2593 = vmatprep.subr.bf16.mxu0 0
        %2594 = vmatpush1.bf16.msra.mxu0 0
        %2595 = vmatprep.subr.bf16.mxu0 0
        %2596 = vmatpush1.bf16.msra.mxu0 0
        %2597 = vmatprep.subr.bf16.mxu0 0
        %2598 = vmatpush1.bf16.msra.mxu0 0
        %2599 = vmatprep.subr.bf16.mxu0 0
        %2600 = vmatpush1.bf16.msra.mxu0 0
        %2601 = vmatprep.subr.bf16.mxu0 0
        %2602 = vmatpush1.bf16.msra.mxu0 0
        %2603 = vmatprep.mubr.bf16.mxu0 0
        %2604 = vmatmul.mubr.bf16.gmra.mrb[0].mxu0 %v2569
        %v2605 = vpop.f32.mrb[0].mxu0
        %v2606 = vadd.f32 0.0, %v2605
        %v2607 = vpop.f32.mrb[0].mxu0
        %v2608 = vpop.f32.mrb[0].mxu0
        %v2609 = vpop.f32.mrb[0].mxu0
        %2610 = vdwg.mxu0
        %2611 = vmatprep.subr.bf16.mxu0 0
        %2612 = vmatpush1.bf16.msra.mxu0 %v2222
        %2613 = vmatprep.subr.bf16.mxu0 0
        %2614 = vmatpush1.bf16.msra.mxu0 %v2223
        %2615 = vmatprep.subr.bf16.mxu0 0
        %2616 = vmatpush1.bf16.msra.mxu0 0
        %2617 = vmatprep.subr.bf16.mxu0 0
        %2618 = vmatpush1.bf16.msra.mxu0 0
        %2619 = vmatprep.subr.bf16.mxu0 0
        %2620 = vmatpush1.bf16.msra.mxu0 0
        %2621 = vmatprep.subr.bf16.mxu0 0
        %2622 = vmatpush1.bf16.msra.mxu0 0
        %2623 = vmatprep.subr.bf16.mxu0 0
        %2624 = vmatpush1.bf16.msra.mxu0 0
        %2625 = vmatprep.subr.bf16.mxu0 0
        %2626 = vmatpush1.bf16.msra.mxu0 0
        %2627 = vmatprep.subr.bf16.mxu0 0
        %2628 = vmatpush1.bf16.msra.mxu0 0
        %2629 = vmatprep.subr.bf16.mxu0 0
        %2630 = vmatpush1.bf16.msra.mxu0 0
        %2631 = vmatprep.subr.bf16.mxu0 0
        %2632 = vmatpush1.bf16.msra.mxu0 0
        %2633 = vmatprep.subr.bf16.mxu0 0
        %2634 = vmatpush1.bf16.msra.mxu0 0
        %2635 = vmatprep.subr.bf16.mxu0 0
        %2636 = vmatpush1.bf16.msra.mxu0 0
        %2637 = vmatprep.subr.bf16.mxu0 0
        %2638 = vmatpush1.bf16.msra.mxu0 0
        %2639 = vmatprep.subr.bf16.mxu0 0
        %2640 = vmatpush1.bf16.msra.mxu0 0
        %2641 = vmatprep.subr.bf16.mxu0 0
        %2642 = vmatpush1.bf16.msra.mxu0 0
        %2643 = vmatprep.mubr.bf16.mxu0 0
        %2644 = vmatmul.mubr.bf16.gmra.mrb[0].mxu0 %v2438
        %v2645 = vpop.f32.mrb[0].mxu0
        %v2646 = vadd.f32 %v2606, %v2645
        %v2647 = vpop.f32.mrb[0].mxu0
        %v2648 = vpop.f32.mrb[0].mxu0
        %v2649 = vpop.f32.mrb[0].mxu0
        %2650 = vdwg.mxu0
        %v2651 = vadd.f32 %v2646, %v2100
        %v2652 = vmax.f32 %v2651, 0.0
        %2654 = vrot.lane.b32.xlu0 %v2267, 1
        %v2655 = vpop.permute.xlu0 %2654
        %2658 = vrot.lane.b32.xlu0 %v2308, 2
        %v2659 = vpop.permute.xlu0 %2658
        %2662 = vrot.lane.b32.xlu0 %v2394, 3
        %v2663 = vpop.permute.xlu0 %2662
        %2666 = vrot.lane.b32.xlu0 %v2435, 4
        %v2667 = vpop.permute.xlu0 %2666
        %2670 = vrot.lane.b32.xlu0 %v2521, 5
        %v2671 = vpop.permute.xlu0 %2670
        %2674 = vrot.lane.b32.xlu0 %v2566, 6
        %v2675 = vpop.permute.xlu0 %2674
        %2678 = vrot.lane.b32.xlu0 %v2652, 7
        %v2679 = vpop.permute.xlu0 %2678
        %vm2681 = vcmask 7168
        %v2682 = vsel %vm2681, %v2157, %v2655
        %vm2683 = vcmask 15360
        %v2684 = vsel %vm2683, %v2682, %v2659
        %vm2685 = vcmask 23552
        %v2686 = vsel %vm2685, %v2684, %v2663
        %vm2687 = vcmask 31744
        %v2688 = vsel %vm2687, %v2686, %v2667
        %vm2689 = vcmask 39936
        %v2690 = vsel %vm2689, %v2688, %v2671
        %vm2691 = vcmask 48128
        %v2692 = vsel %vm2691, %v2690, %v2675
        %vm2693 = vcmask 56320
        %v2694 = vsel %vm2693, %v2692, %v2679
        %vm2695 = vcmask 64512
        %2696 = vst.msk [vmem:[%s703] sm:$0xff] %vm2695, %v2694
        %v2697 = vrot.slane %v1380, 2
        %v2699 = vrot.slane %v1380, 3
        %v2701 = vrot.slane %v1380, 4
        %v2703 = vrot.slane %v1380, 5
        %v2705 = vrot.slane %v1380, 6
        %v2707 = vrot.slane %v1380, 7
        %v2709 = vld [vmem:[%s13] sm:$0xf]
        %v2710 = vld [vmem:[%s13 + $0x4] sm:$0xf]
        %v2711 = vld [vmem:[%s13 + $0x8] sm:$0xf]
        %v2712 = vld [vmem:[%s13 + $0xc] sm:$0xf]
        %v2713 = vld [vmem:[%s13 + $0x10] sm:$0xf]
        %v2714 = vld [vmem:[%s13 + $0x14] sm:$0xf]
        %v2715 = vld [vmem:[%s13 + $0x18] sm:$0xf]
        %v2716 = vld [vmem:[%s13 + $0x1c] sm:$0xf]
        %v2717 = vld [vmem:[%s13 + $0x20] sm:$0xf]
        %v2718 = vld [vmem:[%s13 + $0x24] sm:$0xf]
        %v2719 = vld [vmem:[%s13 + $0x28] sm:$0xf]
        %v2720 = vld [vmem:[%s13 + $0x2c] sm:$0xf]
        %v2721 = vld [vmem:[%s13 + $0x30] sm:$0xf]
        %v2722 = vld [vmem:[%s13 + $0x34] sm:$0xf]
        %v2723 = vld [vmem:[%s13 + $0x38] sm:$0xf]
        %v2724 = vld [vmem:[%s13 + $0x3c] sm:$0xf]
        %v2725 = vld [vmem:[%s13 + $0x40] sm:$0xf]
        %v2726 = vld [vmem:[%s13 + $0x44] sm:$0xf]
        %v2727 = vld [vmem:[%s13 + $0x48] sm:$0xf]
        %v2728 = vld [vmem:[%s13 + $0x4c] sm:$0xf]
        %v2729 = vld [vmem:[%s13 + $0x50] sm:$0xf]
        %v2730 = vld [vmem:[%s13 + $0x54] sm:$0xf]
        %v2731 = vld [vmem:[%s13 + $0x58] sm:$0xf]
        %v2732 = vld [vmem:[%s13 + $0x5c] sm:$0xf]
        %v2733 = vld [vmem:[%s13 + $0x60] sm:$0xf]
        %v2734 = vld [vmem:[%s13 + $0x64] sm:$0xf]
        %v2735 = vld [vmem:[%s13 + $0x68] sm:$0xf]
        %v2736 = vld [vmem:[%s13 + $0x6c] sm:$0xf]
        %v2737 = vld [vmem:[%s13 + $0x70] sm:$0xf]
        %v2738 = vld [vmem:[%s13 + $0x74] sm:$0xf]
        %v2739 = vld [vmem:[%s13 + $0x78] sm:$0xf]
        %v2740 = vld [vmem:[%s13 + $0x7c] sm:$0xf]
        %v2741 = vld [vmem:[%s13 + $0x80] sm:$0xf]
        %v2742 = vld [vmem:[%s13 + $0x84] sm:$0xf]
        %v2743 = vld [vmem:[%s13 + $0x88] sm:$0xf]
        %v2744 = vld [vmem:[%s13 + $0x8c] sm:$0xf]
        %v2745 = vld [vmem:[%s13 + $0x90] sm:$0xf]
        %v2746 = vld [vmem:[%s13 + $0x94] sm:$0xf]
        %v2747 = vld [vmem:[%s13 + $0x98] sm:$0xf]
        %v2748 = vld [vmem:[%s13 + $0x9c] sm:$0xf]
        %v2749 = vld [vmem:[%s13 + $0xa0] sm:$0xf]
        %v2750 = vld [vmem:[%s13 + $0xa4] sm:$0xf]
        %v2751 = vld [vmem:[%s13 + $0xa8] sm:$0xf]
        %v2752 = vld [vmem:[%s13 + $0xac] sm:$0xf]
        %v2753 = vld [vmem:[%s13 + $0xb0] sm:$0xf]
        %v2754 = vld [vmem:[%s13 + $0xb4] sm:$0xf]
        %v2755 = vld [vmem:[%s13 + $0xb8] sm:$0xf]
        %v2756 = vld [vmem:[%s13 + $0xbc] sm:$0xf]
        %v2757 = vld [vmem:[%s13 + $0xc0] sm:$0xf]
        %v2758 = vld [vmem:[%s13 + $0xc4] sm:$0xf]
        %v2759 = vld [vmem:[%s13 + $0xc8] sm:$0xf]
        %v2760 = vld [vmem:[%s13 + $0xcc] sm:$0xf]
        %v2761 = vld [vmem:[%s13 + $0xd0] sm:$0xf]
        %v2762 = vld [vmem:[%s13 + $0xd4] sm:$0xf]
        %v2763 = vld [vmem:[%s13 + $0xd8] sm:$0xf]
        %v2764 = vld [vmem:[%s13 + $0xdc] sm:$0xf]
        %v2765 = vld [vmem:[%s13 + $0xe0] sm:$0xf]
        %v2766 = vld [vmem:[%s13 + $0xe4] sm:$0xf]
        %v2767 = vld [vmem:[%s13 + $0xe8] sm:$0xf]
        %v2768 = vld [vmem:[%s13 + $0xec] sm:$0xf]
        %v2769 = vld [vmem:[%s13 + $0xf0] sm:$0xf]
        %v2770 = vld [vmem:[%s13 + $0xf4] sm:$0xf]
        %v2771 = vld [vmem:[%s13 + $0xf8] sm:$0xf]
        %v2772 = vld [vmem:[%s13 + $0xfc] sm:$0xf]
        %v2773 = vld [vmem:[%s13 + $0x100] sm:$0xf]
        %v2774 = vld [vmem:[%s13 + $0x104] sm:$0xf]
        %v2775 = vld [vmem:[%s13 + $0x108] sm:$0xf]
        %v2776 = vld [vmem:[%s13 + $0x10c] sm:$0xf]
        %v2777 = vld [vmem:[%s13 + $0x110] sm:$0xf]
        %v2778 = vld [vmem:[%s13 + $0x114] sm:$0xf]
        %v2779 = vld [vmem:[%s13 + $0x118] sm:$0xf]
        %v2780 = vld [vmem:[%s13 + $0x11c] sm:$0xf]
        %v2781 = vld [vmem:[%s13 + $0x120] sm:$0xf]
        %v2782 = vld [vmem:[%s13 + $0x124] sm:$0xf]
        %v2783 = vld [vmem:[%s13 + $0x128] sm:$0xf]
        %v2784 = vld [vmem:[%s13 + $0x12c] sm:$0xf]
        %v2785 = vld [vmem:[%s13 + $0x130] sm:$0xf]
        %v2786 = vld [vmem:[%s13 + $0x134] sm:$0xf]
        %v2787 = vld [vmem:[%s13 + $0x138] sm:$0xf]
        %v2788 = vld [vmem:[%s13 + $0x13c] sm:$0xf]
        %v2789 = vld [vmem:[%s13 + $0x140] sm:$0xf]
        %v2790 = vld [vmem:[%s13 + $0x144] sm:$0xf]
        %v2791 = vld [vmem:[%s13 + $0x148] sm:$0xf]
        %v2792 = vld [vmem:[%s13 + $0x14c] sm:$0xf]
        %v2793 = vld [vmem:[%s13 + $0x150] sm:$0xf]
        %v2794 = vld [vmem:[%s13 + $0x154] sm:$0xf]
        %v2795 = vld [vmem:[%s13 + $0x158] sm:$0xf]
        %v2796 = vld [vmem:[%s13 + $0x15c] sm:$0xf]
        %v2797 = vld [vmem:[%s13 + $0x160] sm:$0xf]
        %v2798 = vld [vmem:[%s13 + $0x164] sm:$0xf]
        %v2799 = vld [vmem:[%s13 + $0x168] sm:$0xf]
        %v2800 = vld [vmem:[%s13 + $0x16c] sm:$0xf]
        %v2801 = vld [vmem:[%s13 + $0x170] sm:$0xf]
        %v2802 = vld [vmem:[%s13 + $0x174] sm:$0xf]
        %v2803 = vld [vmem:[%s13 + $0x178] sm:$0xf]
        %v2804 = vld [vmem:[%s13 + $0x17c] sm:$0xf]
        %v2805 = vld [vmem:[%s13 + $0x180] sm:$0xf]
        %v2806 = vld [vmem:[%s13 + $0x184] sm:$0xf]
        %v2807 = vld [vmem:[%s13 + $0x188] sm:$0xf]
        %v2808 = vld [vmem:[%s13 + $0x18c] sm:$0xf]
        %v2809 = vld [vmem:[%s13 + $0x190] sm:$0xf]
        %v2810 = vld [vmem:[%s13 + $0x194] sm:$0xf]
        %v2811 = vld [vmem:[%s13 + $0x198] sm:$0xf]
        %v2812 = vld [vmem:[%s13 + $0x19c] sm:$0xf]
        %v2813 = vld [vmem:[%s13 + $0x1a0] sm:$0xf]
        %v2814 = vld [vmem:[%s13 + $0x1a4] sm:$0xf]
        %v2815 = vld [vmem:[%s13 + $0x1a8] sm:$0xf]
        %v2816 = vld [vmem:[%s13 + $0x1ac] sm:$0xf]
        %v2817 = vld [vmem:[%s13 + $0x1b0] sm:$0xf]
        %v2818 = vld [vmem:[%s13 + $0x1b4] sm:$0xf]
        %v2819 = vld [vmem:[%s13 + $0x1b8] sm:$0xf]
        %v2820 = vld [vmem:[%s13 + $0x1bc] sm:$0xf]
        %v2821 = vld [vmem:[%s13 + $0x1c0] sm:$0xf]
        %v2822 = vld [vmem:[%s13 + $0x1c4] sm:$0xf]
        %v2823 = vld [vmem:[%s13 + $0x1c8] sm:$0xf]
        %v2824 = vld [vmem:[%s13 + $0x1cc] sm:$0xf]
        %v2825 = vld [vmem:[%s13 + $0x1d0] sm:$0xf]
        %v2826 = vld [vmem:[%s13 + $0x1d4] sm:$0xf]
        %v2827 = vld [vmem:[%s13 + $0x1d8] sm:$0xf]
        %v2828 = vld [vmem:[%s13 + $0x1dc] sm:$0xf]
        %v2829 = vld [vmem:[%s13 + $0x1e0] sm:$0xf]
        %v2830 = vld [vmem:[%s13 + $0x1e4] sm:$0xf]
        %v2831 = vld [vmem:[%s13 + $0x1e8] sm:$0xf]
        %v2832 = vld [vmem:[%s13 + $0x1ec] sm:$0xf]
        %v2833 = vld [vmem:[%s13 + $0x1f0] sm:$0xf]
        %v2834 = vld [vmem:[%s13 + $0x1f4] sm:$0xf]
        %v2835 = vld [vmem:[%s13 + $0x1f8] sm:$0xf]
        %v2836 = vld [vmem:[%s13 + $0x1fc] sm:$0xf]
        %v2837 = vpack.c.bf16 %v1530, %v1530
        %v2838 = vpack.c.bf16 %v2697, %v2697
        %v2839 = vpack.c.bf16 %v2699, %v2699
        %v2840 = vpack.c.bf16 %v2701, %v2701
        %v2841 = vpack.c.bf16 %v2703, %v2703
        %v2842 = vpack.c.bf16 %v2705, %v2705
        %v2843 = vpack.c.bf16 %v2707, %v2707
        %v2844 = vld [vmem:[%s14] sm:$0x1]
        %v2973 = vunpack.c.l.b16 %v2709
        %v2974 = vunpack.c.l.b16 %v2710
        %v2975 = vunpack.c.l.b16 %v2711
        %v2976 = vunpack.c.l.b16 %v2712
        %v2977 = vunpack.c.l.b16 %v2713
        %v2978 = vunpack.c.l.b16 %v2714
        %v2979 = vunpack.c.l.b16 %v2715
        %v2980 = vunpack.c.l.b16 %v2716
        %v2981 = vunpack.c.l.b16 %v2717
        %v2982 = vunpack.c.l.b16 %v2718
        %v2983 = vunpack.c.l.b16 %v2719
        %v2984 = vunpack.c.l.b16 %v2720
        %v2985 = vunpack.c.l.b16 %v2721
        %v2986 = vunpack.c.l.b16 %v2722
        %v2987 = vunpack.c.l.b16 %v2723
        %v2988 = vunpack.c.l.b16 %v2724
        %v2989 = vunpack.c.l.b16 %v2725
        %v2990 = vunpack.c.l.b16 %v2726
        %v2991 = vunpack.c.l.b16 %v2727
        %v2992 = vunpack.c.l.b16 %v2728
        %v2993 = vunpack.c.l.b16 %v2729
        %v2994 = vunpack.c.l.b16 %v2730
        %v2995 = vunpack.c.l.b16 %v2731
        %v2996 = vunpack.c.l.b16 %v2732
        %v2997 = vunpack.c.l.b16 %v2733
        %v2998 = vunpack.c.l.b16 %v2734
        %v2999 = vunpack.c.l.b16 %v2735
        %v3000 = vunpack.c.l.b16 %v2736
        %v3001 = vunpack.c.l.b16 %v2737
        %v3002 = vunpack.c.l.b16 %v2738
        %v3003 = vunpack.c.l.b16 %v2739
        %v3004 = vunpack.c.l.b16 %v2740
        %v3005 = vunpack.c.l.b16 %v2741
        %v3006 = vunpack.c.l.b16 %v2742
        %v3007 = vunpack.c.l.b16 %v2743
        %v3008 = vunpack.c.l.b16 %v2744
        %v3009 = vunpack.c.l.b16 %v2745
        %v3010 = vunpack.c.l.b16 %v2746
        %v3011 = vunpack.c.l.b16 %v2747
        %v3012 = vunpack.c.l.b16 %v2748
        %v3013 = vunpack.c.l.b16 %v2749
        %v3014 = vunpack.c.l.b16 %v2750
        %v3015 = vunpack.c.l.b16 %v2751
        %v3016 = vunpack.c.l.b16 %v2752
        %v3017 = vunpack.c.l.b16 %v2753
        %v3018 = vunpack.c.l.b16 %v2754
        %v3019 = vunpack.c.l.b16 %v2755
        %v3020 = vunpack.c.l.b16 %v2756
        %v3021 = vunpack.c.l.b16 %v2757
        %v3022 = vunpack.c.l.b16 %v2758
        %v3023 = vunpack.c.l.b16 %v2759
        %v3024 = vunpack.c.l.b16 %v2760
        %v3025 = vunpack.c.l.b16 %v2761
        %v3026 = vunpack.c.l.b16 %v2762
        %v3027 = vunpack.c.l.b16 %v2763
        %v3028 = vunpack.c.l.b16 %v2764
        %v3029 = vunpack.c.l.b16 %v2765
        %v3030 = vunpack.c.l.b16 %v2766
        %v3031 = vunpack.c.l.b16 %v2767
        %v3032 = vunpack.c.l.b16 %v2768
        %v3033 = vunpack.c.l.b16 %v2769
        %v3034 = vunpack.c.l.b16 %v2770
        %v3035 = vunpack.c.l.b16 %v2771
        %v3036 = vunpack.c.l.b16 %v2772
        %v3037 = vunpack.c.l.b16 %v2773
        %v3038 = vunpack.c.l.b16 %v2774
        %v3039 = vunpack.c.l.b16 %v2775
        %v3040 = vunpack.c.l.b16 %v2776
        %v3041 = vunpack.c.l.b16 %v2777
        %v3042 = vunpack.c.l.b16 %v2778
        %v3043 = vunpack.c.l.b16 %v2779
        %v3044 = vunpack.c.l.b16 %v2780
        %v3045 = vunpack.c.l.b16 %v2781
        %v3046 = vunpack.c.l.b16 %v2782
        %v3047 = vunpack.c.l.b16 %v2783
        %v3048 = vunpack.c.l.b16 %v2784
        %v3049 = vunpack.c.l.b16 %v2785
        %v3050 = vunpack.c.l.b16 %v2786
        %v3051 = vunpack.c.l.b16 %v2787
        %v3052 = vunpack.c.l.b16 %v2788
        %v3053 = vunpack.c.l.b16 %v2789
        %v3054 = vunpack.c.l.b16 %v2790
        %v3055 = vunpack.c.l.b16 %v2791
        %v3056 = vunpack.c.l.b16 %v2792
        %v3057 = vunpack.c.l.b16 %v2793
        %v3058 = vunpack.c.l.b16 %v2794
        %v3059 = vunpack.c.l.b16 %v2795
        %v3060 = vunpack.c.l.b16 %v2796
        %v3061 = vunpack.c.l.b16 %v2797
        %v3062 = vunpack.c.l.b16 %v2798
        %v3063 = vunpack.c.l.b16 %v2799
        %v3064 = vunpack.c.l.b16 %v2800
        %v3065 = vunpack.c.l.b16 %v2801
        %v3066 = vunpack.c.l.b16 %v2802
        %v3067 = vunpack.c.l.b16 %v2803
        %v3068 = vunpack.c.l.b16 %v2804
        %v3069 = vunpack.c.l.b16 %v2805
        %v3070 = vunpack.c.l.b16 %v2806
        %v3071 = vunpack.c.l.b16 %v2807
        %v3072 = vunpack.c.l.b16 %v2808
        %v3073 = vunpack.c.l.b16 %v2809
        %v3074 = vunpack.c.l.b16 %v2810
        %v3075 = vunpack.c.l.b16 %v2811
        %v3076 = vunpack.c.l.b16 %v2812
        %v3077 = vunpack.c.l.b16 %v2813
        %v3078 = vunpack.c.l.b16 %v2814
        %v3079 = vunpack.c.l.b16 %v2815
        %v3080 = vunpack.c.l.b16 %v2816
        %v3081 = vunpack.c.l.b16 %v2817
        %v3082 = vunpack.c.l.b16 %v2818
        %v3083 = vunpack.c.l.b16 %v2819
        %v3084 = vunpack.c.l.b16 %v2820
        %v3085 = vunpack.c.l.b16 %v2821
        %v3086 = vunpack.c.l.b16 %v2822
        %v3087 = vunpack.c.l.b16 %v2823
        %v3088 = vunpack.c.l.b16 %v2824
        %v3089 = vunpack.c.l.b16 %v2825
        %v3090 = vunpack.c.l.b16 %v2826
        %v3091 = vunpack.c.l.b16 %v2827
        %v3092 = vunpack.c.l.b16 %v2828
        %v3093 = vunpack.c.l.b16 %v2829
        %v3094 = vunpack.c.l.b16 %v2830
        %v3095 = vunpack.c.l.b16 %v2831
        %v3096 = vunpack.c.l.b16 %v2832
        %v3097 = vunpack.c.l.b16 %v2833
        %v3098 = vunpack.c.l.b16 %v2834
        %v3099 = vunpack.c.l.b16 %v2835
        %v3100 = vunpack.c.l.b16 %v2836
        %v3101 = vpack.c.b16 %v2974, %v2973
        %v3102 = vpack.c.b16 %v2976, %v2975
        %v3103 = vpack.c.b16 %v2978, %v2977
        %v3104 = vpack.c.b16 %v2980, %v2979
        %v3105 = vpack.c.b16 %v2982, %v2981
        %v3106 = vpack.c.b16 %v2984, %v2983
        %v3107 = vpack.c.b16 %v2986, %v2985
        %v3108 = vpack.c.b16 %v2988, %v2987
        %v3109 = vpack.c.b16 %v2990, %v2989
        %v3110 = vpack.c.b16 %v2992, %v2991
        %v3111 = vpack.c.b16 %v2994, %v2993
        %v3112 = vpack.c.b16 %v2996, %v2995
        %v3113 = vpack.c.b16 %v2998, %v2997
        %v3114 = vpack.c.b16 %v3000, %v2999
        %v3115 = vpack.c.b16 %v3002, %v3001
        %v3116 = vpack.c.b16 %v3004, %v3003
        %v3117 = vpack.c.b16 %v3006, %v3005
        %v3118 = vpack.c.b16 %v3008, %v3007
        %v3119 = vpack.c.b16 %v3010, %v3009
        %v3120 = vpack.c.b16 %v3012, %v3011
        %v3121 = vpack.c.b16 %v3014, %v3013
        %v3122 = vpack.c.b16 %v3016, %v3015
        %v3123 = vpack.c.b16 %v3018, %v3017
        %v3124 = vpack.c.b16 %v3020, %v3019
        %v3125 = vpack.c.b16 %v3022, %v3021
        %v3126 = vpack.c.b16 %v3024, %v3023
        %v3127 = vpack.c.b16 %v3026, %v3025
        %v3128 = vpack.c.b16 %v3028, %v3027
        %v3129 = vpack.c.b16 %v3030, %v3029
        %v3130 = vpack.c.b16 %v3032, %v3031
        %v3131 = vpack.c.b16 %v3034, %v3033
        %v3132 = vpack.c.b16 %v3036, %v3035
        %v3133 = vpack.c.b16 %v3038, %v3037
        %v3134 = vpack.c.b16 %v3040, %v3039
        %v3135 = vpack.c.b16 %v3042, %v3041
        %v3136 = vpack.c.b16 %v3044, %v3043
        %v3137 = vpack.c.b16 %v3046, %v3045
        %v3138 = vpack.c.b16 %v3048, %v3047
        %v3139 = vpack.c.b16 %v3050, %v3049
        %v3140 = vpack.c.b16 %v3052, %v3051
        %v3141 = vpack.c.b16 %v3054, %v3053
        %v3142 = vpack.c.b16 %v3056, %v3055
        %v3143 = vpack.c.b16 %v3058, %v3057
        %v3144 = vpack.c.b16 %v3060, %v3059
        %v3145 = vpack.c.b16 %v3062, %v3061
        %v3146 = vpack.c.b16 %v3064, %v3063
        %v3147 = vpack.c.b16 %v3066, %v3065
        %v3148 = vpack.c.b16 %v3068, %v3067
        %v3149 = vpack.c.b16 %v3070, %v3069
        %v3150 = vpack.c.b16 %v3072, %v3071
        %v3151 = vpack.c.b16 %v3074, %v3073
        %v3152 = vpack.c.b16 %v3076, %v3075
        %v3153 = vpack.c.b16 %v3078, %v3077
        %v3154 = vpack.c.b16 %v3080, %v3079
        %v3155 = vpack.c.b16 %v3082, %v3081
        %v3156 = vpack.c.b16 %v3084, %v3083
        %v3157 = vpack.c.b16 %v3086, %v3085
        %v3158 = vpack.c.b16 %v3088, %v3087
        %v3159 = vpack.c.b16 %v3090, %v3089
        %v3160 = vpack.c.b16 %v3092, %v3091
        %v3161 = vpack.c.b16 %v3094, %v3093
        %v3162 = vpack.c.b16 %v3096, %v3095
        %v3163 = vpack.c.b16 %v3098, %v3097
        %v3164 = vpack.c.b16 %v3100, %v3099
        %3229 = vmatprep.subr.bf16.mxu0 0
        %3230 = vmatpush1.bf16.msra.mxu0 %v3101
        %3231 = vmatprep.subr.bf16.mxu0 0
        %3232 = vmatpush1.bf16.msra.mxu0 %v3102
        %3233 = vmatprep.subr.bf16.mxu0 0
        %3234 = vmatpush1.bf16.msra.mxu0 %v3103
        %3235 = vmatprep.subr.bf16.mxu0 0
        %3236 = vmatpush1.bf16.msra.mxu0 %v3104
        %3237 = vmatprep.subr.bf16.mxu0 0
        %3238 = vmatpush1.bf16.msra.mxu0 %v3105
        %3239 = vmatprep.subr.bf16.mxu0 0
        %3240 = vmatpush1.bf16.msra.mxu0 %v3106
        %3241 = vmatprep.subr.bf16.mxu0 0
        %3242 = vmatpush1.bf16.msra.mxu0 %v3107
        %3243 = vmatprep.subr.bf16.mxu0 0
        %3244 = vmatpush1.bf16.msra.mxu0 %v3108
        %3245 = vmatprep.subr.bf16.mxu0 0
        %3246 = vmatpush1.bf16.msra.mxu0 %v3109
        %3247 = vmatprep.subr.bf16.mxu0 0
        %3248 = vmatpush1.bf16.msra.mxu0 %v3110
        %3249 = vmatprep.subr.bf16.mxu0 0
        %3250 = vmatpush1.bf16.msra.mxu0 %v3111
        %3251 = vmatprep.subr.bf16.mxu0 0
        %3252 = vmatpush1.bf16.msra.mxu0 %v3112
        %3253 = vmatprep.subr.bf16.mxu0 0
        %3254 = vmatpush1.bf16.msra.mxu0 %v3113
        %3255 = vmatprep.subr.bf16.mxu0 0
        %3256 = vmatpush1.bf16.msra.mxu0 %v3114
        %3257 = vmatprep.subr.bf16.mxu0 0
        %3258 = vmatpush1.bf16.msra.mxu0 %v3115
        %3259 = vmatprep.subr.bf16.mxu0 0
        %3260 = vmatpush1.bf16.msra.mxu0 %v3116
        %3261 = vmatprep.mubr.bf16.mxu0 %v2837
        %3262 = vmatmul.mubr.bf16.gmra.mrb[0].mxu0 %v1433
        %v3263 = vpop.f32.mrb[0].mxu0
        %v3264 = vadd.f32 %v2844, %v3263
        %v3265 = vpop.f32.mrb[0].mxu0
        %v3266 = vpop.f32.mrb[0].mxu0
        %v3267 = vpop.f32.mrb[0].mxu0
        %3268 = vdwg.mxu0
        %3269 = vmatprep.subr.bf16.mxu0 0
        %3270 = vmatpush1.bf16.msra.mxu0 %v3117
        %3271 = vmatprep.subr.bf16.mxu0 0
        %3272 = vmatpush1.bf16.msra.mxu0 %v3118
        %3273 = vmatprep.subr.bf16.mxu0 0
        %3274 = vmatpush1.bf16.msra.mxu0 %v3119
        %3275 = vmatprep.subr.bf16.mxu0 0
        %3276 = vmatpush1.bf16.msra.mxu0 %v3120
        %3277 = vmatprep.subr.bf16.mxu0 0
        %3278 = vmatpush1.bf16.msra.mxu0 %v3121
        %3279 = vmatprep.subr.bf16.mxu0 0
        %3280 = vmatpush1.bf16.msra.mxu0 %v3122
        %3281 = vmatprep.subr.bf16.mxu0 0
        %3282 = vmatpush1.bf16.msra.mxu0 %v3123
        %3283 = vmatprep.subr.bf16.mxu0 0
        %3284 = vmatpush1.bf16.msra.mxu0 %v3124
        %3285 = vmatprep.subr.bf16.mxu0 0
        %3286 = vmatpush1.bf16.msra.mxu0 %v3125
        %3287 = vmatprep.subr.bf16.mxu0 0
        %3288 = vmatpush1.bf16.msra.mxu0 %v3126
        %3289 = vmatprep.subr.bf16.mxu0 0
        %3290 = vmatpush1.bf16.msra.mxu0 %v3127
        %3291 = vmatprep.subr.bf16.mxu0 0
        %3292 = vmatpush1.bf16.msra.mxu0 %v3128
        %3293 = vmatprep.subr.bf16.mxu0 0
        %3294 = vmatpush1.bf16.msra.mxu0 %v3129
        %3295 = vmatprep.subr.bf16.mxu0 0
        %3296 = vmatpush1.bf16.msra.mxu0 %v3130
        %3297 = vmatprep.subr.bf16.mxu0 0
        %3298 = vmatpush1.bf16.msra.mxu0 %v3131
        %3299 = vmatprep.subr.bf16.mxu0 0
        %3300 = vmatpush1.bf16.msra.mxu0 %v3132
        %3301 = vmatprep.mubr.bf16.mxu0 %v2839
        %3302 = vmatmul.mubr.bf16.gmra.mrb[0].mxu0 %v2838
        %v3303 = vpop.f32.mrb[0].mxu0
        %v3304 = vadd.f32 %v3264, %v3303
        %v3305 = vpop.f32.mrb[0].mxu0
        %v3306 = vpop.f32.mrb[0].mxu0
        %v3307 = vpop.f32.mrb[0].mxu0
        %3308 = vdwg.mxu0
        %3309 = vmatprep.subr.bf16.mxu0 0
        %3310 = vmatpush1.bf16.msra.mxu0 %v3133
        %3311 = vmatprep.subr.bf16.mxu0 0
        %3312 = vmatpush1.bf16.msra.mxu0 %v3134
        %3313 = vmatprep.subr.bf16.mxu0 0
        %3314 = vmatpush1.bf16.msra.mxu0 %v3135
        %3315 = vmatprep.subr.bf16.mxu0 0
        %3316 = vmatpush1.bf16.msra.mxu0 %v3136
        %3317 = vmatprep.subr.bf16.mxu0 0
        %3318 = vmatpush1.bf16.msra.mxu0 %v3137
        %3319 = vmatprep.subr.bf16.mxu0 0
        %3320 = vmatpush1.bf16.msra.mxu0 %v3138
        %3321 = vmatprep.subr.bf16.mxu0 0
        %3322 = vmatpush1.bf16.msra.mxu0 %v3139
        %3323 = vmatprep.subr.bf16.mxu0 0
        %3324 = vmatpush1.bf16.msra.mxu0 %v3140
        %3325 = vmatprep.subr.bf16.mxu0 0
        %3326 = vmatpush1.bf16.msra.mxu0 %v3141
        %3327 = vmatprep.subr.bf16.mxu0 0
        %3328 = vmatpush1.bf16.msra.mxu0 %v3142
        %3329 = vmatprep.subr.bf16.mxu0 0
        %3330 = vmatpush1.bf16.msra.mxu0 %v3143
        %3331 = vmatprep.subr.bf16.mxu0 0
        %3332 = vmatpush1.bf16.msra.mxu0 %v3144
        %3333 = vmatprep.subr.bf16.mxu0 0
        %3334 = vmatpush1.bf16.msra.mxu0 %v3145
        %3335 = vmatprep.subr.bf16.mxu0 0
        %3336 = vmatpush1.bf16.msra.mxu0 %v3146
        %3337 = vmatprep.subr.bf16.mxu0 0
        %3338 = vmatpush1.bf16.msra.mxu0 %v3147
        %3339 = vmatprep.subr.bf16.mxu0 0
        %3340 = vmatpush1.bf16.msra.mxu0 %v3148
        %3341 = vmatprep.mubr.bf16.mxu0 %v2841
        %3342 = vmatmul.mubr.bf16.gmra.mrb[0].mxu0 %v2840
        %v3343 = vpop.f32.mrb[0].mxu0
        %v3344 = vadd.f32 %v3304, %v3343
        %v3345 = vpop.f32.mrb[0].mxu0
        %v3346 = vpop.f32.mrb[0].mxu0
        %v3347 = vpop.f32.mrb[0].mxu0
        %3348 = vdwg.mxu0
        %3349 = vmatprep.subr.bf16.mxu0 0
        %3350 = vmatpush1.bf16.msra.mxu0 %v3149
        %3351 = vmatprep.subr.bf16.mxu0 0
        %3352 = vmatpush1.bf16.msra.mxu0 %v3150
        %3353 = vmatprep.subr.bf16.mxu0 0
        %3354 = vmatpush1.bf16.msra.mxu0 %v3151
        %3355 = vmatprep.subr.bf16.mxu0 0
        %3356 = vmatpush1.bf16.msra.mxu0 %v3152
        %3357 = vmatprep.subr.bf16.mxu0 0
        %3358 = vmatpush1.bf16.msra.mxu0 %v3153
        %3359 = vmatprep.subr.bf16.mxu0 0
        %3360 = vmatpush1.bf16.msra.mxu0 %v3154
        %3361 = vmatprep.subr.bf16.mxu0 0
        %3362 = vmatpush1.bf16.msra.mxu0 %v3155
        %3363 = vmatprep.subr.bf16.mxu0 0
        %3364 = vmatpush1.bf16.msra.mxu0 %v3156
        %3365 = vmatprep.subr.bf16.mxu0 0
        %3366 = vmatpush1.bf16.msra.mxu0 %v3157
        %3367 = vmatprep.subr.bf16.mxu0 0
        %3368 = vmatpush1.bf16.msra.mxu0 %v3158
        %3369 = vmatprep.subr.bf16.mxu0 0
        %3370 = vmatpush1.bf16.msra.mxu0 %v3159
        %3371 = vmatprep.subr.bf16.mxu0 0
        %3372 = vmatpush1.bf16.msra.mxu0 %v3160
        %3373 = vmatprep.subr.bf16.mxu0 0
        %3374 = vmatpush1.bf16.msra.mxu0 %v3161
        %3375 = vmatprep.subr.bf16.mxu0 0
        %3376 = vmatpush1.bf16.msra.mxu0 %v3162
        %3377 = vmatprep.subr.bf16.mxu0 0
        %3378 = vmatpush1.bf16.msra.mxu0 %v3163
        %3379 = vmatprep.subr.bf16.mxu0 0
        %3380 = vmatpush1.bf16.msra.mxu0 %v3164
        %3381 = vmatprep.mubr.bf16.mxu0 %v2843
        %3382 = vmatmul.mubr.bf16.gmra.mrb[0].mxu0 %v2842
        %v3383 = vpop.f32.mrb[0].mxu0
        %v3384 = vadd.f32 %v3344, %v3383
        %v3385 = vpop.f32.mrb[0].mxu0
        %v3386 = vpop.f32.mrb[0].mxu0
        %v3387 = vpop.f32.mrb[0].mxu0
        %3388 = vdwg.mxu0
        %v3389 = vmax.f32 %v3384, 0.0
        %v3390 = vld [vmem:[%s15] sm:$0xf]
        %v3391 = vld [vmem:[%s15 + $0x4] sm:$0xf]
        %v3392 = vld [vmem:[%s15 + $0x8] sm:$0xf]
        %v3393 = vld [vmem:[%s15 + $0xc] sm:$0xf]
        %v3394 = vld [vmem:[%s15 + $0x10] sm:$0xf]
        %v3395 = vld [vmem:[%s15 + $0x14] sm:$0xf]
        %v3396 = vld [vmem:[%s15 + $0x18] sm:$0xf]
        %v3397 = vld [vmem:[%s15 + $0x1c] sm:$0xf]
        %v3398 = vld [vmem:[%s15 + $0x20] sm:$0xf]
        %v3399 = vld [vmem:[%s15 + $0x24] sm:$0xf]
        %v3400 = vld [vmem:[%s15 + $0x28] sm:$0xf]
        %v3401 = vld [vmem:[%s15 + $0x2c] sm:$0xf]
        %v3402 = vld [vmem:[%s15 + $0x30] sm:$0xf]
        %v3403 = vld [vmem:[%s15 + $0x34] sm:$0xf]
        %v3404 = vld [vmem:[%s15 + $0x38] sm:$0xf]
        %v3405 = vld [vmem:[%s15 + $0x3c] sm:$0xf]
        %v3406 = vpack.c.bf16 %v3389, %v3389
        %v3407 = vld [vmem:[%s16] sm:$0x1]
        %v3424 = vunpack.c.l.b16 %v3390
        %v3425 = vunpack.c.l.b16 %v3391
        %v3426 = vunpack.c.l.b16 %v3392
        %v3427 = vunpack.c.l.b16 %v3393
        %v3428 = vunpack.c.l.b16 %v3394
        %v3429 = vunpack.c.l.b16 %v3395
        %v3430 = vunpack.c.l.b16 %v3396
        %v3431 = vunpack.c.l.b16 %v3397
        %v3432 = vunpack.c.l.b16 %v3398
        %v3433 = vunpack.c.l.b16 %v3399
        %v3434 = vunpack.c.l.b16 %v3400
        %v3435 = vunpack.c.l.b16 %v3401
        %v3436 = vunpack.c.l.b16 %v3402
        %v3437 = vunpack.c.l.b16 %v3403
        %v3438 = vunpack.c.l.b16 %v3404
        %v3439 = vunpack.c.l.b16 %v3405
        %v3440 = vpack.c.b16 %v3425, %v3424
        %v3441 = vpack.c.b16 %v3427, %v3426
        %v3442 = vpack.c.b16 %v3429, %v3428
        %v3443 = vpack.c.b16 %v3431, %v3430
        %v3444 = vpack.c.b16 %v3433, %v3432
        %v3445 = vpack.c.b16 %v3435, %v3434
        %v3446 = vpack.c.b16 %v3437, %v3436
        %v3447 = vpack.c.b16 %v3439, %v3438
        %3456 = vmatprep.subr.bf16.mxu0 0
        %3457 = vmatpush1.bf16.msra.mxu0 %v3440
        %3458 = vmatprep.subr.bf16.mxu0 0
        %3459 = vmatpush1.bf16.msra.mxu0 %v3441
        %3460 = vmatprep.subr.bf16.mxu0 0
        %3461 = vmatpush1.bf16.msra.mxu0 %v3442
        %3462 = vmatprep.subr.bf16.mxu0 0
        %3463 = vmatpush1.bf16.msra.mxu0 %v3443
        %3464 = vmatprep.subr.bf16.mxu0 0
        %3465 = vmatpush1.bf16.msra.mxu0 %v3444
        %3466 = vmatprep.subr.bf16.mxu0 0
        %3467 = vmatpush1.bf16.msra.mxu0 %v3445
        %3468 = vmatprep.subr.bf16.mxu0 0
        %3469 = vmatpush1.bf16.msra.mxu0 %v3446
        %3470 = vmatprep.subr.bf16.mxu0 0
        %3471 = vmatpush1.bf16.msra.mxu0 %v3447
        %3472 = vmatprep.subr.bf16.mxu0 0
        %3473 = vmatpush1.bf16.msra.mxu0 0
        %3474 = vmatprep.subr.bf16.mxu0 0
        %3475 = vmatpush1.bf16.msra.mxu0 0
        %3476 = vmatprep.subr.bf16.mxu0 0
        %3477 = vmatpush1.bf16.msra.mxu0 0
        %3478 = vmatprep.subr.bf16.mxu0 0
        %3479 = vmatpush1.bf16.msra.mxu0 0
        %3480 = vmatprep.subr.bf16.mxu0 0
        %3481 = vmatpush1.bf16.msra.mxu0 0
        %3482 = vmatprep.subr.bf16.mxu0 0
        %3483 = vmatpush1.bf16.msra.mxu0 0
        %3484 = vmatprep.subr.bf16.mxu0 0
        %3485 = vmatpush1.bf16.msra.mxu0 0
        %3486 = vmatprep.subr.bf16.mxu0 0
        %3487 = vmatpush1.bf16.msra.mxu0 0
        %3488 = vmatprep.mubr.bf16.mxu0 0
        %3489 = vmatmul.mubr.bf16.gmra.mrb[0].mxu0 %v3406
        %v3490 = vpop.f32.mrb[0].mxu0
        %v3491 = vadd.f32 %v3407, %v3490
        %v3492 = vpop.f32.mrb[0].mxu0
        %v3493 = vpop.f32.mrb[0].mxu0
        %v3494 = vpop.f32.mrb[0].mxu0
        %3495 = vdwg.mxu0
        %v3496 = vmax.f32 %v3491, 0.0
        %v3497 = vld [vmem:[#allocation6] sm:$0xf]
        %v3498 = vld [vmem:[#allocation6 + $0x4] sm:$0xf]
        %v3499 = vld [vmem:[#allocation6 + $0x8] sm:$0xf]
        %v3500 = vld [vmem:[#allocation6 + $0xc] sm:$0xf]
        %v3501 = vld [vmem:[#allocation6 + $0x10] sm:$0xf]
        %v3502 = vld [vmem:[#allocation6 + $0x14] sm:$0xf]
        %v3503 = vld [vmem:[#allocation6 + $0x18] sm:$0xf]
        %v3504 = vld [vmem:[#allocation6 + $0x1c] sm:$0xf]
        %v3505 = vpack.c.bf16 %v3496, %v3496
        %v3506 = vld [vmem:[%s18] sm:$0x1]
        %v3515 = vunpack.c.l.b16 %v3497
        %v3516 = vunpack.c.l.b16 %v3498
        %v3517 = vunpack.c.l.b16 %v3499
        %v3518 = vunpack.c.l.b16 %v3500
        %v3519 = vunpack.c.l.b16 %v3501
        %v3520 = vunpack.c.l.b16 %v3502
        %v3521 = vunpack.c.l.b16 %v3503
        %v3522 = vunpack.c.l.b16 %v3504
        %v3523 = vpack.c.b16 %v3516, %v3515
        %v3524 = vpack.c.b16 %v3518, %v3517
        %v3525 = vpack.c.b16 %v3520, %v3519
        %v3526 = vpack.c.b16 %v3522, %v3521
        %v3532 = vsel %vm1193, %v3505, 0
        %3534 = vmatprep.subr.bf16.mxu0 0
        %3535 = vmatpush1.bf16.msra.mxu0 %v3523
        %3536 = vmatprep.subr.bf16.mxu0 0
        %3537 = vmatpush1.bf16.msra.mxu0 %v3524
        %3538 = vmatprep.subr.bf16.mxu0 0
        %3539 = vmatpush1.bf16.msra.mxu0 %v3525
        %3540 = vmatprep.subr.bf16.mxu0 0
        %3541 = vmatpush1.bf16.msra.mxu0 %v3526
        %3542 = vmatprep.subr.bf16.mxu0 0
        %3543 = vmatpush1.bf16.msra.mxu0 0
        %3544 = vmatprep.subr.bf16.mxu0 0
        %3545 = vmatpush1.bf16.msra.mxu0 0
        %3546 = vmatprep.subr.bf16.mxu0 0
        %3547 = vmatpush1.bf16.msra.mxu0 0
        %3548 = vmatprep.subr.bf16.mxu0 0
        %3549 = vmatpush1.bf16.msra.mxu0 0
        %3550 = vmatprep.subr.bf16.mxu0 0
        %3551 = vmatpush1.bf16.msra.mxu0 0
        %3552 = vmatprep.subr.bf16.mxu0 0
        %3553 = vmatpush1.bf16.msra.mxu0 0
        %3554 = vmatprep.subr.bf16.mxu0 0
        %3555 = vmatpush1.bf16.msra.mxu0 0
        %3556 = vmatprep.subr.bf16.mxu0 0
        %3557 = vmatpush1.bf16.msra.mxu0 0
        %3558 = vmatprep.subr.bf16.mxu0 0
        %3559 = vmatpush1.bf16.msra.mxu0 0
        %3560 = vmatprep.subr.bf16.mxu0 0
        %3561 = vmatpush1.bf16.msra.mxu0 0
        %3562 = vmatprep.subr.bf16.mxu0 0
        %3563 = vmatpush1.bf16.msra.mxu0 0
        %3564 = vmatprep.subr.bf16.mxu0 0
        %3565 = vmatpush1.bf16.msra.mxu0 0
        %3566 = vmatprep.mubr.bf16.mxu0 0
        %3567 = vmatmul.mubr.bf16.gmra.mrb[0].mxu0 %v3532
        %v3568 = vpop.f32.mrb[0].mxu0
        %v3569 = vadd.f32 %v3506, %v3568
        %v3570 = vpop.f32.mrb[0].mxu0
        %v3571 = vpop.f32.mrb[0].mxu0
        %v3572 = vpop.f32.mrb[0].mxu0
        %3573 = vdwg.mxu0
        %3574 = vst [vmem:[%s691] sm:$0x1] %v3569
        %p3575 = scmp.lt.s32.totalorder %s40, 1
        %s3576 = scalar_select %p3575, %s40, 1
        %s3577 = smul.addr %s3576, 8
        %s3578 = scalar_lea.vmem %s19, %s3577
        %p3579 = scmp.lt.s32.totalorder %s40, 1
        %s3580 = scalar_select %p3579, %s40, 1
        %s3581 = smul.addr %s3580, 8
        %s3582 = scalar_lea.vmem %s20, %s3581
        %s3583 = sand.u32 %s504, 1
        %s3584 = scalar_lea.sflag [#allocation5], %s3583
        %s3585 = sand.u32 %s504, 1
        %s3586 = scalar_lea.vmem [#allocation8], %s3585
        // Predicated region
        $region105: #{deep_model_forward.1} parent=95 // pred_check
          %p3587 = pneg %p462
        $region106: #{deep_model_forward.1} parent=95 // pred_check_branch
          %3589 = sbr.rel (%p3587) target = $region108
        $region107: #{deep_model_forward.1} parent=95 // pred_region
          _
        $region108: #{deep_model_forward.1} parent=95 // pred_fallthru
          _
        // Predicated region
        $region109: #{deep_model_forward.1} parent=95 // pred_check
          %p3590 = pneg %p488
        $region110: #{deep_model_forward.1} parent=95 // pred_check_branch
          %3592 = sbr.rel (%p3590) target = $region112
        $region111: #{deep_model_forward.1} parent=95 // pred_region
          _
        $region112: #{deep_model_forward.1} parent=95 // pred_fallthru
          _
        // Predicated region
        $region113: #{deep_model_forward.1} parent=95 // pred_check
          %p3593 = pneg %p514
        $region114: #{deep_model_forward.1} parent=95 // pred_check_branch
          %3595 = sbr.rel (%p3593) target = $region116
        $region115: #{deep_model_forward.1} parent=95 // pred_region
          %s3597 = ssub.s32 16, 16
          %3598 = vsyncadd %s3584, %s3597
          %s3599 = smul.addr %s40, 16
          %s3600 = scalar_lea.hbm %s21, %s3599
          %s3602 = sshll.u32 %s3586, 4
          %s3603 = int_to_ptr.vmem [resolvable:$true] %s3602
          %3605 = dma.vmem_to_hbm [thread:$0]  %s3603, 16, %s3600, %s3584
        $region116: #{deep_model_forward.1} parent=95 // pred_fallthru
          _
      $region96: #{deep_model_forward.1} parent=5 // pred_fallthru
        _
      %p3606 = scmp.le.s32.totalorder 2, %s35
      // Predicated region
      $region117: #{deep_model_forward.1} parent=5 // pred_check
        %p3607 = pneg %p3606
      $region118: #{deep_model_forward.1} parent=5 // pred_check_branch
        %3609 = sbr.rel (%p3607) target = $region120
      $region119: #{deep_model_forward.1} parent=5 // pred_region
        %s3610 = ssub.s32 %s35, 2
        // Predicated region
        $region121: #{deep_model_forward.1} parent=119 // pred_check
          %p3611 = pneg %p468
        $region122: #{deep_model_forward.1} parent=119 // pred_check_branch
          %3613 = sbr.rel (%p3611) target = $region124
        $region123: #{deep_model_forward.1} parent=119 // pred_region
          %p3614 = scmp.lt.s32.totalorder %s41, 1
          %s3615 = scalar_select %p3614, %s41, 1
          %s3616 = smul.addr %s3615, 8
          %s3617 = scalar_lea.vmem %s19, %s3616
        $region124: #{deep_model_forward.1} parent=119 // pred_fallthru
          _
        // Predicated region
        $region125: #{deep_model_forward.1} parent=119 // pred_check
          %p3618 = pneg %p494
        $region126: #{deep_model_forward.1} parent=119 // pred_check_branch
          %3620 = sbr.rel (%p3618) target = $region128
        $region127: #{deep_model_forward.1} parent=119 // pred_region
          %p3621 = scmp.lt.s32.totalorder %s41, 1
          %s3622 = scalar_select %p3621, %s41, 1
          %s3623 = smul.addr %s3622, 8
          %s3624 = scalar_lea.vmem %s20, %s3623
        $region128: #{deep_model_forward.1} parent=119 // pred_fallthru
          _
        // Predicated region
        $region129: #{deep_model_forward.1} parent=119 // pred_check
          %p3625 = pneg %p520
        $region130: #{deep_model_forward.1} parent=119 // pred_check_branch
          %3627 = sbr.rel (%p3625) target = $region132
        $region131: #{deep_model_forward.1} parent=119 // pred_region
          %s3628 = sand.u32 %s505, 1
          %s3629 = scalar_lea.sflag [#allocation5], %s3628
          %s3630 = sand.u32 %s505, 1
          %s3631 = scalar_lea.vmem [#allocation8], %s3630
          %3632 = dma.done %s3629, 16
        $region132: #{deep_model_forward.1} parent=119 // pred_fallthru
          _
      $region120: #{deep_model_forward.1} parent=5 // pred_fallthru
        _
    $region6: #{deep_model_forward.1} parent=1 // loop_footer
      %s39 = sadd.s32 1, %s35
    $region7: #{deep_model_forward.1} parent=1 // loop_footer_branch
      %34 = sbr.rel target = $region3
    $region8: #{deep_model_forward.1} parent=1 // loop_exit
      _
    %3633 = vsyncpa [#allocation4], 1
    %s3634 = scalar_lea.sflag [#allocation4], 1
    %3635 = vsyncpa %s3634, 1
    %3636 = vsyncpa [#allocation7], 1
    %3637 = vsyncpa [#allocation5], 1
    %s3638 = scalar_lea.sflag [#allocation5], 1
    %3639 = vsyncpa %s3638, 1

</llo_original>
